<compile_context>
chip_gen: v7x
topology: tpu7x:2x2x1
jax: 0.10.0
libtpu: 0.0.40
codegen_flags: <defaults>
</compile_context>

<pallas_src>
import jax
import jax.numpy as jnp
from jax.experimental import pallas as pl
from jax.experimental.pallas import tpu as pltpu


# ----------------------------------------------------------------------------- kernel
def _cpm_kernel(img_ref, txt_ref, conj_ref,
                w1i_ref, b1i_ref, w2i_ref, b2i_ref,
                w1t_ref, b1t_ref, w2t_ref, b2t_ref,
                concat_ref, x1_ref, x2_ref):
    bf16 = jnp.bfloat16
    img = img_ref[...]                       # (bt, Di) bf16
    txt = txt_ref[...]                       # (bt, Dt) bf16
    conj = conj_ref[...]                     # (bt, 1)  f32

    # ---- image branch: (BN folded) Linear -> Dropout(eval=id) -> ReLU -> Linear ----
    hi = jnp.dot(img, w1i_ref[...], preferred_element_type=jnp.float32) + b1i_ref[...]
    hi = jnp.maximum(hi, 0.0)
    x1 = jnp.dot(hi.astype(bf16), w2i_ref[...],
                 preferred_element_type=jnp.float32) + b2i_ref[...]

    # ---- text branch: (BN folded) Linear -> ReLU -> Linear ----
    ht = jnp.dot(txt, w1t_ref[...], preferred_element_type=jnp.float32) + b1t_ref[...]
    ht = jnp.maximum(ht, 0.0)
    x2 = jnp.dot(ht.astype(bf16), w2t_ref[...],
                 preferred_element_type=jnp.float32) + b2t_ref[...]

    # ---- complex projection epilogue (f32). NOTE: sin/cos lower to VPU range
    # reduction + polynomial (not single EUP ops); kept in f32 for accuracy. At
    # production dims the kernel is HBM-bound so these are filler work.
    re_score = x1 * jnp.cos(x2)
    im_score = x1 * (conj * jnp.sin(x2))

    di = x1.shape[1]
    x1_ref[...] = x1.astype(x1_ref.dtype)
    x2_ref[...] = x2.astype(x2_ref.dtype)
    # Single lane-dense output slab == torch.cat([re_score, im_score], dim=1).
    concat_ref[:, :di] = re_score.astype(concat_ref.dtype)
    concat_ref[:, di:] = im_score.astype(concat_ref.dtype)


# ----------------------------------------------------------------------- tiling / VMEM
def _pick_bt(B):
    """Largest batch tile with a megacore-friendly step count.

    Prefers an EVEN number of grid steps and >=4 steps total (>=2 per v7x TC) so each
    TensorCore gets enough iterations for double-buffer overlap; relaxes if B is small.
    """
    cands = (512, 256, 128, 64, 32, 16, 8)
    for min_steps, need_even in ((4, True), (2, True), (2, False), (1, False)):
        for bt in cands:
            if B % bt:
                continue
            steps = B // bt
            if steps < min_steps or (need_even and steps % 2):
                continue
            return bt
    return B  # single tile == full batch (valid: block dim equals array dim)


def _padded_bytes(shape, dtype):
    """VMEM footprint of a (…, R, C) buffer after (sublane, 128-lane) padding."""
    itemsize = jnp.dtype(dtype).itemsize
    shape = tuple(shape) if len(shape) >= 2 else (1,) + tuple(shape)
    *lead, r, c = shape
    sub = 8 * max(1, 4 // itemsize)                 # bf16 packs 16 rows per vreg
    rp = -(-r // sub) * sub
    cp = -(-c // 128) * 128
    n = 1
    for d in lead:
        n *= d
    return n * rp * cp * itemsize


def _vmem_budget(bt, Di, Dt, out_dtype):
    """Scoped-VMEM bound derived from actual buffer sizes (not a blanket constant)."""
    bf16, f32 = jnp.bfloat16, jnp.float32
    double_buffered = [                              # pipelined per-step tiles
        ((bt, Di), bf16), ((bt, Dt), bf16), ((bt, 1), f32),          # inputs
        ((bt, 2 * Di), out_dtype), ((bt, Di), out_dtype), ((bt, Di), out_dtype),  # outputs
    ]
    single_buffered = [                              # constant weights / biases
        ((Di, Di), bf16), ((1, Di), f32), ((Di, Di), bf16), ((1, Di), f32),
        ((Dt, Di), bf16), ((1, Di), f32), ((Di, Di), bf16), ((1, Di), f32),
    ]
    need = 2 * sum(_padded_bytes(s, d) for s, d in double_buffered) \
         + sum(_padded_bytes(s, d) for s, d in single_buffered)
    # 2x headroom for compute temporaries / compiler scratch, clamped to a sane window
    # (fits v7x's 64 MiB per-TC VMEM with room to spare at production dims).
    return int(min(max(2 * need + (4 << 20), 16 << 20), 96 << 20))


# -------------------------------------------------------------------------- parameters
def _fold_bn_into_linears(params, eps=1e-5):
    """Eval-mode BatchNorm affine folded into the first Linear of each branch.

    Returns bf16 weights (MXU-native) and f32 biases.
    """
    bf16 = jnp.bfloat16
    bni_s = params["bn_i_gamma"] / jnp.sqrt(params["bn_i_var"] + eps)
    bni_b = params["bn_i_beta"] - params["bn_i_mean"] * bni_s
    bnt_s = params["bn_t_gamma"] / jnp.sqrt(params["bn_t_var"] + eps)
    bnt_b = params["bn_t_beta"] - params["bn_t_mean"] * bnt_s
    return {
        "w1i": (bni_s[:, None] * params["w1_img"]).astype(bf16),
        "b1i": bni_b @ params["w1_img"] + params["b1_img"],
        "w2i": params["w2_img"].astype(bf16),
        "b2i": params["b2_img"],
        "w1t": (bnt_s[:, None] * params["w1_txt"]).astype(bf16),
        "b1t": bnt_b @ params["w1_txt"] + params["b1_txt"],
        "w2t": params["w2_txt"].astype(bf16),
        "b2t": params["b2_txt"],
    }


# ----------------------------------------------------------------------------- wrapper
def complex_projection_forward(img, txt, conjugate, params, *, bt=None,
                               out_dtype=jnp.float32):
    """Mirrors ComplexProjectionModule.forward (eval mode).

    img:       (B, Di)   == x[0]
    txt:       (B, Dt)   == x[1]
    conjugate: (N, 1)    == x[2]  (sliced to [:B], like the PyTorch code)
    out_dtype: dtype of concat/x1/x2/re/im (f32 matches PyTorch; bf16 halves HBM
               writeback on the mem-bound path if downstream tolerates it).
    Returns (concat_x, x1, x2, x0copy, re_score, im_score) with PyTorch shapes.
    """
    B, Di = img.shape
    _, Dt = txt.shape
    if bt is None:
        bt = _pick_bt(B)
    assert B % bt == 0

    conj = conjugate[:B].astype(jnp.float32)            # CONJUGATE[:num_samples]
    folded = _fold_bn_into_linears(params)
    bf16 = jnp.bfloat16
    img_bf = img.astype(bf16)                            # bf16 operands: MXU-native,
    txt_bf = txt.astype(bf16)                            # halves input DMA traffic

    row = lambda v: v.reshape(1, -1)
    grid = (B // bt,)
    batch_spec = lambda d: pl.BlockSpec((bt, d), lambda i: (i, 0))
    # Constant weights/biases: single-buffered (constant index_map -> 2nd buffer wasted).
    const_spec = lambda r, c: pl.BlockSpec((r, c), lambda i: (0, 0),
                                           pipeline_mode=pl.Buffered(1))

    in_specs = [
        batch_spec(Di),            # img (bf16)
        batch_spec(Dt),            # txt (bf16)
        batch_spec(1),             # conjugate (f32)
        const_spec(Di, Di), const_spec(1, Di),          # W1_img (BN folded), b1_img
        const_spec(Di, Di), const_spec(1, Di),          # W2_img, b2_img
        const_spec(Dt, Di), const_spec(1, Di),          # W1_txt (BN folded), b1_txt
        const_spec(Di, Di), const_spec(1, Di),          # W2_txt, b2_txt
    ]
    out_specs = [
        batch_spec(2 * Di),        # concat_x  (re | im) — single wide lane-dense slab
        batch_spec(Di),            # x1
        batch_spec(Di),            # x2
    ]
    out_shape = [
        jax.ShapeDtypeStruct((B, 2 * Di), out_dtype),
        jax.ShapeDtypeStruct((B, Di), out_dtype),
        jax.ShapeDtypeStruct((B, Di), out_dtype),
    ]

    concat_x, x1, x2 = pl.pallas_call(
        _cpm_kernel,
        grid=grid,
        in_specs=in_specs,
        out_specs=out_specs,
        out_shape=out_shape,
        compiler_params=pltpu.CompilerParams(
            dimension_semantics=("parallel",),
            vmem_limit_bytes=_vmem_budget(bt, Di, Dt, out_dtype)),
    )(img_bf, txt_bf, conj,
      folded["w1i"], row(folded["b1i"]), folded["w2i"], row(folded["b2i"]),
      folded["w1t"], row(folded["b1t"]), folded["w2t"], row(folded["b2t"]))

    # re/im are views of the concat slab (no duplicate HBM writes in the kernel).
    re_score = concat_x[:, :Di]
    im_score = concat_x[:, Di:]

    # unsqueeze(1) glue; x0copy keeps the original (f32) input dtype.
    x0copy = img[:, None, :]
    return (concat_x, x1[:, None, :], x2[:, None, :], x0copy,
            re_score[:, None, :], im_score[:, None, :])


# -------------------------------------------------------------------------- references
def _reference_matched(img, txt, conjugate, folded):
    """Pure-JAX reference mirroring the kernel's exact math (bf16 MXU operands,
    f32 accumulation, BN already folded). Tight-tolerance structural check."""
    bf16 = jnp.bfloat16
    conj = conjugate[: img.shape[0]].astype(jnp.float32)
    hi = jnp.dot(img.astype(bf16), folded["w1i"],
                 preferred_element_type=jnp.float32) + folded["b1i"]
    hi = jnp.maximum(hi, 0.0)
    x1 = jnp.dot(hi.astype(bf16), folded["w2i"],
                 preferred_element_type=jnp.float32) + folded["b2i"]
    ht = jnp.dot(txt.astype(bf16), folded["w1t"],
                 preferred_element_type=jnp.float32) + folded["b1t"]
    ht = jnp.maximum(ht, 0.0)
    x2 = jnp.dot(ht.astype(bf16), folded["w2t"],
                 preferred_element_type=jnp.float32) + folded["b2t"]
    re = x1 * jnp.cos(x2)
    im = x1 * (conj * jnp.sin(x2))
    concat = jnp.concatenate([re, im], axis=1)
    return (concat, x1[:, None, :], x2[:, None, :], img[:, None, :],
            re[:, None, :], im[:, None, :])


def _reference_f32(img, txt, conjugate, params):
    """Pure-f32 unfused reference (BN elementwise, precision=HIGHEST matmuls).
    Loose-tolerance semantic check (difference == bf16 MXU rounding)."""
    hp = jax.lax.Precision.HIGHEST
    eps = 1e-5
    conj = conjugate[: img.shape[0]]
    bni_s = params["bn_i_gamma"] / jnp.sqrt(params["bn_i_var"] + eps)
    bni_b = params["bn_i_beta"] - params["bn_i_mean"] * bni_s
    bnt_s = params["bn_t_gamma"] / jnp.sqrt(params["bn_t_var"] + eps)
    bnt_b = params["bn_t_beta"] - params["bn_t_mean"] * bnt_s

    xi = img * bni_s + bni_b
    hi = jnp.maximum(jnp.dot(xi, params["w1_img"], precision=hp) + params["b1_img"], 0.0)
    x1 = jnp.dot(hi, params["w2_img"], precision=hp) + params["b2_img"]

    xt = txt * bnt_s + bnt_b
    ht = jnp.maximum(jnp.dot(xt, params["w1_txt"], precision=hp) + params["b1_txt"], 0.0)
    x2 = jnp.dot(ht, params["w2_txt"], precision=hp) + params["b2_txt"]

    re = x1 * jnp.cos(x2)
    im = x1 * (conj * jnp.sin(x2))
    concat = jnp.concatenate([re, im], axis=1)
    return (concat, x1[:, None, :], x2[:, None, :], img[:, None, :],
            re[:, None, :], im[:, None, :])


# ------------------------------------------------------------------------------- main
if __name__ == "__main__":
    # Small TPU-friendly test shapes (correctness only). Production dims are
    # image_embed_dim=512 / text_embed_dim=768 — benchmark/tune there, not here.
    B, Di, Dt = 256, 128, 256

    key = jax.random.PRNGKey(0)
    keys = jax.random.split(key, 16)

    img = jax.random.normal(keys[0], (B, Di), jnp.float32)          # x[0]
    txt = jax.random.normal(keys[1], (B, Dt), jnp.float32)          # x[1]
    # CONJUGATE buffer (longer than batch, sliced to [:B] like the PyTorch code).
    conjugate = jnp.where(
        jax.random.bernoulli(keys[2], 0.5, (2 * B, 1)), 1.0, -1.0).astype(jnp.float32)

    s = 0.05
    params = {
        # image_features: BatchNorm1d(Di), Linear(Di, Di), Dropout, ReLU, Linear(Di, Di)
        "bn_i_gamma": 1.0 + s * jax.random.normal(keys[3], (Di,), jnp.float32),
        "bn_i_beta": s * jax.random.normal(keys[4], (Di,), jnp.float32),
        "bn_i_mean": s * jax.random.normal(keys[5], (Di,), jnp.float32),
        "bn_i_var": jnp.abs(1.0 + s * jax.random.normal(keys[6], (Di,), jnp.float32)),
        "w1_img": s * jax.random.normal(keys[7], (Di, Di), jnp.float32),
        "b1_img": s * jax.random.normal(keys[8], (Di,), jnp.float32),
        "w2_img": s * jax.random.normal(keys[9], (Di, Di), jnp.float32),
        "b2_img": s * jax.random.normal(keys[10], (Di,), jnp.float32),
        # bert_features: BatchNorm1d(Dt), Linear(Dt, Di), ReLU, Linear(Di, Di)
        "bn_t_gamma": 1.0 + s * jax.random.normal(keys[11], (Dt,), jnp.float32),
        "bn_t_beta": s * jax.random.normal(keys[12], (Dt,), jnp.float32),
        "bn_t_mean": s * jax.random.normal(keys[13], (Dt,), jnp.float32),
        "bn_t_var": jnp.abs(1.0 + s * jax.random.normal(keys[14], (Dt,), jnp.float32)),
        "w1_txt": s * jax.random.normal(keys[15], (Dt, Di), jnp.float32),
        "b1_txt": s * jax.random.normal(jax.random.fold_in(key, 100), (Di,), jnp.float32),
        "w2_txt": s * jax.random.normal(jax.random.fold_in(key, 101), (Di, Di), jnp.float32),
        "b2_txt": s * jax.random.normal(jax.random.fold_in(key, 102), (Di,), jnp.float32),
    }

    outs = complex_projection_forward(img, txt, conjugate, params)
    outs = jax.block_until_ready(outs)

    names = ["concat_x", "x1", "x2", "x0copy", "re_score", "im_score"]

    # 1) Tight structural check vs. a reference that mirrors the kernel math exactly.
    folded = _fold_bn_into_linears(params)
    refs_m = _reference_matched(img, txt, conjugate, folded)
    for name, o, r in zip(names, outs, refs_m):
        assert o.shape == r.shape, (name, o.shape, r.shape)
        err = float(jnp.max(jnp.abs(o.astype(jnp.float32) - r.astype(jnp.float32))))
        assert err < 2e-3, ("matched", name, err)

    # 2) Loose semantic check vs. the unfused pure-f32 module (difference is bf16 MXU
    #    rounding of the two matmuls per branch).
    refs_f = _reference_f32(img, txt, conjugate, params)
    for name, o, r in zip(names, outs, refs_f):
        err = float(jnp.max(jnp.abs(o.astype(jnp.float32) - r)))
        assert err < 1e-1, ("f32", name, err)

    print("KERNEL_OK")
</pallas_src>

<mosaic_0001>
module attributes {stable_mosaic.version = 11 : i64} {
  func.func @_cpm_kernel(%arg0: i32, %arg1: memref<64x128xbf16, #tpu.memory_space<vmem>>, %arg2: memref<64x256xbf16, #tpu.memory_space<vmem>>, %arg3: memref<64x1xf32, #tpu.memory_space<vmem>>, %arg4: memref<128x128xbf16, #tpu.memory_space<vmem>>, %arg5: memref<1x128xf32, #tpu.memory_space<vmem>>, %arg6: memref<128x128xbf16, #tpu.memory_space<vmem>>, %arg7: memref<1x128xf32, #tpu.memory_space<vmem>>, %arg8: memref<256x128xbf16, #tpu.memory_space<vmem>>, %arg9: memref<1x128xf32, #tpu.memory_space<vmem>>, %arg10: memref<128x128xbf16, #tpu.memory_space<vmem>>, %arg11: memref<1x128xf32, #tpu.memory_space<vmem>>, %arg12: memref<64x256xf32, #tpu.memory_space<vmem>>, %arg13: memref<64x128xf32, #tpu.memory_space<vmem>>, %arg14: memref<64x128xf32, #tpu.memory_space<vmem>>) attributes {dimension_semantics = [#tpu.dimension_semantics<parallel>], iteration_bounds = array<i64: 4>, scalar_prefetch = 0 : i64, scratch_operands = 0 : i64, tpu.core_type = #tpu.core_type<tc>, window_params = [{transform_indices = @transform_0, window_bounds = array<i64: 64, 128>}, {transform_indices = @transform_1, window_bounds = array<i64: 64, 256>}, {transform_indices = @transform_2, window_bounds = array<i64: 64, 1>}, {pipeline_mode = #tpu.pipeline_mode<synchronous>, transform_indices = @transform_3, window_bounds = array<i64: 128, 128>}, {pipeline_mode = #tpu.pipeline_mode<synchronous>, transform_indices = @transform_4, window_bounds = array<i64: 1, 128>}, {pipeline_mode = #tpu.pipeline_mode<synchronous>, transform_indices = @transform_5, window_bounds = array<i64: 128, 128>}, {pipeline_mode = #tpu.pipeline_mode<synchronous>, transform_indices = @transform_6, window_bounds = array<i64: 1, 128>}, {pipeline_mode = #tpu.pipeline_mode<synchronous>, transform_indices = @transform_7, window_bounds = array<i64: 256, 128>}, {pipeline_mode = #tpu.pipeline_mode<synchronous>, transform_indices = @transform_8, window_bounds = array<i64: 1, 128>}, {pipeline_mode = #tpu.pipeline_mode<synchronous>, transform_indices = @transform_9, window_bounds = array<i64: 128, 128>}, {pipeline_mode = #tpu.pipeline_mode<synchronous>, transform_indices = @transform_10, window_bounds = array<i64: 1, 128>}, {transform_indices = @transform_11, window_bounds = array<i64: 64, 256>}, {transform_indices = @transform_12, window_bounds = array<i64: 64, 128>}, {transform_indices = @transform_13, window_bounds = array<i64: 64, 128>}]} {
    %c0 = arith.constant 0 : index
    %c0_0 = arith.constant 0 : index
    %0 = vector.load %arg1[%c0, %c0_0] : memref<64x128xbf16, #tpu.memory_space<vmem>>, vector<64x128xbf16>
    %c0_1 = arith.constant 0 : index
    %c0_2 = arith.constant 0 : index
    %1 = vector.load %arg2[%c0_1, %c0_2] : memref<64x256xbf16, #tpu.memory_space<vmem>>, vector<64x256xbf16>
    %c0_3 = arith.constant 0 : index
    %c0_4 = arith.constant 0 : index
    %2 = vector.load %arg3[%c0_3, %c0_4] : memref<64x1xf32, #tpu.memory_space<vmem>>, vector<64x1xf32>
    %c0_5 = arith.constant 0 : index
    %c0_6 = arith.constant 0 : index
    %3 = vector.load %arg4[%c0_5, %c0_6] : memref<128x128xbf16, #tpu.memory_space<vmem>>, vector<128x128xbf16>
    %cst = arith.constant dense<0.000000e+00> : vector<64x128xf32>
    %4 = tpu.matmul %0, %3, %cst {dimension_numbers = #tpu.dot_dimension_numbers<[1], [0], [0], [1], [0, 0, 1, 1], [], []>} : vector<64x128xbf16>, vector<128x128xbf16>, vector<64x128xf32> -> vector<64x128xf32>
    %c0_7 = arith.constant 0 : index
    %c0_8 = arith.constant 0 : index
    %5 = vector.load %arg5[%c0_7, %c0_8] : memref<1x128xf32, #tpu.memory_space<vmem>>, vector<1x128xf32>
    %6 = vector.broadcast %5 : vector<1x128xf32> to vector<64x128xf32>
    %7 = arith.addf %4, %6 : vector<64x128xf32>
    %cst_9 = arith.constant 0.000000e+00 : f32
    %8 = vector.broadcast %cst_9 : f32 to vector<64x128xf32>
    %9 = arith.maximumf %7, %8 : vector<64x128xf32>
    %10 = arith.truncf %9 : vector<64x128xf32> to vector<64x128xbf16>
    %c0_10 = arith.constant 0 : index
    %c0_11 = arith.constant 0 : index
    %11 = vector.load %arg6[%c0_10, %c0_11] : memref<128x128xbf16, #tpu.memory_space<vmem>>, vector<128x128xbf16>
    %cst_12 = arith.constant dense<0.000000e+00> : vector<64x128xf32>
    %12 = tpu.matmul %10, %11, %cst_12 {dimension_numbers = #tpu.dot_dimension_numbers<[1], [0], [0], [1], [0, 0, 1, 1], [], []>} : vector<64x128xbf16>, vector<128x128xbf16>, vector<64x128xf32> -> vector<64x128xf32>
    %c0_13 = arith.constant 0 : index
    %c0_14 = arith.constant 0 : index
    %13 = vector.load %arg7[%c0_13, %c0_14] : memref<1x128xf32, #tpu.memory_space<vmem>>, vector<1x128xf32>
    %14 = vector.broadcast %13 : vector<1x128xf32> to vector<64x128xf32>
    %15 = arith.addf %12, %14 : vector<64x128xf32>
    %c0_15 = arith.constant 0 : index
    %c0_16 = arith.constant 0 : index
    %16 = vector.load %arg8[%c0_15, %c0_16] : memref<256x128xbf16, #tpu.memory_space<vmem>>, vector<256x128xbf16>
    %cst_17 = arith.constant dense<0.000000e+00> : vector<64x128xf32>
    %17 = tpu.matmul %1, %16, %cst_17 {dimension_numbers = #tpu.dot_dimension_numbers<[1], [0], [0], [1], [0, 0, 1, 1], [], []>} : vector<64x256xbf16>, vector<256x128xbf16>, vector<64x128xf32> -> vector<64x128xf32>
    %c0_18 = arith.constant 0 : index
    %c0_19 = arith.constant 0 : index
    %18 = vector.load %arg9[%c0_18, %c0_19] : memref<1x128xf32, #tpu.memory_space<vmem>>, vector<1x128xf32>
    %19 = vector.broadcast %18 : vector<1x128xf32> to vector<64x128xf32>
    %20 = arith.addf %17, %19 : vector<64x128xf32>
    %cst_20 = arith.constant 0.000000e+00 : f32
    %21 = vector.broadcast %cst_20 : f32 to vector<64x128xf32>
    %22 = arith.maximumf %20, %21 : vector<64x128xf32>
    %23 = arith.truncf %22 : vector<64x128xf32> to vector<64x128xbf16>
    %c0_21 = arith.constant 0 : index
    %c0_22 = arith.constant 0 : index
    %24 = vector.load %arg10[%c0_21, %c0_22] : memref<128x128xbf16, #tpu.memory_space<vmem>>, vector<128x128xbf16>
    %cst_23 = arith.constant dense<0.000000e+00> : vector<64x128xf32>
    %25 = tpu.matmul %23, %24, %cst_23 {dimension_numbers = #tpu.dot_dimension_numbers<[1], [0], [0], [1], [0, 0, 1, 1], [], []>} : vector<64x128xbf16>, vector<128x128xbf16>, vector<64x128xf32> -> vector<64x128xf32>
    %c0_24 = arith.constant 0 : index
    %c0_25 = arith.constant 0 : index
    %26 = vector.load %arg11[%c0_24, %c0_25] : memref<1x128xf32, #tpu.memory_space<vmem>>, vector<1x128xf32>
    %27 = vector.broadcast %26 : vector<1x128xf32> to vector<64x128xf32>
    %28 = arith.addf %25, %27 : vector<64x128xf32>
    %29 = math.cos %28 : vector<64x128xf32>
    %30 = arith.mulf %15, %29 : vector<64x128xf32>
    %31 = math.sin %28 : vector<64x128xf32>
    %32 = vector.broadcast %2 : vector<64x1xf32> to vector<64x128xf32>
    %33 = arith.mulf %32, %31 : vector<64x128xf32>
    %34 = arith.mulf %15, %33 : vector<64x128xf32>
    %c0_26 = arith.constant 0 : index
    %c0_27 = arith.constant 0 : index
    %35 = vector.load %arg13[%c0_26, %c0_27] : memref<64x128xf32, #tpu.memory_space<vmem>>, vector<64x128xf32>
    tpu.vector_store %arg13[%c0_26, %c0_27], %15 {strides = array<i32>} : memref<64x128xf32, #tpu.memory_space<vmem>>, vector<64x128xf32>,
    %c0_28 = arith.constant 0 : index
    %c0_29 = arith.constant 0 : index
    %36 = vector.load %arg14[%c0_28, %c0_29] : memref<64x128xf32, #tpu.memory_space<vmem>>, vector<64x128xf32>
    tpu.vector_store %arg14[%c0_28, %c0_29], %28 {strides = array<i32>} : memref<64x128xf32, #tpu.memory_space<vmem>>, vector<64x128xf32>,
    %c0_30 = arith.constant 0 : index
    %c0_31 = arith.constant 0 : index
    %37 = vector.load %arg12[%c0_30, %c0_31] : memref<64x256xf32, #tpu.memory_space<vmem>>, vector<64x128xf32>
    tpu.vector_store %arg12[%c0_30, %c0_31], %30 {strides = array<i32>} : memref<64x256xf32, #tpu.memory_space<vmem>>, vector<64x128xf32>,
    %c0_32 = arith.constant 0 : index
    %c128 = arith.constant 128 : index
    %38 = vector.load %arg12[%c0_32, %c128] : memref<64x256xf32, #tpu.memory_space<vmem>>, vector<64x128xf32>
    tpu.vector_store %arg12[%c0_32, %c128], %34 {strides = array<i32>} : memref<64x256xf32, #tpu.memory_space<vmem>>, vector<64x128xf32>,
    return
  }
  func.func @transform_0(%arg0: i32) -> (i32, i32) {
    %c0_i32 = arith.constant 0 : i32
    %c0_i32_0 = arith.constant 0 : i32
    return %arg0, %c0_i32 : i32, i32
  }
  func.func @transform_1(%arg0: i32) -> (i32, i32) {
    %c0_i32 = arith.constant 0 : i32
    %c0_i32_0 = arith.constant 0 : i32
    return %arg0, %c0_i32 : i32, i32
  }
  func.func @transform_2(%arg0: i32) -> (i32, i32) {
    %c0_i32 = arith.constant 0 : i32
    %c0_i32_0 = arith.constant 0 : i32
    return %arg0, %c0_i32 : i32, i32
  }
  func.func @transform_3(%arg0: i32) -> (i32, i32) {
    %c0_i32 = arith.constant 0 : i32
    %c0_i32_0 = arith.constant 0 : i32
    %c0_i32_1 = arith.constant 0 : i32
    return %c0_i32, %c0_i32_0 : i32, i32
  }
  func.func @transform_4(%arg0: i32) -> (i32, i32) {
    %c0_i32 = arith.constant 0 : i32
    %c0_i32_0 = arith.constant 0 : i32
    %c0_i32_1 = arith.constant 0 : i32
    return %c0_i32, %c0_i32_0 : i32, i32
  }
  func.func @transform_5(%arg0: i32) -> (i32, i32) {
    %c0_i32 = arith.constant 0 : i32
    %c0_i32_0 = arith.constant 0 : i32
    %c0_i32_1 = arith.constant 0 : i32
    return %c0_i32, %c0_i32_0 : i32, i32
  }
  func.func @transform_6(%arg0: i32) -> (i32, i32) {
    %c0_i32 = arith.constant 0 : i32
    %c0_i32_0 = arith.constant 0 : i32
    %c0_i32_1 = arith.constant 0 : i32
    return %c0_i32, %c0_i32_0 : i32, i32
  }
  func.func @transform_7(%arg0: i32) -> (i32, i32) {
    %c0_i32 = arith.constant 0 : i32
    %c0_i32_0 = arith.constant 0 : i32
    %c0_i32_1 = arith.constant 0 : i32
    return %c0_i32, %c0_i32_0 : i32, i32
  }
  func.func @transform_8(%arg0: i32) -> (i32, i32) {
    %c0_i32 = arith.constant 0 : i32
    %c0_i32_0 = arith.constant 0 : i32
    %c0_i32_1 = arith.constant 0 : i32
    return %c0_i32, %c0_i32_0 : i32, i32
  }
  func.func @transform_9(%arg0: i32) -> (i32, i32) {
    %c0_i32 = arith.constant 0 : i32
    %c0_i32_0 = arith.constant 0 : i32
    %c0_i32_1 = arith.constant 0 : i32
    return %c0_i32, %c0_i32_0 : i32, i32
  }
  func.func @transform_10(%arg0: i32) -> (i32, i32) {
    %c0_i32 = arith.constant 0 : i32
    %c0_i32_0 = arith.constant 0 : i32
    %c0_i32_1 = arith.constant 0 : i32
    return %c0_i32, %c0_i32_0 : i32, i32
  }
  func.func @transform_11(%arg0: i32) -> (i32, i32) {
    %c0_i32 = arith.constant 0 : i32
    %c0_i32_0 = arith.constant 0 : i32
    return %arg0, %c0_i32 : i32, i32
  }
  func.func @transform_12(%arg0: i32) -> (i32, i32) {
    %c0_i32 = arith.constant 0 : i32
    %c0_i32_0 = arith.constant 0 : i32
    return %arg0, %c0_i32 : i32, i32
  }
  func.func @transform_13(%arg0: i32) -> (i32, i32) {
    %c0_i32 = arith.constant 0 : i32
    %c0_i32_0 = arith.constant 0 : i32
    return %arg0, %c0_i32 : i32, i32
  }
}

</mosaic_0001>

<llo_original>
// kernel: tpu_custom_call.1
$region0: #{tpu_custom_call.1}
  #allocation0 [shape = 'u32[]', space=smem, size = 0x4, offset = 0x4, fixed_abs, tag = 'smem constant byte address 0x4 - core index']
  #allocation1 [shape = 'u32[144,128]{1,0:T(1,128)}', space=vmem, size = 0x12000, scoped, tag = 'internal scratch']
  %s0 = inlined_call_operand.hbm [shape: bf16[256,128], index: 0, kind: input, shape index: {}]
  %s1 = inlined_call_operand.vmem [shape: bf16[256,256], index: 1, kind: input, shape index: {}]
  %s2 = inlined_call_operand.vmem [shape: f32[256,1], index: 2, kind: input, shape index: {}]
  %s3 = inlined_call_operand.hbm [shape: bf16[128,128], index: 3, kind: input, shape index: {}]
  %s4 = inlined_call_operand.vmem [shape: f32[1,128], index: 4, kind: input, shape index: {}]
  %s5 = inlined_call_operand.hbm [shape: bf16[128,128], index: 5, kind: input, shape index: {}]
  %s6 = inlined_call_operand.vmem [shape: f32[1,128], index: 6, kind: input, shape index: {}]
  %s7 = inlined_call_operand.hbm [shape: bf16[256,128], index: 7, kind: input, shape index: {}]
  %s8 = inlined_call_operand.vmem [shape: f32[1,128], index: 8, kind: input, shape index: {}]
  %s9 = inlined_call_operand.hbm [shape: bf16[128,128], index: 9, kind: input, shape index: {}]
  %s10 = inlined_call_operand.vmem [shape: f32[1,128], index: 10, kind: input, shape index: {}]
  %s11 = inlined_call_operand.hbm [shape: f32[256,256], index: 11, kind: output, shape index: {0}]
  %s12 = inlined_call_operand.hbm [shape: f32[256,128], index: 12, kind: output, shape index: {1}]
  %s13 = inlined_call_operand.hbm [shape: f32[256,128], index: 13, kind: output, shape index: {2}]
  %14 = xla_tuple %s11, %s12, %s13
  %s15 = sld [smem:[#allocation0]]
  $region113: #{tpu_custom_call.1} parent=0
    _
  %s17 = ssub.s32 1, %s15
  %s18 = scalar_select 0, %s17, %s15
  $region1: #{tpu_custom_call.1} parent=0
    #allocation2 [shape = 'u8[32768]{0}', space=vmem, size = 0x8000, scoped, tag = 'input window, operand 0']
    #allocation3 [shape = 's32[2]{0}', space=sflag, size = 0x8, scoped, tag = 'scoped memory for tpu_custom_call.1']
    #allocation4 [shape = 's32[2]{0}', space=sflag, size = 0x8, scoped, tag = 'scoped memory for tpu_custom_call.1']
    #allocation5 [shape = 'u8[32768]{0}', space=vmem, size = 0x8000, scoped, tag = 'input window, operand 3, single buffered']
    #allocation6 [shape = 's32[1]{0}', space=sflag, size = 0x4, scoped, tag = 'scoped memory for tpu_custom_call.1']
    #allocation7 [shape = 'u8[32768]{0}', space=vmem, size = 0x8000, scoped, tag = 'input window, operand 5, single buffered']
    #allocation8 [shape = 'u8[65536]{0}', space=vmem, size = 0x10000, scoped, tag = 'input window, operand 7, single buffered']
    #allocation9 [shape = 's32[1]{0}', space=sflag, size = 0x4, scoped, tag = 'scoped memory for tpu_custom_call.1']
    #allocation10 [shape = 'u8[32768]{0}', space=vmem, size = 0x8000, scoped, tag = 'input window, operand 9, single buffered']
    #allocation11 [shape = 'u8[131072]{0}', space=vmem, size = 0x20000, scoped, tag = 'output window, operand 0']
    #allocation12 [shape = 'u8[65536]{0}', space=vmem, size = 0x10000, scoped, tag = 'output window, operand 1']
    #allocation13 [shape = 's32[2]{0}', space=sflag, size = 0x8, scoped, tag = 'scoped memory for tpu_custom_call.1']
    #allocation14 [shape = 'u8[65536]{0}', space=vmem, size = 0x10000, scoped, tag = 'output window, operand 2']
    %19 = vsyncpa [#allocation3], 0
    %s20 = scalar_lea.sflag [#allocation3], 1
    %21 = vsyncpa %s20, 0
    %22 = vsyncpa [#allocation6], 0
    %23 = vsyncpa [#allocation9], 0
    %24 = vsyncpa [#allocation4], 0
    %s25 = scalar_lea.sflag [#allocation4], 1
    %26 = vsyncpa %s25, 0
    %27 = vsyncpa [#allocation13], 0
    %s28 = scalar_lea.sflag [#allocation13], 1
    %29 = vsyncpa %s28, 0
    loop: start=0, step=1, limit=6
    $region2: #{tpu_custom_call.1} parent=1 // loop_pre_header
      _
    $region3: #{tpu_custom_call.1} parent=1 // loop_header
      %s31 = sphi 0, %s35
      %p32 = scmp.ge.s32.totalorder %s31, 6
      %s41 = sphi 0, %s43
      %s44 = sphi 0, %s41
      %s45 = sphi 0, %s44
      %s61 = sphi 0, %s45
      %s67 = sphi 0, %s69
      %s70 = sphi 0, %s67
      %s71 = sphi 0, %s70
      %s87 = sphi 0, %s71
      %s93 = sphi 0, %s95
      %s96 = sphi 0, %s93
      %s97 = sphi 0, %s96
      %s113 = sphi 0, %s97
      %s117 = sphi 0, %s117
      %s119 = sphi 0, %s117
      %s120 = sphi 0, %s119
      %s134 = sphi 0, %s120
      %s138 = sphi 0, %s138
      %s140 = sphi 0, %s138
      %s141 = sphi 0, %s140
      %s155 = sphi 0, %s141
      %s159 = sphi 0, %s159
      %s161 = sphi 0, %s159
      %s162 = sphi 0, %s161
      %s176 = sphi 0, %s162
      %s180 = sphi 0, %s180
      %s182 = sphi 0, %s180
      %s183 = sphi 0, %s182
      %s197 = sphi 0, %s183
      %s201 = sphi 0, %s201
      %s203 = sphi 0, %s201
      %s204 = sphi 0, %s203
      %s218 = sphi 0, %s204
      %s222 = sphi 0, %s222
      %s224 = sphi 0, %s222
      %s225 = sphi 0, %s224
      %s239 = sphi 0, %s225
      %s243 = sphi 0, %s243
      %s245 = sphi 0, %s243
      %s246 = sphi 0, %s245
      %s260 = sphi 0, %s246
      %s264 = sphi 0, %s264
      %s266 = sphi 0, %s264
      %s267 = sphi 0, %s266
      %s281 = sphi 0, %s267
      %s287 = sphi 0, %s289
      %s290 = sphi 0, %s287
      %s291 = sphi 0, %s290
      %s307 = sphi 0, %s291
      %s313 = sphi 0, %s315
      %s316 = sphi 0, %s313
      %s317 = sphi 0, %s316
      %s333 = sphi 0, %s317
      %s339 = sphi 0, %s341
      %s342 = sphi 0, %s339
      %s343 = sphi 0, %s342
      %s359 = sphi 0, %s343
    $region4: #{tpu_custom_call.1} parent=1 // loop_header_branch
      %34 = sbr.rel (%p32) target = $region8
    $region5: #{tpu_custom_call.1} parent=1 // loop_body
      %s36 = ssub.s32 %s31, 1
      %s37 = ssub.s32 %s31, 2
      %s38 = sadd.s32 %s31, 1
      %s39 = ssub.s32 %s31, %s38
      %p40 = scmp.eq.s32.totalorder %s39, 0
      %s42 = sadd.s32 %s41, 1
      %s43 = scalar_select %p40, %s41, %s42
      %p46 = pneg %p40
      %p47 = scmp.eq.s32.totalorder %s31, 3
      %p48 = por %p46, %p47
      %p49 = scmp.ne.s32.totalorder %s41, %s44
      %p50 = scmp.eq.s32.totalorder %s31, 0
      %p51 = por %p49, %p50
      %p52 = scmp.ne.s32.totalorder %s41, %s44
      %p53 = scmp.eq.s32.totalorder %s36, 3
      %p54 = por %p52, %p53
      %p55 = scmp.ne.s32.totalorder %s44, %s45
      %p56 = scmp.eq.s32.totalorder %s36, 0
      %p57 = por %p55, %p56
      %p58 = scmp.ne.s32.totalorder %s44, %s45
      %p59 = scmp.eq.s32.totalorder %s37, 3
      %p60 = por %p58, %p59
      %p62 = scmp.ne.s32.totalorder %s45, %s61
      %p63 = scmp.eq.s32.totalorder %s37, 0
      %p64 = por %p62, %p63
      %s65 = ssub.s32 %s31, %s38
      %p66 = scmp.eq.s32.totalorder %s65, 0
      %s68 = sadd.s32 %s67, 1
      %s69 = scalar_select %p66, %s67, %s68
      %p72 = pneg %p66
      %p73 = scmp.eq.s32.totalorder %s31, 3
      %p74 = por %p72, %p73
      %p75 = scmp.ne.s32.totalorder %s67, %s70
      %p76 = scmp.eq.s32.totalorder %s31, 0
      %p77 = por %p75, %p76
      %p78 = scmp.ne.s32.totalorder %s67, %s70
      %p79 = scmp.eq.s32.totalorder %s36, 3
      %p80 = por %p78, %p79
      %p81 = scmp.ne.s32.totalorder %s70, %s71
      %p82 = scmp.eq.s32.totalorder %s36, 0
      %p83 = por %p81, %p82
      %p84 = scmp.ne.s32.totalorder %s70, %s71
      %p85 = scmp.eq.s32.totalorder %s37, 3
      %p86 = por %p84, %p85
      %p88 = scmp.ne.s32.totalorder %s71, %s87
      %p89 = scmp.eq.s32.totalorder %s37, 0
      %p90 = por %p88, %p89
      %s91 = ssub.s32 %s31, %s38
      %p92 = scmp.eq.s32.totalorder %s91, 0
      %s94 = sadd.s32 %s93, 1
      %s95 = scalar_select %p92, %s93, %s94
      %p98 = pneg %p92
      %p99 = scmp.eq.s32.totalorder %s31, 3
      %p100 = por %p98, %p99
      %p101 = scmp.ne.s32.totalorder %s93, %s96
      %p102 = scmp.eq.s32.totalorder %s31, 0
      %p103 = por %p101, %p102
      %p104 = scmp.ne.s32.totalorder %s93, %s96
      %p105 = scmp.eq.s32.totalorder %s36, 3
      %p106 = por %p104, %p105
      %p107 = scmp.ne.s32.totalorder %s96, %s97
      %p108 = scmp.eq.s32.totalorder %s36, 0
      %p109 = por %p107, %p108
      %p110 = scmp.ne.s32.totalorder %s96, %s97
      %p111 = scmp.eq.s32.totalorder %s37, 3
      %p112 = por %p110, %p111
      %p114 = scmp.ne.s32.totalorder %s97, %s113
      %p115 = scmp.eq.s32.totalorder %s37, 0
      %p116 = por %p114, %p115
      %s118 = sadd.s32 %s117, 1
      %p121 = scmp.eq.s32.totalorder %s31, 3
      %p122 = scmp.ne.s32.totalorder %s117, %s119
      %p123 = scmp.eq.s32.totalorder %s31, 0
      %p124 = por %p122, %p123
      %p125 = scmp.ne.s32.totalorder %s117, %s119
      %p126 = scmp.eq.s32.totalorder %s36, 3
      %p127 = por %p125, %p126
      %p128 = scmp.ne.s32.totalorder %s119, %s120
      %p129 = scmp.eq.s32.totalorder %s36, 0
      %p130 = por %p128, %p129
      %p131 = scmp.ne.s32.totalorder %s119, %s120
      %p132 = scmp.eq.s32.totalorder %s37, 3
      %p133 = por %p131, %p132
      %p135 = scmp.ne.s32.totalorder %s120, %s134
      %p136 = scmp.eq.s32.totalorder %s37, 0
      %p137 = por %p135, %p136
      %s139 = sadd.s32 %s138, 1
      %p142 = scmp.eq.s32.totalorder %s31, 3
      %p143 = scmp.ne.s32.totalorder %s138, %s140
      %p144 = scmp.eq.s32.totalorder %s31, 0
      %p145 = por %p143, %p144
      %p146 = scmp.ne.s32.totalorder %s138, %s140
      %p147 = scmp.eq.s32.totalorder %s36, 3
      %p148 = por %p146, %p147
      %p149 = scmp.ne.s32.totalorder %s140, %s141
      %p150 = scmp.eq.s32.totalorder %s36, 0
      %p151 = por %p149, %p150
      %p152 = scmp.ne.s32.totalorder %s140, %s141
      %p153 = scmp.eq.s32.totalorder %s37, 3
      %p154 = por %p152, %p153
      %p156 = scmp.ne.s32.totalorder %s141, %s155
      %p157 = scmp.eq.s32.totalorder %s37, 0
      %p158 = por %p156, %p157
      %s160 = sadd.s32 %s159, 1
      %p163 = scmp.eq.s32.totalorder %s31, 3
      %p164 = scmp.ne.s32.totalorder %s159, %s161
      %p165 = scmp.eq.s32.totalorder %s31, 0
      %p166 = por %p164, %p165
      %p167 = scmp.ne.s32.totalorder %s159, %s161
      %p168 = scmp.eq.s32.totalorder %s36, 3
      %p169 = por %p167, %p168
      %p170 = scmp.ne.s32.totalorder %s161, %s162
      %p171 = scmp.eq.s32.totalorder %s36, 0
      %p172 = por %p170, %p171
      %p173 = scmp.ne.s32.totalorder %s161, %s162
      %p174 = scmp.eq.s32.totalorder %s37, 3
      %p175 = por %p173, %p174
      %p177 = scmp.ne.s32.totalorder %s162, %s176
      %p178 = scmp.eq.s32.totalorder %s37, 0
      %p179 = por %p177, %p178
      %s181 = sadd.s32 %s180, 1
      %p184 = scmp.eq.s32.totalorder %s31, 3
      %p185 = scmp.ne.s32.totalorder %s180, %s182
      %p186 = scmp.eq.s32.totalorder %s31, 0
      %p187 = por %p185, %p186
      %p188 = scmp.ne.s32.totalorder %s180, %s182
      %p189 = scmp.eq.s32.totalorder %s36, 3
      %p190 = por %p188, %p189
      %p191 = scmp.ne.s32.totalorder %s182, %s183
      %p192 = scmp.eq.s32.totalorder %s36, 0
      %p193 = por %p191, %p192
      %p194 = scmp.ne.s32.totalorder %s182, %s183
      %p195 = scmp.eq.s32.totalorder %s37, 3
      %p196 = por %p194, %p195
      %p198 = scmp.ne.s32.totalorder %s183, %s197
      %p199 = scmp.eq.s32.totalorder %s37, 0
      %p200 = por %p198, %p199
      %s202 = sadd.s32 %s201, 1
      %p205 = scmp.eq.s32.totalorder %s31, 3
      %p206 = scmp.ne.s32.totalorder %s201, %s203
      %p207 = scmp.eq.s32.totalorder %s31, 0
      %p208 = por %p206, %p207
      %p209 = scmp.ne.s32.totalorder %s201, %s203
      %p210 = scmp.eq.s32.totalorder %s36, 3
      %p211 = por %p209, %p210
      %p212 = scmp.ne.s32.totalorder %s203, %s204
      %p213 = scmp.eq.s32.totalorder %s36, 0
      %p214 = por %p212, %p213
      %p215 = scmp.ne.s32.totalorder %s203, %s204
      %p216 = scmp.eq.s32.totalorder %s37, 3
      %p217 = por %p215, %p216
      %p219 = scmp.ne.s32.totalorder %s204, %s218
      %p220 = scmp.eq.s32.totalorder %s37, 0
      %p221 = por %p219, %p220
      %s223 = sadd.s32 %s222, 1
      %p226 = scmp.eq.s32.totalorder %s31, 3
      %p227 = scmp.ne.s32.totalorder %s222, %s224
      %p228 = scmp.eq.s32.totalorder %s31, 0
      %p229 = por %p227, %p228
      %p230 = scmp.ne.s32.totalorder %s222, %s224
      %p231 = scmp.eq.s32.totalorder %s36, 3
      %p232 = por %p230, %p231
      %p233 = scmp.ne.s32.totalorder %s224, %s225
      %p234 = scmp.eq.s32.totalorder %s36, 0
      %p235 = por %p233, %p234
      %p236 = scmp.ne.s32.totalorder %s224, %s225
      %p237 = scmp.eq.s32.totalorder %s37, 3
      %p238 = por %p236, %p237
      %p240 = scmp.ne.s32.totalorder %s225, %s239
      %p241 = scmp.eq.s32.totalorder %s37, 0
      %p242 = por %p240, %p241
      %s244 = sadd.s32 %s243, 1
      %p247 = scmp.eq.s32.totalorder %s31, 3
      %p248 = scmp.ne.s32.totalorder %s243, %s245
      %p249 = scmp.eq.s32.totalorder %s31, 0
      %p250 = por %p248, %p249
      %p251 = scmp.ne.s32.totalorder %s243, %s245
      %p252 = scmp.eq.s32.totalorder %s36, 3
      %p253 = por %p251, %p252
      %p254 = scmp.ne.s32.totalorder %s245, %s246
      %p255 = scmp.eq.s32.totalorder %s36, 0
      %p256 = por %p254, %p255
      %p257 = scmp.ne.s32.totalorder %s245, %s246
      %p258 = scmp.eq.s32.totalorder %s37, 3
      %p259 = por %p257, %p258
      %p261 = scmp.ne.s32.totalorder %s246, %s260
      %p262 = scmp.eq.s32.totalorder %s37, 0
      %p263 = por %p261, %p262
      %s265 = sadd.s32 %s264, 1
      %p268 = scmp.eq.s32.totalorder %s31, 3
      %p269 = scmp.ne.s32.totalorder %s264, %s266
      %p270 = scmp.eq.s32.totalorder %s31, 0
      %p271 = por %p269, %p270
      %p272 = scmp.ne.s32.totalorder %s264, %s266
      %p273 = scmp.eq.s32.totalorder %s36, 3
      %p274 = por %p272, %p273
      %p275 = scmp.ne.s32.totalorder %s266, %s267
      %p276 = scmp.eq.s32.totalorder %s36, 0
      %p277 = por %p275, %p276
      %p278 = scmp.ne.s32.totalorder %s266, %s267
      %p279 = scmp.eq.s32.totalorder %s37, 3
      %p280 = por %p278, %p279
      %p282 = scmp.ne.s32.totalorder %s267, %s281
      %p283 = scmp.eq.s32.totalorder %s37, 0
      %p284 = por %p282, %p283
      %s285 = ssub.s32 %s31, %s38
      %p286 = scmp.eq.s32.totalorder %s285, 0
      %s288 = sadd.s32 %s287, 1
      %s289 = scalar_select %p286, %s287, %s288
      %p292 = pneg %p286
      %p293 = scmp.eq.s32.totalorder %s31, 3
      %p294 = por %p292, %p293
      %p295 = scmp.ne.s32.totalorder %s287, %s290
      %p296 = scmp.eq.s32.totalorder %s31, 0
      %p297 = por %p295, %p296
      %p298 = scmp.ne.s32.totalorder %s287, %s290
      %p299 = scmp.eq.s32.totalorder %s36, 3
      %p300 = por %p298, %p299
      %p301 = scmp.ne.s32.totalorder %s290, %s291
      %p302 = scmp.eq.s32.totalorder %s36, 0
      %p303 = por %p301, %p302
      %p304 = scmp.ne.s32.totalorder %s290, %s291
      %p305 = scmp.eq.s32.totalorder %s37, 3
      %p306 = por %p304, %p305
      %p308 = scmp.ne.s32.totalorder %s291, %s307
      %p309 = scmp.eq.s32.totalorder %s37, 0
      %p310 = por %p308, %p309
      %s311 = ssub.s32 %s31, %s38
      %p312 = scmp.eq.s32.totalorder %s311, 0
      %s314 = sadd.s32 %s313, 1
      %s315 = scalar_select %p312, %s313, %s314
      %p318 = pneg %p312
      %p319 = scmp.eq.s32.totalorder %s31, 3
      %p320 = por %p318, %p319
      %p321 = scmp.ne.s32.totalorder %s313, %s316
      %p322 = scmp.eq.s32.totalorder %s31, 0
      %p323 = por %p321, %p322
      %p324 = scmp.ne.s32.totalorder %s313, %s316
      %p325 = scmp.eq.s32.totalorder %s36, 3
      %p326 = por %p324, %p325
      %p327 = scmp.ne.s32.totalorder %s316, %s317
      %p328 = scmp.eq.s32.totalorder %s36, 0
      %p329 = por %p327, %p328
      %p330 = scmp.ne.s32.totalorder %s316, %s317
      %p331 = scmp.eq.s32.totalorder %s37, 3
      %p332 = por %p330, %p331
      %p334 = scmp.ne.s32.totalorder %s317, %s333
      %p335 = scmp.eq.s32.totalorder %s37, 0
      %p336 = por %p334, %p335
      %s337 = ssub.s32 %s31, %s38
      %p338 = scmp.eq.s32.totalorder %s337, 0
      %s340 = sadd.s32 %s339, 1
      %s341 = scalar_select %p338, %s339, %s340
      %p344 = pneg %p338
      %p345 = scmp.eq.s32.totalorder %s31, 3
      %p346 = por %p344, %p345
      %p347 = scmp.ne.s32.totalorder %s339, %s342
      %p348 = scmp.eq.s32.totalorder %s31, 0
      %p349 = por %p347, %p348
      %p350 = scmp.ne.s32.totalorder %s339, %s342
      %p351 = scmp.eq.s32.totalorder %s36, 3
      %p352 = por %p350, %p351
      %p353 = scmp.ne.s32.totalorder %s342, %s343
      %p354 = scmp.eq.s32.totalorder %s36, 0
      %p355 = por %p353, %p354
      %p356 = scmp.ne.s32.totalorder %s342, %s343
      %p357 = scmp.eq.s32.totalorder %s37, 3
      %p358 = por %p356, %p357
      %p360 = scmp.ne.s32.totalorder %s343, %s359
      %p361 = scmp.eq.s32.totalorder %s37, 0
      %p362 = por %p360, %p361
      %p363 = scmp.le.s32.totalorder 1, %s31
      %p364 = scmp.lt.s32.totalorder %s31, 5
      %p365 = pnand %p363, %p364
      %p366 = pneg %p365
      // Predicated region
      $region9: #{tpu_custom_call.1} parent=5 // pred_check
        _
      $region10: #{tpu_custom_call.1} parent=5 // pred_check_branch
        %368 = sbr.rel (%p365) target = $region12
      $region11: #{tpu_custom_call.1} parent=5 // pred_region
        %s369 = ssub.s32 %s31, 1
        // Predicated region
        $region13: #{tpu_custom_call.1} parent=11 // pred_check
          %p370 = pneg %p130
        $region14: #{tpu_custom_call.1} parent=11 // pred_check_branch
          %372 = sbr.rel (%p370) target = $region16
        $region15: #{tpu_custom_call.1} parent=11 // pred_region
          %s374 = ssub.s32 1024, 1024
          %375 = vsyncadd [#allocation6], %s374
          %s376 = sshll.u32 [#allocation5], 4
          %s377 = int_to_ptr.vmem [resolvable:$true] %s376
          %382 = dma.hbm_to_vmem [thread:$0]  %s3, 1024, %s377, [#allocation6], 64, 64, 4
        $region16: #{tpu_custom_call.1} parent=11 // pred_fallthru
          _
        // Predicated region
        $region17: #{tpu_custom_call.1} parent=11 // pred_check
          %p383 = pneg %p151
        $region18: #{tpu_custom_call.1} parent=11 // pred_check_branch
          %385 = sbr.rel (%p383) target = $region20
        $region19: #{tpu_custom_call.1} parent=11 // pred_region
          _
        $region20: #{tpu_custom_call.1} parent=11 // pred_fallthru
          _
        // Predicated region
        $region21: #{tpu_custom_call.1} parent=11 // pred_check
          %p386 = pneg %p172
        $region22: #{tpu_custom_call.1} parent=11 // pred_check_branch
          %388 = sbr.rel (%p386) target = $region24
        $region23: #{tpu_custom_call.1} parent=11 // pred_region
          %s390 = ssub.s32 1024, 1024
          %391 = vsyncadd [#allocation6], %s390
          %s392 = sshll.u32 [#allocation7], 4
          %s393 = int_to_ptr.vmem [resolvable:$true] %s392
          %398 = dma.hbm_to_vmem [thread:$0]  %s5, 1024, %s393, [#allocation6], 64, 64, 4
        $region24: #{tpu_custom_call.1} parent=11 // pred_fallthru
          _
        // Predicated region
        $region25: #{tpu_custom_call.1} parent=11 // pred_check
          %p399 = pneg %p193
        $region26: #{tpu_custom_call.1} parent=11 // pred_check_branch
          %401 = sbr.rel (%p399) target = $region28
        $region27: #{tpu_custom_call.1} parent=11 // pred_region
          _
        $region28: #{tpu_custom_call.1} parent=11 // pred_fallthru
          _
        // Predicated region
        $region29: #{tpu_custom_call.1} parent=11 // pred_check
          %p402 = pneg %p214
        $region30: #{tpu_custom_call.1} parent=11 // pred_check_branch
          %404 = sbr.rel (%p402) target = $region32
        $region31: #{tpu_custom_call.1} parent=11 // pred_region
          %s406 = ssub.s32 2048, 2048
          %407 = vsyncadd [#allocation9], %s406
          %s408 = sshll.u32 [#allocation8], 4
          %s409 = int_to_ptr.vmem [resolvable:$true] %s408
          %414 = dma.hbm_to_vmem [thread:$0]  %s7, 2048, %s409, [#allocation9], 64, 64, 4
        $region32: #{tpu_custom_call.1} parent=11 // pred_fallthru
          _
        // Predicated region
        $region33: #{tpu_custom_call.1} parent=11 // pred_check
          %p415 = pneg %p235
        $region34: #{tpu_custom_call.1} parent=11 // pred_check_branch
          %417 = sbr.rel (%p415) target = $region36
        $region35: #{tpu_custom_call.1} parent=11 // pred_region
          _
        $region36: #{tpu_custom_call.1} parent=11 // pred_fallthru
          _
        // Predicated region
        $region37: #{tpu_custom_call.1} parent=11 // pred_check
          %p418 = pneg %p256
        $region38: #{tpu_custom_call.1} parent=11 // pred_check_branch
          %420 = sbr.rel (%p418) target = $region40
        $region39: #{tpu_custom_call.1} parent=11 // pred_region
          %s422 = ssub.s32 1024, 1024
          %423 = vsyncadd [#allocation9], %s422
          %s424 = sshll.u32 [#allocation10], 4
          %s425 = int_to_ptr.vmem [resolvable:$true] %s424
          %430 = dma.hbm_to_vmem [thread:$0]  %s9, 1024, %s425, [#allocation9], 64, 64, 4
        $region40: #{tpu_custom_call.1} parent=11 // pred_fallthru
          _
        // Predicated region
        $region41: #{tpu_custom_call.1} parent=11 // pred_check
          %p431 = pneg %p277
        $region42: #{tpu_custom_call.1} parent=11 // pred_check_branch
          %433 = sbr.rel (%p431) target = $region44
        $region43: #{tpu_custom_call.1} parent=11 // pred_region
          _
        $region44: #{tpu_custom_call.1} parent=11 // pred_fallthru
          _
      $region12: #{tpu_custom_call.1} parent=5 // pred_fallthru
        _
      %p434 = scmp.lt.s32.totalorder %s31, 4
      // Predicated region
      $region45: #{tpu_custom_call.1} parent=5 // pred_check
        %p435 = pneg %p434
      $region46: #{tpu_custom_call.1} parent=5 // pred_check_branch
        %437 = sbr.rel (%p435) target = $region48
      $region47: #{tpu_custom_call.1} parent=5 // pred_region
        // Predicated region
        $region49: #{tpu_custom_call.1} parent=47 // pred_check
          %p438 = pneg %p51
        $region50: #{tpu_custom_call.1} parent=47 // pred_check_branch
          %440 = sbr.rel (%p438) target = $region52
        $region51: #{tpu_custom_call.1} parent=47 // pred_region
          %s441 = sand.u32 %s41, 1
          %s442 = scalar_lea.sflag [#allocation3], %s441
          %s443 = sand.u32 %s41, 1
          %s444 = smul.addr %s443, 32
          %s445 = scalar_lea.vmem [#allocation2], %s444
          %s446 = smul.u32 8, %s31
          %s448 = ssub.s32 512, 512
          %449 = vsyncadd %s442, %s448
          %s450 = smul.addr %s446, 64
          %s451 = scalar_lea.hbm %s0, %s450
          %s452 = sshll.u32 %s445, 4
          %s453 = int_to_ptr.vmem [resolvable:$true] %s452
          %458 = dma.hbm_to_vmem [thread:$0]  %s451, 512, %s453, %s442, 64, 64, 4
        $region52: #{tpu_custom_call.1} parent=47 // pred_fallthru
          _
        // Predicated region
        $region53: #{tpu_custom_call.1} parent=47 // pred_check
          %p459 = pneg %p77
        $region54: #{tpu_custom_call.1} parent=47 // pred_check_branch
          %461 = sbr.rel (%p459) target = $region56
        $region55: #{tpu_custom_call.1} parent=47 // pred_region
          %s462 = smul.u32 8, %s31
          %p463 = scmp.lt.s32.totalorder %s462, 31
          %s464 = scalar_select %p463, %s462, 31
          %s465 = smul.addr %s464, 2
          %s466 = smul.addr %s465, 4
          %s467 = scalar_lea.vmem %s1, %s466
          %s468 = smul.u32 8, %s31
        $region56: #{tpu_custom_call.1} parent=47 // pred_fallthru
          _
        // Predicated region
        $region57: #{tpu_custom_call.1} parent=47 // pred_check
          %p469 = pneg %p103
        $region58: #{tpu_custom_call.1} parent=47 // pred_check_branch
          %471 = sbr.rel (%p469) target = $region60
        $region59: #{tpu_custom_call.1} parent=47 // pred_region
          %s472 = smul.u32 8, %s31
          %p473 = scmp.lt.s32.totalorder %s472, 31
          %s474 = scalar_select %p473, %s472, 31
          %s475 = smul.addr %s474, 8
          %s476 = scalar_lea.vmem %s2, %s475
          %s477 = smul.u32 8, %s31
        $region60: #{tpu_custom_call.1} parent=47 // pred_fallthru
          _
      $region48: #{tpu_custom_call.1} parent=5 // pred_fallthru
        _
      %p478 = scmp.le.s32.totalorder 1, %s31
      %p479 = scmp.lt.s32.totalorder %s31, 5
      %p480 = pnand %p478, %p479
      %p481 = pneg %p480
      // Predicated region
      $region61: #{tpu_custom_call.1} parent=5 // pred_check
        _
      $region62: #{tpu_custom_call.1} parent=5 // pred_check_branch
        %483 = sbr.rel (%p480) target = $region64
      $region63: #{tpu_custom_call.1} parent=5 // pred_region
        %s484 = ssub.s32 %s31, 1
        %s485 = sand.u32 %s44, 1
        %s486 = scalar_lea.sflag [#allocation3], %s485
        %s487 = sand.u32 %s44, 1
        %s488 = smul.addr %s487, 32
        %s489 = scalar_lea.vmem [#allocation2], %s488
        // Predicated region
        $region65: #{tpu_custom_call.1} parent=63 // pred_check
          %p490 = pneg %p57
        $region66: #{tpu_custom_call.1} parent=63 // pred_check_branch
          %492 = sbr.rel (%p490) target = $region68
        $region67: #{tpu_custom_call.1} parent=63 // pred_region
          %493 = dma.done %s486, 512
        $region68: #{tpu_custom_call.1} parent=63 // pred_fallthru
          _
        // Predicated region
        $region69: #{tpu_custom_call.1} parent=63 // pred_check
          %p494 = pneg %p130
        $region70: #{tpu_custom_call.1} parent=63 // pred_check_branch
          %496 = sbr.rel (%p494) target = $region72
        $region71: #{tpu_custom_call.1} parent=63 // pred_region
          %497 = dma.done [#allocation6], 1024
        $region72: #{tpu_custom_call.1} parent=63 // pred_fallthru
          _
        // Predicated region
        $region73: #{tpu_custom_call.1} parent=63 // pred_check
          %p498 = pneg %p172
        $region74: #{tpu_custom_call.1} parent=63 // pred_check_branch
          %500 = sbr.rel (%p498) target = $region76
        $region75: #{tpu_custom_call.1} parent=63 // pred_region
          %501 = dma.done [#allocation6], 1024
        $region76: #{tpu_custom_call.1} parent=63 // pred_fallthru
          _
        // Predicated region
        $region77: #{tpu_custom_call.1} parent=63 // pred_check
          %p502 = pneg %p214
        $region78: #{tpu_custom_call.1} parent=63 // pred_check_branch
          %504 = sbr.rel (%p502) target = $region80
        $region79: #{tpu_custom_call.1} parent=63 // pred_region
          %505 = dma.done [#allocation9], 2048
        $region80: #{tpu_custom_call.1} parent=63 // pred_fallthru
          _
        // Predicated region
        $region81: #{tpu_custom_call.1} parent=63 // pred_check
          %p506 = pneg %p256
        $region82: #{tpu_custom_call.1} parent=63 // pred_check_branch
          %508 = sbr.rel (%p506) target = $region84
        $region83: #{tpu_custom_call.1} parent=63 // pred_region
          %509 = dma.done [#allocation9], 1024
        $region84: #{tpu_custom_call.1} parent=63 // pred_fallthru
          _
        %s510 = sand.u32 %s44, 1
        %s511 = scalar_lea.sflag [#allocation3], %s510
        %s512 = sand.u32 %s44, 1
        %s513 = smul.addr %s512, 32
        %s514 = scalar_lea.vmem [#allocation2], %s513
        %p515 = pneg %p57
        %p516 = pneg %p54
        %s517 = smul.u32 8, %s36
        %p518 = scmp.lt.s32.totalorder %s517, 31
        %s519 = scalar_select %p518, %s517, 31
        %s520 = smul.addr %s519, 2
        %s521 = smul.addr %s520, 4
        %s522 = scalar_lea.vmem %s1, %s521
        %p523 = pneg %p83
        %p524 = pneg %p80
        %s525 = smul.u32 8, %s36
        %p526 = scmp.lt.s32.totalorder %s525, 31
        %s527 = scalar_select %p526, %s525, 31
        %s528 = smul.addr %s527, 8
        %s529 = scalar_lea.vmem %s2, %s528
        %p530 = pneg %p109
        %p531 = pneg %p106
        %p532 = pneg %p130
        %p533 = pneg %p127
        %p534 = pneg %p151
        %p535 = pneg %p148
        %p536 = pneg %p172
        %p537 = pneg %p169
        %p538 = pneg %p193
        %p539 = pneg %p190
        %p540 = pneg %p214
        %p541 = pneg %p211
        %p542 = pneg %p235
        %p543 = pneg %p232
        %p544 = pneg %p256
        %p545 = pneg %p253
        %p546 = pneg %p277
        %p547 = pneg %p274
        %p548 = pneg %p303
        %p549 = pneg %p300
        %s550 = sand.u32 %s290, 1
        %s551 = scalar_lea.sflag [#allocation4], %s550
        %s552 = sand.u32 %s290, 1
        %s553 = smul.addr %s552, 128
        %s554 = scalar_lea.vmem [#allocation11], %s553
        %p555 = pneg %p329
        %p556 = pneg %p326
        %s557 = sand.u32 %s36, 1
        %s558 = scalar_lea.sflag [#allocation13], %s557
        %s559 = sand.u32 %s316, 1
        %s560 = smul.addr %s559, 64
        %s561 = scalar_lea.vmem [#allocation12], %s560
        %p562 = pneg %p355
        %p563 = pneg %p352
        %s564 = sand.u32 %s36, 1
        %s565 = scalar_lea.sflag [#allocation13], %s564
        %s566 = sand.u32 %s342, 1
        %s567 = smul.addr %s566, 64
        %s568 = scalar_lea.vmem [#allocation14], %s567
        %s569 = smul.u32 8, %s36
        %s570 = smul.u32 8, %s36
        %p571 = scmp.lt.s32.totalorder %s570, 31
        %s572 = scalar_select %p571, %s570, 31
        %s573 = smul.addr %s572, 2
        %s574 = smul.addr %s573, 4
        %s575 = scalar_lea.vmem %s1, %s574
        %s576 = smul.u32 8, %s36
        %s577 = smul.u32 8, %s36
        %p578 = scmp.lt.s32.totalorder %s577, 31
        %s579 = scalar_select %p578, %s577, 31
        %s580 = smul.addr %s579, 8
        %s581 = scalar_lea.vmem %s2, %s580
        %s582 = smul.u32 8, %s36
        %s583 = smul.u32 8, %s36
        %s584 = smul.u32 8, %s36
        %s585 = smul.u32 8, %s36
        %v587 = vld [vmem:[%s489] sm:$0xf]
        %v588 = vld [vmem:[%s489 + $0x4] sm:$0xf]
        %v589 = vld [vmem:[%s489 + $0x8] sm:$0xf]
        %v590 = vld [vmem:[%s489 + $0xc] sm:$0xf]
        %v591 = vld [vmem:[%s489 + $0x10] sm:$0xf]
        %v592 = vld [vmem:[%s489 + $0x14] sm:$0xf]
        %v593 = vld [vmem:[%s489 + $0x18] sm:$0xf]
        %v594 = vld [vmem:[%s489 + $0x1c] sm:$0xf]
        %v595 = vld [vmem:[%s575] sm:$0xff]
        %v596 = vld [vmem:[%s575 + $0x8] sm:$0xff]
        %v597 = vld [vmem:[%s575 + $0x10] sm:$0xff]
        %v598 = vld [vmem:[%s575 + $0x18] sm:$0xff]
        %v599 = vld [vmem:[%s575 + $0x20] sm:$0xff]
        %v600 = vld [vmem:[%s575 + $0x28] sm:$0xff]
        %v601 = vld [vmem:[%s575 + $0x30] sm:$0xff]
        %v602 = vld [vmem:[%s575 + $0x38] sm:$0xff]
        %v603 = vld [vmem:[%s581] sm:$0xff]
        %v604 = vld [vmem:[%s581 + $0x8] sm:$0xff]
        %v605 = vld [vmem:[%s581 + $0x10] sm:$0xff]
        %v606 = vld [vmem:[%s581 + $0x18] sm:$0xff]
        %v607 = vld [vmem:[%s581 + $0x20] sm:$0xff]
        %v608 = vld [vmem:[%s581 + $0x28] sm:$0xff]
        %v609 = vld [vmem:[%s581 + $0x30] sm:$0xff]
        %v610 = vld [vmem:[%s581 + $0x38] sm:$0xff]
        %v611 = vld [vmem:[#allocation5] sm:$0xf]
        %v612 = vld [vmem:[#allocation5 + $0x4] sm:$0xf]
        %v613 = vld [vmem:[#allocation5 + $0x8] sm:$0xf]
        %v614 = vld [vmem:[#allocation5 + $0xc] sm:$0xf]
        %v615 = vld [vmem:[#allocation5 + $0x10] sm:$0xf]
        %v616 = vld [vmem:[#allocation5 + $0x14] sm:$0xf]
        %v617 = vld [vmem:[#allocation5 + $0x18] sm:$0xf]
        %v618 = vld [vmem:[#allocation5 + $0x1c] sm:$0xf]
        %v619 = vld [vmem:[#allocation5 + $0x20] sm:$0xf]
        %v620 = vld [vmem:[#allocation5 + $0x24] sm:$0xf]
        %v621 = vld [vmem:[#allocation5 + $0x28] sm:$0xf]
        %v622 = vld [vmem:[#allocation5 + $0x2c] sm:$0xf]
        %v623 = vld [vmem:[#allocation5 + $0x30] sm:$0xf]
        %v624 = vld [vmem:[#allocation5 + $0x34] sm:$0xf]
        %v625 = vld [vmem:[#allocation5 + $0x38] sm:$0xf]
        %v626 = vld [vmem:[#allocation5 + $0x3c] sm:$0xf]
        %v627 = vld [vmem:[%s4] sm:$0x1]
        %v629 = vlaneseq
        %v630 = vshrl.u32 %v629, 7
        %v631 = vsub.s32 0, %v630
        %v632 = vrot.slane %v627, %v631
        %v642 = vunpack.c.l.b16 %v587
        %v643 = vunpack.c.l.b16 %v588
        %v644 = vunpack.c.l.b16 %v589
        %v645 = vunpack.c.l.b16 %v590
        %v646 = vunpack.c.l.b16 %v591
        %v647 = vunpack.c.l.b16 %v592
        %v648 = vunpack.c.l.b16 %v593
        %v649 = vunpack.c.l.b16 %v594
        %v650 = vpack.c.b16 %v643, %v642
        %v651 = vpack.c.b16 %v645, %v644
        %v652 = vpack.c.b16 %v647, %v646
        %v653 = vpack.c.b16 %v649, %v648
        %v674 = vunpack.c.l.b16 %v611
        %v675 = vunpack.c.l.b16 %v612
        %v676 = vunpack.c.l.b16 %v613
        %v677 = vunpack.c.l.b16 %v614
        %v678 = vunpack.c.l.b16 %v615
        %v679 = vunpack.c.l.b16 %v616
        %v680 = vunpack.c.l.b16 %v617
        %v681 = vunpack.c.l.b16 %v618
        %v682 = vunpack.c.l.b16 %v619
        %v683 = vunpack.c.l.b16 %v620
        %v684 = vunpack.c.l.b16 %v621
        %v685 = vunpack.c.l.b16 %v622
        %v686 = vunpack.c.l.b16 %v623
        %v687 = vunpack.c.l.b16 %v624
        %v688 = vunpack.c.l.b16 %v625
        %v689 = vunpack.c.l.b16 %v626
        %v690 = vpack.c.b16 %v675, %v674
        %v691 = vpack.c.b16 %v677, %v676
        %v692 = vpack.c.b16 %v679, %v678
        %v693 = vpack.c.b16 %v681, %v680
        %v694 = vpack.c.b16 %v683, %v682
        %v695 = vpack.c.b16 %v685, %v684
        %v696 = vpack.c.b16 %v687, %v686
        %v697 = vpack.c.b16 %v689, %v688
        %706 = vmatprep.subr.bf16.mxu0 0
        %707 = vmatpush1.bf16.msra.mxu0 %v690
        %708 = vmatprep.subr.bf16.mxu0 0
        %709 = vmatpush1.bf16.msra.mxu0 %v691
        %710 = vmatprep.subr.bf16.mxu0 0
        %711 = vmatpush1.bf16.msra.mxu0 %v692
        %712 = vmatprep.subr.bf16.mxu0 0
        %713 = vmatpush1.bf16.msra.mxu0 %v693
        %714 = vmatprep.subr.bf16.mxu0 0
        %715 = vmatpush1.bf16.msra.mxu0 %v694
        %716 = vmatprep.subr.bf16.mxu0 0
        %717 = vmatpush1.bf16.msra.mxu0 %v695
        %718 = vmatprep.subr.bf16.mxu0 0
        %719 = vmatpush1.bf16.msra.mxu0 %v696
        %720 = vmatprep.subr.bf16.mxu0 0
        %721 = vmatpush1.bf16.msra.mxu0 %v697
        %722 = vmatprep.subr.bf16.mxu0 0
        %723 = vmatpush1.bf16.msra.mxu0 0
        %724 = vmatprep.subr.bf16.mxu0 0
        %725 = vmatpush1.bf16.msra.mxu0 0
        %726 = vmatprep.subr.bf16.mxu0 0
        %727 = vmatpush1.bf16.msra.mxu0 0
        %728 = vmatprep.subr.bf16.mxu0 0
        %729 = vmatpush1.bf16.msra.mxu0 0
        %730 = vmatprep.subr.bf16.mxu0 0
        %731 = vmatpush1.bf16.msra.mxu0 0
        %732 = vmatprep.subr.bf16.mxu0 0
        %733 = vmatpush1.bf16.msra.mxu0 0
        %734 = vmatprep.subr.bf16.mxu0 0
        %735 = vmatpush1.bf16.msra.mxu0 0
        %736 = vmatprep.subr.bf16.mxu0 0
        %737 = vmatpush1.bf16.msra.mxu0 0
        %738 = vmatprep.mubr.bf16.mxu0 0
        %739 = vmatmul.mubr.bf16.gmra.mrb[0].mxu0 %v650
        %v740 = vpop.f32.mrb[0].mxu0
        %v741 = vadd.f32 %v632, %v740
        %v742 = vpop.f32.mrb[0].mxu0
        %v743 = vpop.f32.mrb[0].mxu0
        %v744 = vadd.f32 %v632, %v743
        %v745 = vpop.f32.mrb[0].mxu0
        %746 = vmatprep.mubr.bf16.mxu0 0
        %747 = vmatmul.mubr.bf16.gmra.mrb[0].mxu0 %v651
        %v748 = vpop.f32.mrb[0].mxu0
        %v749 = vadd.f32 %v632, %v748
        %v750 = vpop.f32.mrb[0].mxu0
        %v751 = vpop.f32.mrb[0].mxu0
        %v752 = vadd.f32 %v632, %v751
        %v753 = vpop.f32.mrb[0].mxu0
        %754 = vmatprep.mubr.bf16.mxu0 0
        %755 = vmatmul.mubr.bf16.gmra.mrb[0].mxu0 %v652
        %v756 = vpop.f32.mrb[0].mxu0
        %v757 = vadd.f32 %v632, %v756
        %v758 = vpop.f32.mrb[0].mxu0
        %v759 = vpop.f32.mrb[0].mxu0
        %v760 = vadd.f32 %v632, %v759
        %v761 = vpop.f32.mrb[0].mxu0
        %762 = vmatprep.mubr.bf16.mxu0 0
        %763 = vmatmul.mubr.bf16.gmra.mrb[0].mxu0 %v653
        %v764 = vpop.f32.mrb[0].mxu0
        %v765 = vadd.f32 %v632, %v764
        %v766 = vpop.f32.mrb[0].mxu0
        %v767 = vpop.f32.mrb[0].mxu0
        %v768 = vadd.f32 %v632, %v767
        %v769 = vpop.f32.mrb[0].mxu0
        %770 = vdwg.mxu0
        %v771 = vmax.f32 %v741, 0.0
        %v772 = vmax.f32 %v744, 0.0
        %v773 = vmax.f32 %v749, 0.0
        %v774 = vmax.f32 %v752, 0.0
        %v775 = vmax.f32 %v757, 0.0
        %v776 = vmax.f32 %v760, 0.0
        %v777 = vmax.f32 %v765, 0.0
        %v778 = vmax.f32 %v768, 0.0
        %v779 = vpack.c.bf16 %v772, %v771
        %v780 = vpack.c.bf16 %v774, %v773
        %v781 = vpack.c.bf16 %v776, %v775
        %v782 = vpack.c.bf16 %v778, %v777
        %v783 = vld [vmem:[#allocation7] sm:$0xf]
        %v784 = vld [vmem:[#allocation7 + $0x4] sm:$0xf]
        %v785 = vld [vmem:[#allocation7 + $0x8] sm:$0xf]
        %v786 = vld [vmem:[#allocation7 + $0xc] sm:$0xf]
        %v787 = vld [vmem:[#allocation7 + $0x10] sm:$0xf]
        %v788 = vld [vmem:[#allocation7 + $0x14] sm:$0xf]
        %v789 = vld [vmem:[#allocation7 + $0x18] sm:$0xf]
        %v790 = vld [vmem:[#allocation7 + $0x1c] sm:$0xf]
        %v791 = vld [vmem:[#allocation7 + $0x20] sm:$0xf]
        %v792 = vld [vmem:[#allocation7 + $0x24] sm:$0xf]
        %v793 = vld [vmem:[#allocation7 + $0x28] sm:$0xf]
        %v794 = vld [vmem:[#allocation7 + $0x2c] sm:$0xf]
        %v795 = vld [vmem:[#allocation7 + $0x30] sm:$0xf]
        %v796 = vld [vmem:[#allocation7 + $0x34] sm:$0xf]
        %v797 = vld [vmem:[#allocation7 + $0x38] sm:$0xf]
        %v798 = vld [vmem:[#allocation7 + $0x3c] sm:$0xf]
        %v799 = vld [vmem:[%s6] sm:$0x1]
        %v801 = vlaneseq
        %v802 = vshrl.u32 %v801, 7
        %v803 = vsub.s32 0, %v802
        %v804 = vrot.slane %v799, %v803
        %v822 = vunpack.c.l.b16 %v783
        %v823 = vunpack.c.l.b16 %v784
        %v824 = vunpack.c.l.b16 %v785
        %v825 = vunpack.c.l.b16 %v786
        %v826 = vunpack.c.l.b16 %v787
        %v827 = vunpack.c.l.b16 %v788
        %v828 = vunpack.c.l.b16 %v789
        %v829 = vunpack.c.l.b16 %v790
        %v830 = vunpack.c.l.b16 %v791
        %v831 = vunpack.c.l.b16 %v792
        %v832 = vunpack.c.l.b16 %v793
        %v833 = vunpack.c.l.b16 %v794
        %v834 = vunpack.c.l.b16 %v795
        %v835 = vunpack.c.l.b16 %v796
        %v836 = vunpack.c.l.b16 %v797
        %v837 = vunpack.c.l.b16 %v798
        %v838 = vpack.c.b16 %v823, %v822
        %v839 = vpack.c.b16 %v825, %v824
        %v840 = vpack.c.b16 %v827, %v826
        %v841 = vpack.c.b16 %v829, %v828
        %v842 = vpack.c.b16 %v831, %v830
        %v843 = vpack.c.b16 %v833, %v832
        %v844 = vpack.c.b16 %v835, %v834
        %v845 = vpack.c.b16 %v837, %v836
        %854 = vmatprep.subr.bf16.mxu0 0
        %855 = vmatpush1.bf16.msra.mxu0 %v838
        %856 = vmatprep.subr.bf16.mxu0 0
        %857 = vmatpush1.bf16.msra.mxu0 %v839
        %858 = vmatprep.subr.bf16.mxu0 0
        %859 = vmatpush1.bf16.msra.mxu0 %v840
        %860 = vmatprep.subr.bf16.mxu0 0
        %861 = vmatpush1.bf16.msra.mxu0 %v841
        %862 = vmatprep.subr.bf16.mxu0 0
        %863 = vmatpush1.bf16.msra.mxu0 %v842
        %864 = vmatprep.subr.bf16.mxu0 0
        %865 = vmatpush1.bf16.msra.mxu0 %v843
        %866 = vmatprep.subr.bf16.mxu0 0
        %867 = vmatpush1.bf16.msra.mxu0 %v844
        %868 = vmatprep.subr.bf16.mxu0 0
        %869 = vmatpush1.bf16.msra.mxu0 %v845
        %870 = vmatprep.subr.bf16.mxu0 0
        %871 = vmatpush1.bf16.msra.mxu0 0
        %872 = vmatprep.subr.bf16.mxu0 0
        %873 = vmatpush1.bf16.msra.mxu0 0
        %874 = vmatprep.subr.bf16.mxu0 0
        %875 = vmatpush1.bf16.msra.mxu0 0
        %876 = vmatprep.subr.bf16.mxu0 0
        %877 = vmatpush1.bf16.msra.mxu0 0
        %878 = vmatprep.subr.bf16.mxu0 0
        %879 = vmatpush1.bf16.msra.mxu0 0
        %880 = vmatprep.subr.bf16.mxu0 0
        %881 = vmatpush1.bf16.msra.mxu0 0
        %882 = vmatprep.subr.bf16.mxu0 0
        %883 = vmatpush1.bf16.msra.mxu0 0
        %884 = vmatprep.subr.bf16.mxu0 0
        %885 = vmatpush1.bf16.msra.mxu0 0
        %886 = vmatprep.mubr.bf16.mxu0 0
        %887 = vmatmul.mubr.bf16.gmra.mrb[0].mxu0 %v779
        %v888 = vpop.f32.mrb[0].mxu0
        %v889 = vadd.f32 %v804, %v888
        %v890 = vpop.f32.mrb[0].mxu0
        %v891 = vpop.f32.mrb[0].mxu0
        %v892 = vadd.f32 %v804, %v891
        %v893 = vpop.f32.mrb[0].mxu0
        %894 = vmatprep.mubr.bf16.mxu0 0
        %895 = vmatmul.mubr.bf16.gmra.mrb[0].mxu0 %v780
        %v896 = vpop.f32.mrb[0].mxu0
        %v897 = vadd.f32 %v804, %v896
        %v898 = vpop.f32.mrb[0].mxu0
        %v899 = vpop.f32.mrb[0].mxu0
        %v900 = vadd.f32 %v804, %v899
        %v901 = vpop.f32.mrb[0].mxu0
        %902 = vmatprep.mubr.bf16.mxu0 0
        %903 = vmatmul.mubr.bf16.gmra.mrb[0].mxu0 %v781
        %v904 = vpop.f32.mrb[0].mxu0
        %v905 = vadd.f32 %v804, %v904
        %v906 = vpop.f32.mrb[0].mxu0
        %v907 = vpop.f32.mrb[0].mxu0
        %v908 = vadd.f32 %v804, %v907
        %v909 = vpop.f32.mrb[0].mxu0
        %910 = vmatprep.mubr.bf16.mxu0 0
        %911 = vmatmul.mubr.bf16.gmra.mrb[0].mxu0 %v782
        %v912 = vpop.f32.mrb[0].mxu0
        %v913 = vadd.f32 %v804, %v912
        %v914 = vpop.f32.mrb[0].mxu0
        %v915 = vpop.f32.mrb[0].mxu0
        %v916 = vadd.f32 %v804, %v915
        %v917 = vpop.f32.mrb[0].mxu0
        %918 = vdwg.mxu0
        %v919 = vld [vmem:[#allocation8] sm:$0xf]
        %v920 = vld [vmem:[#allocation8 + $0x4] sm:$0xf]
        %v921 = vld [vmem:[#allocation8 + $0x8] sm:$0xf]
        %v922 = vld [vmem:[#allocation8 + $0xc] sm:$0xf]
        %v923 = vld [vmem:[#allocation8 + $0x10] sm:$0xf]
        %v924 = vld [vmem:[#allocation8 + $0x14] sm:$0xf]
        %v925 = vld [vmem:[#allocation8 + $0x18] sm:$0xf]
        %v926 = vld [vmem:[#allocation8 + $0x1c] sm:$0xf]
        %v927 = vld [vmem:[#allocation8 + $0x20] sm:$0xf]
        %v928 = vld [vmem:[#allocation8 + $0x24] sm:$0xf]
        %v929 = vld [vmem:[#allocation8 + $0x28] sm:$0xf]
        %v930 = vld [vmem:[#allocation8 + $0x2c] sm:$0xf]
        %v931 = vld [vmem:[#allocation8 + $0x30] sm:$0xf]
        %v932 = vld [vmem:[#allocation8 + $0x34] sm:$0xf]
        %v933 = vld [vmem:[#allocation8 + $0x38] sm:$0xf]
        %v934 = vld [vmem:[#allocation8 + $0x3c] sm:$0xf]
        %v935 = vld [vmem:[#allocation8 + $0x40] sm:$0xf]
        %v936 = vld [vmem:[#allocation8 + $0x44] sm:$0xf]
        %v937 = vld [vmem:[#allocation8 + $0x48] sm:$0xf]
        %v938 = vld [vmem:[#allocation8 + $0x4c] sm:$0xf]
        %v939 = vld [vmem:[#allocation8 + $0x50] sm:$0xf]
        %v940 = vld [vmem:[#allocation8 + $0x54] sm:$0xf]
        %v941 = vld [vmem:[#allocation8 + $0x58] sm:$0xf]
        %v942 = vld [vmem:[#allocation8 + $0x5c] sm:$0xf]
        %v943 = vld [vmem:[#allocation8 + $0x60] sm:$0xf]
        %v944 = vld [vmem:[#allocation8 + $0x64] sm:$0xf]
        %v945 = vld [vmem:[#allocation8 + $0x68] sm:$0xf]
        %v946 = vld [vmem:[#allocation8 + $0x6c] sm:$0xf]
        %v947 = vld [vmem:[#allocation8 + $0x70] sm:$0xf]
        %v948 = vld [vmem:[#allocation8 + $0x74] sm:$0xf]
        %v949 = vld [vmem:[#allocation8 + $0x78] sm:$0xf]
        %v950 = vld [vmem:[#allocation8 + $0x7c] sm:$0xf]
        %v951 = vld [vmem:[%s8] sm:$0x1]
        %v953 = vlaneseq
        %v954 = vshrl.u32 %v953, 7
        %v955 = vsub.s32 0, %v954
        %v956 = vrot.slane %v951, %v955
        %v966 = vunpack.c.l.b16 %v595
        %v967 = vunpack.c.h.b16 %v595
        %v968 = vunpack.c.l.b16 %v596
        %v969 = vunpack.c.h.b16 %v596
        %v970 = vunpack.c.l.b16 %v597
        %v971 = vunpack.c.h.b16 %v597
        %v972 = vunpack.c.l.b16 %v598
        %v973 = vunpack.c.h.b16 %v598
        %v974 = vunpack.c.l.b16 %v599
        %v975 = vunpack.c.h.b16 %v599
        %v976 = vunpack.c.l.b16 %v600
        %v977 = vunpack.c.h.b16 %v600
        %v978 = vunpack.c.l.b16 %v601
        %v979 = vunpack.c.h.b16 %v601
        %v980 = vunpack.c.l.b16 %v602
        %v981 = vunpack.c.h.b16 %v602
        %v982 = vpack.c.b16 %v968, %v966
        %v983 = vpack.c.b16 %v969, %v967
        %v984 = vpack.c.b16 %v972, %v970
        %v985 = vpack.c.b16 %v973, %v971
        %v986 = vpack.c.b16 %v976, %v974
        %v987 = vpack.c.b16 %v977, %v975
        %v988 = vpack.c.b16 %v980, %v978
        %v989 = vpack.c.b16 %v981, %v979
        %v1030 = vunpack.c.l.b16 %v919
        %v1031 = vunpack.c.l.b16 %v920
        %v1032 = vunpack.c.l.b16 %v921
        %v1033 = vunpack.c.l.b16 %v922
        %v1034 = vunpack.c.l.b16 %v923
        %v1035 = vunpack.c.l.b16 %v924
        %v1036 = vunpack.c.l.b16 %v925
        %v1037 = vunpack.c.l.b16 %v926
        %v1038 = vunpack.c.l.b16 %v927
        %v1039 = vunpack.c.l.b16 %v928
        %v1040 = vunpack.c.l.b16 %v929
        %v1041 = vunpack.c.l.b16 %v930
        %v1042 = vunpack.c.l.b16 %v931
        %v1043 = vunpack.c.l.b16 %v932
        %v1044 = vunpack.c.l.b16 %v933
        %v1045 = vunpack.c.l.b16 %v934
        %v1046 = vunpack.c.l.b16 %v935
        %v1047 = vunpack.c.l.b16 %v936
        %v1048 = vunpack.c.l.b16 %v937
        %v1049 = vunpack.c.l.b16 %v938
        %v1050 = vunpack.c.l.b16 %v939
        %v1051 = vunpack.c.l.b16 %v940
        %v1052 = vunpack.c.l.b16 %v941
        %v1053 = vunpack.c.l.b16 %v942
        %v1054 = vunpack.c.l.b16 %v943
        %v1055 = vunpack.c.l.b16 %v944
        %v1056 = vunpack.c.l.b16 %v945
        %v1057 = vunpack.c.l.b16 %v946
        %v1058 = vunpack.c.l.b16 %v947
        %v1059 = vunpack.c.l.b16 %v948
        %v1060 = vunpack.c.l.b16 %v949
        %v1061 = vunpack.c.l.b16 %v950
        %v1062 = vpack.c.b16 %v1031, %v1030
        %v1063 = vpack.c.b16 %v1033, %v1032
        %v1064 = vpack.c.b16 %v1035, %v1034
        %v1065 = vpack.c.b16 %v1037, %v1036
        %v1066 = vpack.c.b16 %v1039, %v1038
        %v1067 = vpack.c.b16 %v1041, %v1040
        %v1068 = vpack.c.b16 %v1043, %v1042
        %v1069 = vpack.c.b16 %v1045, %v1044
        %v1070 = vpack.c.b16 %v1047, %v1046
        %v1071 = vpack.c.b16 %v1049, %v1048
        %v1072 = vpack.c.b16 %v1051, %v1050
        %v1073 = vpack.c.b16 %v1053, %v1052
        %v1074 = vpack.c.b16 %v1055, %v1054
        %v1075 = vpack.c.b16 %v1057, %v1056
        %v1076 = vpack.c.b16 %v1059, %v1058
        %v1077 = vpack.c.b16 %v1061, %v1060
        %1094 = vmatprep.subr.bf16.mxu0 0
        %1095 = vmatpush1.bf16.msra.mxu0 %v1062
        %1096 = vmatprep.subr.bf16.mxu0 0
        %1097 = vmatpush1.bf16.msra.mxu0 %v1063
        %1098 = vmatprep.subr.bf16.mxu0 0
        %1099 = vmatpush1.bf16.msra.mxu0 %v1064
        %1100 = vmatprep.subr.bf16.mxu0 0
        %1101 = vmatpush1.bf16.msra.mxu0 %v1065
        %1102 = vmatprep.subr.bf16.mxu0 0
        %1103 = vmatpush1.bf16.msra.mxu0 %v1066
        %1104 = vmatprep.subr.bf16.mxu0 0
        %1105 = vmatpush1.bf16.msra.mxu0 %v1067
        %1106 = vmatprep.subr.bf16.mxu0 0
        %1107 = vmatpush1.bf16.msra.mxu0 %v1068
        %1108 = vmatprep.subr.bf16.mxu0 0
        %1109 = vmatpush1.bf16.msra.mxu0 %v1069
        %1110 = vmatprep.subr.bf16.mxu0 0
        %1111 = vmatpush1.bf16.msra.mxu0 %v1070
        %1112 = vmatprep.subr.bf16.mxu0 0
        %1113 = vmatpush1.bf16.msra.mxu0 %v1071
        %1114 = vmatprep.subr.bf16.mxu0 0
        %1115 = vmatpush1.bf16.msra.mxu0 %v1072
        %1116 = vmatprep.subr.bf16.mxu0 0
        %1117 = vmatpush1.bf16.msra.mxu0 %v1073
        %1118 = vmatprep.subr.bf16.mxu0 0
        %1119 = vmatpush1.bf16.msra.mxu0 %v1074
        %1120 = vmatprep.subr.bf16.mxu0 0
        %1121 = vmatpush1.bf16.msra.mxu0 %v1075
        %1122 = vmatprep.subr.bf16.mxu0 0
        %1123 = vmatpush1.bf16.msra.mxu0 %v1076
        %1124 = vmatprep.subr.bf16.mxu0 0
        %1125 = vmatpush1.bf16.msra.mxu0 %v1077
        %1126 = vmatprep.mubr.bf16.mxu0 %v983
        %1127 = vmatmul.mubr.bf16.gmra.mrb[0].mxu0 %v982
        %v1128 = vpop.f32.mrb[0].mxu0
        %v1129 = vadd.f32 %v956, %v1128
        %v1130 = vpop.f32.mrb[0].mxu0
        %v1131 = vpop.f32.mrb[0].mxu0
        %v1132 = vadd.f32 %v956, %v1131
        %v1133 = vpop.f32.mrb[0].mxu0
        %1134 = vmatprep.mubr.bf16.mxu0 %v985
        %1135 = vmatmul.mubr.bf16.gmra.mrb[0].mxu0 %v984
        %v1136 = vpop.f32.mrb[0].mxu0
        %v1137 = vadd.f32 %v956, %v1136
        %v1138 = vpop.f32.mrb[0].mxu0
        %v1139 = vpop.f32.mrb[0].mxu0
        %v1140 = vadd.f32 %v956, %v1139
        %v1141 = vpop.f32.mrb[0].mxu0
        %1142 = vmatprep.mubr.bf16.mxu0 %v987
        %1143 = vmatmul.mubr.bf16.gmra.mrb[0].mxu0 %v986
        %v1144 = vpop.f32.mrb[0].mxu0
        %v1145 = vadd.f32 %v956, %v1144
        %v1146 = vpop.f32.mrb[0].mxu0
        %v1147 = vpop.f32.mrb[0].mxu0
        %v1148 = vadd.f32 %v956, %v1147
        %v1149 = vpop.f32.mrb[0].mxu0
        %1150 = vmatprep.mubr.bf16.mxu0 %v989
        %1151 = vmatmul.mubr.bf16.gmra.mrb[0].mxu0 %v988
        %v1152 = vpop.f32.mrb[0].mxu0
        %v1153 = vadd.f32 %v956, %v1152
        %v1154 = vpop.f32.mrb[0].mxu0
        %v1155 = vpop.f32.mrb[0].mxu0
        %v1156 = vadd.f32 %v956, %v1155
        %v1157 = vpop.f32.mrb[0].mxu0
        %1158 = vdwg.mxu0
        %v1159 = vmax.f32 %v1129, 0.0
        %v1160 = vmax.f32 %v1132, 0.0
        %v1161 = vmax.f32 %v1137, 0.0
        %v1162 = vmax.f32 %v1140, 0.0
        %v1163 = vmax.f32 %v1145, 0.0
        %v1164 = vmax.f32 %v1148, 0.0
        %v1165 = vmax.f32 %v1153, 0.0
        %v1166 = vmax.f32 %v1156, 0.0
        %v1167 = vpack.c.bf16 %v1160, %v1159
        %v1168 = vpack.c.bf16 %v1162, %v1161
        %v1169 = vpack.c.bf16 %v1164, %v1163
        %v1170 = vpack.c.bf16 %v1166, %v1165
        %v1171 = vld [vmem:[#allocation10] sm:$0xf]
        %v1172 = vld [vmem:[#allocation10 + $0x4] sm:$0xf]
        %v1173 = vld [vmem:[#allocation10 + $0x8] sm:$0xf]
        %v1174 = vld [vmem:[#allocation10 + $0xc] sm:$0xf]
        %v1175 = vld [vmem:[#allocation10 + $0x10] sm:$0xf]
        %v1176 = vld [vmem:[#allocation10 + $0x14] sm:$0xf]
        %v1177 = vld [vmem:[#allocation10 + $0x18] sm:$0xf]
        %v1178 = vld [vmem:[#allocation10 + $0x1c] sm:$0xf]
        %v1179 = vld [vmem:[#allocation10 + $0x20] sm:$0xf]
        %v1180 = vld [vmem:[#allocation10 + $0x24] sm:$0xf]
        %v1181 = vld [vmem:[#allocation10 + $0x28] sm:$0xf]
        %v1182 = vld [vmem:[#allocation10 + $0x2c] sm:$0xf]
        %v1183 = vld [vmem:[#allocation10 + $0x30] sm:$0xf]
        %v1184 = vld [vmem:[#allocation10 + $0x34] sm:$0xf]
        %v1185 = vld [vmem:[#allocation10 + $0x38] sm:$0xf]
        %v1186 = vld [vmem:[#allocation10 + $0x3c] sm:$0xf]
        %v1187 = vld [vmem:[%s10] sm:$0x1]
        %v1189 = vlaneseq
        %v1190 = vshrl.u32 %v1189, 7
        %v1191 = vsub.s32 0, %v1190
        %v1192 = vrot.slane %v1187, %v1191
        %v1210 = vunpack.c.l.b16 %v1171
        %v1211 = vunpack.c.l.b16 %v1172
        %v1212 = vunpack.c.l.b16 %v1173
        %v1213 = vunpack.c.l.b16 %v1174
        %v1214 = vunpack.c.l.b16 %v1175
        %v1215 = vunpack.c.l.b16 %v1176
        %v1216 = vunpack.c.l.b16 %v1177
        %v1217 = vunpack.c.l.b16 %v1178
        %v1218 = vunpack.c.l.b16 %v1179
        %v1219 = vunpack.c.l.b16 %v1180
        %v1220 = vunpack.c.l.b16 %v1181
        %v1221 = vunpack.c.l.b16 %v1182
        %v1222 = vunpack.c.l.b16 %v1183
        %v1223 = vunpack.c.l.b16 %v1184
        %v1224 = vunpack.c.l.b16 %v1185
        %v1225 = vunpack.c.l.b16 %v1186
        %v1226 = vpack.c.b16 %v1211, %v1210
        %v1227 = vpack.c.b16 %v1213, %v1212
        %v1228 = vpack.c.b16 %v1215, %v1214
        %v1229 = vpack.c.b16 %v1217, %v1216
        %v1230 = vpack.c.b16 %v1219, %v1218
        %v1231 = vpack.c.b16 %v1221, %v1220
        %v1232 = vpack.c.b16 %v1223, %v1222
        %v1233 = vpack.c.b16 %v1225, %v1224
        %1242 = vmatprep.subr.bf16.mxu0 0
        %1243 = vmatpush1.bf16.msra.mxu0 %v1226
        %1244 = vmatprep.subr.bf16.mxu0 0
        %1245 = vmatpush1.bf16.msra.mxu0 %v1227
        %1246 = vmatprep.subr.bf16.mxu0 0
        %1247 = vmatpush1.bf16.msra.mxu0 %v1228
        %1248 = vmatprep.subr.bf16.mxu0 0
        %1249 = vmatpush1.bf16.msra.mxu0 %v1229
        %1250 = vmatprep.subr.bf16.mxu0 0
        %1251 = vmatpush1.bf16.msra.mxu0 %v1230
        %1252 = vmatprep.subr.bf16.mxu0 0
        %1253 = vmatpush1.bf16.msra.mxu0 %v1231
        %1254 = vmatprep.subr.bf16.mxu0 0
        %1255 = vmatpush1.bf16.msra.mxu0 %v1232
        %1256 = vmatprep.subr.bf16.mxu0 0
        %1257 = vmatpush1.bf16.msra.mxu0 %v1233
        %1258 = vmatprep.subr.bf16.mxu0 0
        %1259 = vmatpush1.bf16.msra.mxu0 0
        %1260 = vmatprep.subr.bf16.mxu0 0
        %1261 = vmatpush1.bf16.msra.mxu0 0
        %1262 = vmatprep.subr.bf16.mxu0 0
        %1263 = vmatpush1.bf16.msra.mxu0 0
        %1264 = vmatprep.subr.bf16.mxu0 0
        %1265 = vmatpush1.bf16.msra.mxu0 0
        %1266 = vmatprep.subr.bf16.mxu0 0
        %1267 = vmatpush1.bf16.msra.mxu0 0
        %1268 = vmatprep.subr.bf16.mxu0 0
        %1269 = vmatpush1.bf16.msra.mxu0 0
        %1270 = vmatprep.subr.bf16.mxu0 0
        %1271 = vmatpush1.bf16.msra.mxu0 0
        %1272 = vmatprep.subr.bf16.mxu0 0
        %1273 = vmatpush1.bf16.msra.mxu0 0
        %1274 = vmatprep.mubr.bf16.mxu0 0
        %1275 = vmatmul.mubr.bf16.gmra.mrb[0].mxu0 %v1167
        %v1276 = vpop.f32.mrb[0].mxu0
        %v1277 = vadd.f32 %v1192, %v1276
        %v1278 = vpop.f32.mrb[0].mxu0
        %v1279 = vpop.f32.mrb[0].mxu0
        %v1280 = vadd.f32 %v1192, %v1279
        %v1281 = vpop.f32.mrb[0].mxu0
        %1282 = vmatprep.mubr.bf16.mxu0 0
        %1283 = vmatmul.mubr.bf16.gmra.mrb[0].mxu0 %v1168
        %v1284 = vpop.f32.mrb[0].mxu0
        %v1285 = vadd.f32 %v1192, %v1284
        %v1286 = vpop.f32.mrb[0].mxu0
        %v1287 = vpop.f32.mrb[0].mxu0
        %v1288 = vadd.f32 %v1192, %v1287
        %v1289 = vpop.f32.mrb[0].mxu0
        %1290 = vmatprep.mubr.bf16.mxu0 0
        %1291 = vmatmul.mubr.bf16.gmra.mrb[0].mxu0 %v1169
        %v1292 = vpop.f32.mrb[0].mxu0
        %v1293 = vadd.f32 %v1192, %v1292
        %v1294 = vpop.f32.mrb[0].mxu0
        %v1295 = vpop.f32.mrb[0].mxu0
        %v1296 = vadd.f32 %v1192, %v1295
        %v1297 = vpop.f32.mrb[0].mxu0
        %1298 = vmatprep.mubr.bf16.mxu0 0
        %1299 = vmatmul.mubr.bf16.gmra.mrb[0].mxu0 %v1170
        %v1300 = vpop.f32.mrb[0].mxu0
        %v1301 = vadd.f32 %v1192, %v1300
        %v1302 = vpop.f32.mrb[0].mxu0
        %v1303 = vpop.f32.mrb[0].mxu0
        %v1304 = vadd.f32 %v1192, %v1303
        %v1305 = vpop.f32.mrb[0].mxu0
        %1306 = vdwg.mxu0
        %v1307 = vand.u32 2147483647, %v1277
        %vm1308 = vcmp.le.f32.partialorder %v1307, 0.7853982
        %vm1309 = vcmp.lt.s32.totalorder %v1277, 0
        %v1310 = vand.u32 %v1277, 2139095040
        %v1311 = vshrl.u32 %v1310, 23
        %v1312 = vsub.s32 %v1311, 127
        %v1313 = vand.u32 2147483647, %v1277
        %v1314 = vand.u32 %v1313, 8388607
        %v1315 = vor.u32 %v1314, 8388608
        %v1316 = vsub.s32 0, %v1315
        %v1317 = vadd.s32 %v1312, 1
        %vm1318 = vcmp.gt.s32.totalorder %v1317, 0
        %v1319 = vsel %vm1318, %v1317, 0
        %v1320 = vshrl.u32 %v1319, 5
        %v1321 = vand.u32 %v1319, 31
        %v1322 = vsub.s32 32, %v1321
        %v1323 = vshrl.u32 683565275, %v1322
        %v1324 = vshll.u32 683565275, %v1321
        %v1325 = vshrl.u32 2475754826, %v1322
        %v1326 = vor.u32 %v1324, %v1325
        %v1327 = vshll.u32 2475754826, %v1321
        %v1328 = vshrl.u32 2131351028, %v1322
        %v1329 = vor.u32 %v1327, %v1328
        %v1330 = vshll.u32 2131351028, %v1321
        %v1331 = vshrl.u32 2102212464, %v1322
        %v1332 = vor.u32 %v1330, %v1331
        %v1333 = vshll.u32 2102212464, %v1321
        %v1334 = vshrl.u32 920167782, %v1322
        %v1335 = vor.u32 %v1333, %v1334
        %v1336 = vshll.u32 920167782, %v1321
        %v1337 = vshrl.u32 1326507024, %v1322
        %v1338 = vor.u32 %v1336, %v1337
        %vm1339 = vcmp.lt.s32.totalorder %v1320, 1
        %vm1340 = vcmp.lt.s32.totalorder %v1320, 2
        %vm1341 = vcmp.lt.s32.totalorder %v1320, 3
        %vm1342 = vcmp.lt.s32.totalorder %v1320, 4
        %v1343 = vsel %vm1339, %v1323, %v1326
        %v1344 = vsel %vm1342, %v1332, 2102212464
        %v1345 = vsel %vm1341, %v1329, %v1344
        %v1346 = vsel %vm1340, %v1343, %v1345
        %v1347 = vsel %vm1339, %v1326, %v1329
        %v1348 = vsel %vm1342, %v1335, 920167782
        %v1349 = vsel %vm1341, %v1332, %v1348
        %v1350 = vsel %vm1340, %v1347, %v1349
        %v1351 = vsel %vm1339, %v1329, %v1332
        %v1352 = vsel %vm1342, %v1338, 1326507024
        %v1353 = vsel %vm1341, %v1335, %v1352
        %v1354 = vsel %vm1340, %v1351, %v1353
        %v1355 = vshll.u32 %v1315, 8
        %v1356 = vmul.u32.u64.compose %v1355, %v1354
        %v1357 = vextract.low.u32 %v1356
        %v1358 = vextract.high.u32 %v1356
        %v1359 = vmul.u32.u64.compose %v1355, %v1350
        %v1360 = vextract.low.u32 %v1359
        %v1361 = vextract.high.u32 %v1359
        %v1362 = vmul.u32 %v1355, %v1346
        %v1363 = vadd.s32 %v1358, %v1360
        %vm1364 = vc.u32 %v1358, %v1360
        %v1365 = vadd.s32 %v1361, 1
        %v1366 = vsel %vm1364, %v1365, %v1361
        %v1367 = vadd.s32 %v1362, %v1366
        %v1368 = vadd.s32 %v1367, 536870912
        %v1369 = vshrl.u32 %v1368, 30
        %v1370 = vshll.u32 %v1369, 30
        %v1371 = vsub.s32 %v1367, %v1370
        %vm1372 = vcmp.lt.s32.totalorder %v1371, 0
        %v1373 = vsub.s32 0, %v1371
        %v1374 = vsel %vm1372, %v1373, %v1371
        %v1375 = vclz %v1374
        %v1376 = vsub.s32 %v1375, 2
        %vm1377 = vcmp.gt.s32.totalorder 0, %v1376
        %v1378 = vsel %vm1377, 0, %v1376
        %v1379 = vsub.s32 32, %v1378
        %v1380 = vshll.u32 %v1371, %v1378
        %v1381 = vshrl.u32 %v1363, %v1379
        %v1382 = vor.u32 %v1380, %v1381
        %v1383 = vsub.s32 4294967266, %v1378
        %v1384 = vadd.s32 %v1383, 127
        %v1385 = vshll.u32 %v1384, 23
        %v1386 = vor.u32 4788187, %v1385
        %v1387 = vand.u32 2147483647, %v1386
        %v1389 = vcvt.s32.f32 %v1382
        %v1390 = vmul.f32 %v1389, %v1387
        %v1391 = vxor.u32 %v1390, 2147483648
        %v1392 = vsel %vm1309, %v1391, %v1390
        %v1393 = vsub.s32 4, %v1369
        %v1394 = vsel %vm1309, %v1393, %v1369
        %v1395 = vsel %vm1308, %v1277, %v1392
        %v1396 = vsel %vm1308, 0, %v1394
        %v1397 = vcosq.f32.pop %v1395
        %v1398 = vsinq.f32.pop %v1395
        %vm1399 = vweird.f32 %v1277
        %v1400 = vand.u32 %v1396, 3
        %vm1401 = vcmp.lt.s32.totalorder %v1400, 2
        %vm1402 = vcmp.eq.s32.totalorder %v1400, 0
        %v1403 = vxor.u32 %v1398, 2147483648
        %v1404 = vsel %vm1402, %v1397, %v1403
        %vm1405 = vcmp.eq.s32.totalorder %v1400, 2
        %v1406 = vxor.u32 %v1397, 2147483648
        %v1407 = vsel %vm1405, %v1406, %v1398
        %v1408 = vsel %vm1401, %v1404, %v1407
        %v1409 = vsel %vm1399, nan, %v1408
        %v1410 = vand.u32 2147483647, %v1280
        %vm1411 = vcmp.le.f32.partialorder %v1410, 0.7853982
        %vm1412 = vcmp.lt.s32.totalorder %v1280, 0
        %v1413 = vand.u32 %v1280, 2139095040
        %v1414 = vshrl.u32 %v1413, 23
        %v1415 = vsub.s32 %v1414, 127
        %v1416 = vand.u32 2147483647, %v1280
        %v1417 = vand.u32 %v1416, 8388607
        %v1418 = vor.u32 %v1417, 8388608
        %v1419 = vsub.s32 0, %v1418
        %v1420 = vadd.s32 %v1415, 1
        %vm1421 = vcmp.gt.s32.totalorder %v1420, 0
        %v1422 = vsel %vm1421, %v1420, 0
        %v1423 = vshrl.u32 %v1422, 5
        %v1424 = vand.u32 %v1422, 31
        %v1425 = vsub.s32 32, %v1424
        %v1426 = vshrl.u32 683565275, %v1425
        %v1427 = vshll.u32 683565275, %v1424
        %v1428 = vshrl.u32 2475754826, %v1425
        %v1429 = vor.u32 %v1427, %v1428
        %v1430 = vshll.u32 2475754826, %v1424
        %v1431 = vshrl.u32 2131351028, %v1425
        %v1432 = vor.u32 %v1430, %v1431
        %v1433 = vshll.u32 2131351028, %v1424
        %v1434 = vshrl.u32 2102212464, %v1425
        %v1435 = vor.u32 %v1433, %v1434
        %v1436 = vshll.u32 2102212464, %v1424
        %v1437 = vshrl.u32 920167782, %v1425
        %v1438 = vor.u32 %v1436, %v1437
        %v1439 = vshll.u32 920167782, %v1424
        %v1440 = vshrl.u32 1326507024, %v1425
        %v1441 = vor.u32 %v1439, %v1440
        %vm1442 = vcmp.lt.s32.totalorder %v1423, 1
        %vm1443 = vcmp.lt.s32.totalorder %v1423, 2
        %vm1444 = vcmp.lt.s32.totalorder %v1423, 3
        %vm1445 = vcmp.lt.s32.totalorder %v1423, 4
        %v1446 = vsel %vm1442, %v1426, %v1429
        %v1447 = vsel %vm1445, %v1435, 2102212464
        %v1448 = vsel %vm1444, %v1432, %v1447
        %v1449 = vsel %vm1443, %v1446, %v1448
        %v1450 = vsel %vm1442, %v1429, %v1432
        %v1451 = vsel %vm1445, %v1438, 920167782
        %v1452 = vsel %vm1444, %v1435, %v1451
        %v1453 = vsel %vm1443, %v1450, %v1452
        %v1454 = vsel %vm1442, %v1432, %v1435
        %v1455 = vsel %vm1445, %v1441, 1326507024
        %v1456 = vsel %vm1444, %v1438, %v1455
        %v1457 = vsel %vm1443, %v1454, %v1456
        %v1458 = vshll.u32 %v1418, 8
        %v1459 = vmul.u32.u64.compose %v1458, %v1457
        %v1460 = vextract.low.u32 %v1459
        %v1461 = vextract.high.u32 %v1459
        %v1462 = vmul.u32.u64.compose %v1458, %v1453
        %v1463 = vextract.low.u32 %v1462
        %v1464 = vextract.high.u32 %v1462
        %v1465 = vmul.u32 %v1458, %v1449
        %v1466 = vadd.s32 %v1461, %v1463
        %vm1467 = vc.u32 %v1461, %v1463
        %v1468 = vadd.s32 %v1464, 1
        %v1469 = vsel %vm1467, %v1468, %v1464
        %v1470 = vadd.s32 %v1465, %v1469
        %v1471 = vadd.s32 %v1470, 536870912
        %v1472 = vshrl.u32 %v1471, 30
        %v1473 = vshll.u32 %v1472, 30
        %v1474 = vsub.s32 %v1470, %v1473
        %vm1475 = vcmp.lt.s32.totalorder %v1474, 0
        %v1476 = vsub.s32 0, %v1474
        %v1477 = vsel %vm1475, %v1476, %v1474
        %v1478 = vclz %v1477
        %v1479 = vsub.s32 %v1478, 2
        %vm1480 = vcmp.gt.s32.totalorder 0, %v1479
        %v1481 = vsel %vm1480, 0, %v1479
        %v1482 = vsub.s32 32, %v1481
        %v1483 = vshll.u32 %v1474, %v1481
        %v1484 = vshrl.u32 %v1466, %v1482
        %v1485 = vor.u32 %v1483, %v1484
        %v1486 = vsub.s32 4294967266, %v1481
        %v1487 = vadd.s32 %v1486, 127
        %v1488 = vshll.u32 %v1487, 23
        %v1489 = vor.u32 4788187, %v1488
        %v1490 = vand.u32 2147483647, %v1489
        %v1492 = vcvt.s32.f32 %v1485
        %v1493 = vmul.f32 %v1492, %v1490
        %v1494 = vxor.u32 %v1493, 2147483648
        %v1495 = vsel %vm1412, %v1494, %v1493
        %v1496 = vsub.s32 4, %v1472
        %v1497 = vsel %vm1412, %v1496, %v1472
        %v1498 = vsel %vm1411, %v1280, %v1495
        %v1499 = vsel %vm1411, 0, %v1497
        %v1500 = vcosq.f32.pop %v1498
        %v1501 = vsinq.f32.pop %v1498
        %vm1502 = vweird.f32 %v1280
        %v1503 = vand.u32 %v1499, 3
        %vm1504 = vcmp.lt.s32.totalorder %v1503, 2
        %vm1505 = vcmp.eq.s32.totalorder %v1503, 0
        %v1506 = vxor.u32 %v1501, 2147483648
        %v1507 = vsel %vm1505, %v1500, %v1506
        %vm1508 = vcmp.eq.s32.totalorder %v1503, 2
        %v1509 = vxor.u32 %v1500, 2147483648
        %v1510 = vsel %vm1508, %v1509, %v1501
        %v1511 = vsel %vm1504, %v1507, %v1510
        %v1512 = vsel %vm1502, nan, %v1511
        %v1513 = vand.u32 2147483647, %v1285
        %vm1514 = vcmp.le.f32.partialorder %v1513, 0.7853982
        %vm1515 = vcmp.lt.s32.totalorder %v1285, 0
        %v1516 = vand.u32 %v1285, 2139095040
        %v1517 = vshrl.u32 %v1516, 23
        %v1518 = vsub.s32 %v1517, 127
        %v1519 = vand.u32 2147483647, %v1285
        %v1520 = vand.u32 %v1519, 8388607
        %v1521 = vor.u32 %v1520, 8388608
        %v1522 = vsub.s32 0, %v1521
        %v1523 = vadd.s32 %v1518, 1
        %vm1524 = vcmp.gt.s32.totalorder %v1523, 0
        %v1525 = vsel %vm1524, %v1523, 0
        %v1526 = vshrl.u32 %v1525, 5
        %v1527 = vand.u32 %v1525, 31
        %v1528 = vsub.s32 32, %v1527
        %v1529 = vshrl.u32 683565275, %v1528
        %v1530 = vshll.u32 683565275, %v1527
        %v1531 = vshrl.u32 2475754826, %v1528
        %v1532 = vor.u32 %v1530, %v1531
        %v1533 = vshll.u32 2475754826, %v1527
        %v1534 = vshrl.u32 2131351028, %v1528
        %v1535 = vor.u32 %v1533, %v1534
        %v1536 = vshll.u32 2131351028, %v1527
        %v1537 = vshrl.u32 2102212464, %v1528
        %v1538 = vor.u32 %v1536, %v1537
        %v1539 = vshll.u32 2102212464, %v1527
        %v1540 = vshrl.u32 920167782, %v1528
        %v1541 = vor.u32 %v1539, %v1540
        %v1542 = vshll.u32 920167782, %v1527
        %v1543 = vshrl.u32 1326507024, %v1528
        %v1544 = vor.u32 %v1542, %v1543
        %vm1545 = vcmp.lt.s32.totalorder %v1526, 1
        %vm1546 = vcmp.lt.s32.totalorder %v1526, 2
        %vm1547 = vcmp.lt.s32.totalorder %v1526, 3
        %vm1548 = vcmp.lt.s32.totalorder %v1526, 4
        %v1549 = vsel %vm1545, %v1529, %v1532
        %v1550 = vsel %vm1548, %v1538, 2102212464
        %v1551 = vsel %vm1547, %v1535, %v1550
        %v1552 = vsel %vm1546, %v1549, %v1551
        %v1553 = vsel %vm1545, %v1532, %v1535
        %v1554 = vsel %vm1548, %v1541, 920167782
        %v1555 = vsel %vm1547, %v1538, %v1554
        %v1556 = vsel %vm1546, %v1553, %v1555
        %v1557 = vsel %vm1545, %v1535, %v1538
        %v1558 = vsel %vm1548, %v1544, 1326507024
        %v1559 = vsel %vm1547, %v1541, %v1558
        %v1560 = vsel %vm1546, %v1557, %v1559
        %v1561 = vshll.u32 %v1521, 8
        %v1562 = vmul.u32.u64.compose %v1561, %v1560
        %v1563 = vextract.low.u32 %v1562
        %v1564 = vextract.high.u32 %v1562
        %v1565 = vmul.u32.u64.compose %v1561, %v1556
        %v1566 = vextract.low.u32 %v1565
        %v1567 = vextract.high.u32 %v1565
        %v1568 = vmul.u32 %v1561, %v1552
        %v1569 = vadd.s32 %v1564, %v1566
        %vm1570 = vc.u32 %v1564, %v1566
        %v1571 = vadd.s32 %v1567, 1
        %v1572 = vsel %vm1570, %v1571, %v1567
        %v1573 = vadd.s32 %v1568, %v1572
        %v1574 = vadd.s32 %v1573, 536870912
        %v1575 = vshrl.u32 %v1574, 30
        %v1576 = vshll.u32 %v1575, 30
        %v1577 = vsub.s32 %v1573, %v1576
        %vm1578 = vcmp.lt.s32.totalorder %v1577, 0
        %v1579 = vsub.s32 0, %v1577
        %v1580 = vsel %vm1578, %v1579, %v1577
        %v1581 = vclz %v1580
        %v1582 = vsub.s32 %v1581, 2
        %vm1583 = vcmp.gt.s32.totalorder 0, %v1582
        %v1584 = vsel %vm1583, 0, %v1582
        %v1585 = vsub.s32 32, %v1584
        %v1586 = vshll.u32 %v1577, %v1584
        %v1587 = vshrl.u32 %v1569, %v1585
        %v1588 = vor.u32 %v1586, %v1587
        %v1589 = vsub.s32 4294967266, %v1584
        %v1590 = vadd.s32 %v1589, 127
        %v1591 = vshll.u32 %v1590, 23
        %v1592 = vor.u32 4788187, %v1591
        %v1593 = vand.u32 2147483647, %v1592
        %v1595 = vcvt.s32.f32 %v1588
        %v1596 = vmul.f32 %v1595, %v1593
        %v1597 = vxor.u32 %v1596, 2147483648
        %v1598 = vsel %vm1515, %v1597, %v1596
        %v1599 = vsub.s32 4, %v1575
        %v1600 = vsel %vm1515, %v1599, %v1575
        %v1601 = vsel %vm1514, %v1285, %v1598
        %v1602 = vsel %vm1514, 0, %v1600
        %v1603 = vcosq.f32.pop %v1601
        %v1604 = vsinq.f32.pop %v1601
        %vm1605 = vweird.f32 %v1285
        %v1606 = vand.u32 %v1602, 3
        %vm1607 = vcmp.lt.s32.totalorder %v1606, 2
        %vm1608 = vcmp.eq.s32.totalorder %v1606, 0
        %v1609 = vxor.u32 %v1604, 2147483648
        %v1610 = vsel %vm1608, %v1603, %v1609
        %vm1611 = vcmp.eq.s32.totalorder %v1606, 2
        %v1612 = vxor.u32 %v1603, 2147483648
        %v1613 = vsel %vm1611, %v1612, %v1604
        %v1614 = vsel %vm1607, %v1610, %v1613
        %v1615 = vsel %vm1605, nan, %v1614
        %v1616 = vand.u32 2147483647, %v1288
        %vm1617 = vcmp.le.f32.partialorder %v1616, 0.7853982
        %vm1618 = vcmp.lt.s32.totalorder %v1288, 0
        %v1619 = vand.u32 %v1288, 2139095040
        %v1620 = vshrl.u32 %v1619, 23
        %v1621 = vsub.s32 %v1620, 127
        %v1622 = vand.u32 2147483647, %v1288
        %v1623 = vand.u32 %v1622, 8388607
        %v1624 = vor.u32 %v1623, 8388608
        %v1625 = vsub.s32 0, %v1624
        %v1626 = vadd.s32 %v1621, 1
        %vm1627 = vcmp.gt.s32.totalorder %v1626, 0
        %v1628 = vsel %vm1627, %v1626, 0
        %v1629 = vshrl.u32 %v1628, 5
        %v1630 = vand.u32 %v1628, 31
        %v1631 = vsub.s32 32, %v1630
        %v1632 = vshrl.u32 683565275, %v1631
        %v1633 = vshll.u32 683565275, %v1630
        %v1634 = vshrl.u32 2475754826, %v1631
        %v1635 = vor.u32 %v1633, %v1634
        %v1636 = vshll.u32 2475754826, %v1630
        %v1637 = vshrl.u32 2131351028, %v1631
        %v1638 = vor.u32 %v1636, %v1637
        %v1639 = vshll.u32 2131351028, %v1630
        %v1640 = vshrl.u32 2102212464, %v1631
        %v1641 = vor.u32 %v1639, %v1640
        %v1642 = vshll.u32 2102212464, %v1630
        %v1643 = vshrl.u32 920167782, %v1631
        %v1644 = vor.u32 %v1642, %v1643
        %v1645 = vshll.u32 920167782, %v1630
        %v1646 = vshrl.u32 1326507024, %v1631
        %v1647 = vor.u32 %v1645, %v1646
        %vm1648 = vcmp.lt.s32.totalorder %v1629, 1
        %vm1649 = vcmp.lt.s32.totalorder %v1629, 2
        %vm1650 = vcmp.lt.s32.totalorder %v1629, 3
        %vm1651 = vcmp.lt.s32.totalorder %v1629, 4
        %v1652 = vsel %vm1648, %v1632, %v1635
        %v1653 = vsel %vm1651, %v1641, 2102212464
        %v1654 = vsel %vm1650, %v1638, %v1653
        %v1655 = vsel %vm1649, %v1652, %v1654
        %v1656 = vsel %vm1648, %v1635, %v1638
        %v1657 = vsel %vm1651, %v1644, 920167782
        %v1658 = vsel %vm1650, %v1641, %v1657
        %v1659 = vsel %vm1649, %v1656, %v1658
        %v1660 = vsel %vm1648, %v1638, %v1641
        %v1661 = vsel %vm1651, %v1647, 1326507024
        %v1662 = vsel %vm1650, %v1644, %v1661
        %v1663 = vsel %vm1649, %v1660, %v1662
        %v1664 = vshll.u32 %v1624, 8
        %v1665 = vmul.u32.u64.compose %v1664, %v1663
        %v1666 = vextract.low.u32 %v1665
        %v1667 = vextract.high.u32 %v1665
        %v1668 = vmul.u32.u64.compose %v1664, %v1659
        %v1669 = vextract.low.u32 %v1668
        %v1670 = vextract.high.u32 %v1668
        %v1671 = vmul.u32 %v1664, %v1655
        %v1672 = vadd.s32 %v1667, %v1669
        %vm1673 = vc.u32 %v1667, %v1669
        %v1674 = vadd.s32 %v1670, 1
        %v1675 = vsel %vm1673, %v1674, %v1670
        %v1676 = vadd.s32 %v1671, %v1675
        %v1677 = vadd.s32 %v1676, 536870912
        %v1678 = vshrl.u32 %v1677, 30
        %v1679 = vshll.u32 %v1678, 30
        %v1680 = vsub.s32 %v1676, %v1679
        %vm1681 = vcmp.lt.s32.totalorder %v1680, 0
        %v1682 = vsub.s32 0, %v1680
        %v1683 = vsel %vm1681, %v1682, %v1680
        %v1684 = vclz %v1683
        %v1685 = vsub.s32 %v1684, 2
        %vm1686 = vcmp.gt.s32.totalorder 0, %v1685
        %v1687 = vsel %vm1686, 0, %v1685
        %v1688 = vsub.s32 32, %v1687
        %v1689 = vshll.u32 %v1680, %v1687
        %v1690 = vshrl.u32 %v1672, %v1688
        %v1691 = vor.u32 %v1689, %v1690
        %v1692 = vsub.s32 4294967266, %v1687
        %v1693 = vadd.s32 %v1692, 127
        %v1694 = vshll.u32 %v1693, 23
        %v1695 = vor.u32 4788187, %v1694
        %v1696 = vand.u32 2147483647, %v1695
        %v1698 = vcvt.s32.f32 %v1691
        %v1699 = vmul.f32 %v1698, %v1696
        %v1700 = vxor.u32 %v1699, 2147483648
        %v1701 = vsel %vm1618, %v1700, %v1699
        %v1702 = vsub.s32 4, %v1678
        %v1703 = vsel %vm1618, %v1702, %v1678
        %v1704 = vsel %vm1617, %v1288, %v1701
        %v1705 = vsel %vm1617, 0, %v1703
        %v1706 = vcosq.f32.pop %v1704
        %v1707 = vsinq.f32.pop %v1704
        %vm1708 = vweird.f32 %v1288
        %v1709 = vand.u32 %v1705, 3
        %vm1710 = vcmp.lt.s32.totalorder %v1709, 2
        %vm1711 = vcmp.eq.s32.totalorder %v1709, 0
        %v1712 = vxor.u32 %v1707, 2147483648
        %v1713 = vsel %vm1711, %v1706, %v1712
        %vm1714 = vcmp.eq.s32.totalorder %v1709, 2
        %v1715 = vxor.u32 %v1706, 2147483648
        %v1716 = vsel %vm1714, %v1715, %v1707
        %v1717 = vsel %vm1710, %v1713, %v1716
        %v1718 = vsel %vm1708, nan, %v1717
        %v1719 = vand.u32 2147483647, %v1293
        %vm1720 = vcmp.le.f32.partialorder %v1719, 0.7853982
        %vm1721 = vcmp.lt.s32.totalorder %v1293, 0
        %v1722 = vand.u32 %v1293, 2139095040
        %v1723 = vshrl.u32 %v1722, 23
        %v1724 = vsub.s32 %v1723, 127
        %v1725 = vand.u32 2147483647, %v1293
        %v1726 = vand.u32 %v1725, 8388607
        %v1727 = vor.u32 %v1726, 8388608
        %v1728 = vsub.s32 0, %v1727
        %v1729 = vadd.s32 %v1724, 1
        %vm1730 = vcmp.gt.s32.totalorder %v1729, 0
        %v1731 = vsel %vm1730, %v1729, 0
        %v1732 = vshrl.u32 %v1731, 5
        %v1733 = vand.u32 %v1731, 31
        %v1734 = vsub.s32 32, %v1733
        %v1735 = vshrl.u32 683565275, %v1734
        %v1736 = vshll.u32 683565275, %v1733
        %v1737 = vshrl.u32 2475754826, %v1734
        %v1738 = vor.u32 %v1736, %v1737
        %v1739 = vshll.u32 2475754826, %v1733
        %v1740 = vshrl.u32 2131351028, %v1734
        %v1741 = vor.u32 %v1739, %v1740
        %v1742 = vshll.u32 2131351028, %v1733
        %v1743 = vshrl.u32 2102212464, %v1734
        %v1744 = vor.u32 %v1742, %v1743
        %v1745 = vshll.u32 2102212464, %v1733
        %v1746 = vshrl.u32 920167782, %v1734
        %v1747 = vor.u32 %v1745, %v1746
        %v1748 = vshll.u32 920167782, %v1733
        %v1749 = vshrl.u32 1326507024, %v1734
        %v1750 = vor.u32 %v1748, %v1749
        %vm1751 = vcmp.lt.s32.totalorder %v1732, 1
        %vm1752 = vcmp.lt.s32.totalorder %v1732, 2
        %vm1753 = vcmp.lt.s32.totalorder %v1732, 3
        %vm1754 = vcmp.lt.s32.totalorder %v1732, 4
        %v1755 = vsel %vm1751, %v1735, %v1738
        %v1756 = vsel %vm1754, %v1744, 2102212464
        %v1757 = vsel %vm1753, %v1741, %v1756
        %v1758 = vsel %vm1752, %v1755, %v1757
        %v1759 = vsel %vm1751, %v1738, %v1741
        %v1760 = vsel %vm1754, %v1747, 920167782
        %v1761 = vsel %vm1753, %v1744, %v1760
        %v1762 = vsel %vm1752, %v1759, %v1761
        %v1763 = vsel %vm1751, %v1741, %v1744
        %v1764 = vsel %vm1754, %v1750, 1326507024
        %v1765 = vsel %vm1753, %v1747, %v1764
        %v1766 = vsel %vm1752, %v1763, %v1765
        %v1767 = vshll.u32 %v1727, 8
        %v1768 = vmul.u32.u64.compose %v1767, %v1766
        %v1769 = vextract.low.u32 %v1768
        %v1770 = vextract.high.u32 %v1768
        %v1771 = vmul.u32.u64.compose %v1767, %v1762
        %v1772 = vextract.low.u32 %v1771
        %v1773 = vextract.high.u32 %v1771
        %v1774 = vmul.u32 %v1767, %v1758
        %v1775 = vadd.s32 %v1770, %v1772
        %vm1776 = vc.u32 %v1770, %v1772
        %v1777 = vadd.s32 %v1773, 1
        %v1778 = vsel %vm1776, %v1777, %v1773
        %v1779 = vadd.s32 %v1774, %v1778
        %v1780 = vadd.s32 %v1779, 536870912
        %v1781 = vshrl.u32 %v1780, 30
        %v1782 = vshll.u32 %v1781, 30
        %v1783 = vsub.s32 %v1779, %v1782
        %vm1784 = vcmp.lt.s32.totalorder %v1783, 0
        %v1785 = vsub.s32 0, %v1783
        %v1786 = vsel %vm1784, %v1785, %v1783
        %v1787 = vclz %v1786
        %v1788 = vsub.s32 %v1787, 2
        %vm1789 = vcmp.gt.s32.totalorder 0, %v1788
        %v1790 = vsel %vm1789, 0, %v1788
        %v1791 = vsub.s32 32, %v1790
        %v1792 = vshll.u32 %v1783, %v1790
        %v1793 = vshrl.u32 %v1775, %v1791
        %v1794 = vor.u32 %v1792, %v1793
        %v1795 = vsub.s32 4294967266, %v1790
        %v1796 = vadd.s32 %v1795, 127
        %v1797 = vshll.u32 %v1796, 23
        %v1798 = vor.u32 4788187, %v1797
        %v1799 = vand.u32 2147483647, %v1798
        %v1801 = vcvt.s32.f32 %v1794
        %v1802 = vmul.f32 %v1801, %v1799
        %v1803 = vxor.u32 %v1802, 2147483648
        %v1804 = vsel %vm1721, %v1803, %v1802
        %v1805 = vsub.s32 4, %v1781
        %v1806 = vsel %vm1721, %v1805, %v1781
        %v1807 = vsel %vm1720, %v1293, %v1804
        %v1808 = vsel %vm1720, 0, %v1806
        %v1809 = vcosq.f32.pop %v1807
        %v1810 = vsinq.f32.pop %v1807
        %vm1811 = vweird.f32 %v1293
        %v1812 = vand.u32 %v1808, 3
        %vm1813 = vcmp.lt.s32.totalorder %v1812, 2
        %vm1814 = vcmp.eq.s32.totalorder %v1812, 0
        %v1815 = vxor.u32 %v1810, 2147483648
        %v1816 = vsel %vm1814, %v1809, %v1815
        %vm1817 = vcmp.eq.s32.totalorder %v1812, 2
        %v1818 = vxor.u32 %v1809, 2147483648
        %v1819 = vsel %vm1817, %v1818, %v1810
        %v1820 = vsel %vm1813, %v1816, %v1819
        %v1821 = vsel %vm1811, nan, %v1820
        %v1822 = vand.u32 2147483647, %v1296
        %vm1823 = vcmp.le.f32.partialorder %v1822, 0.7853982
        %vm1824 = vcmp.lt.s32.totalorder %v1296, 0
        %v1825 = vand.u32 %v1296, 2139095040
        %v1826 = vshrl.u32 %v1825, 23
        %v1827 = vsub.s32 %v1826, 127
        %v1828 = vand.u32 2147483647, %v1296
        %v1829 = vand.u32 %v1828, 8388607
        %v1830 = vor.u32 %v1829, 8388608
        %v1831 = vsub.s32 0, %v1830
        %v1832 = vadd.s32 %v1827, 1
        %vm1833 = vcmp.gt.s32.totalorder %v1832, 0
        %v1834 = vsel %vm1833, %v1832, 0
        %v1835 = vshrl.u32 %v1834, 5
        %v1836 = vand.u32 %v1834, 31
        %v1837 = vsub.s32 32, %v1836
        %v1838 = vshrl.u32 683565275, %v1837
        %v1839 = vshll.u32 683565275, %v1836
        %v1840 = vshrl.u32 2475754826, %v1837
        %v1841 = vor.u32 %v1839, %v1840
        %v1842 = vshll.u32 2475754826, %v1836
        %v1843 = vshrl.u32 2131351028, %v1837
        %v1844 = vor.u32 %v1842, %v1843
        %v1845 = vshll.u32 2131351028, %v1836
        %v1846 = vshrl.u32 2102212464, %v1837
        %v1847 = vor.u32 %v1845, %v1846
        %v1848 = vshll.u32 2102212464, %v1836
        %v1849 = vshrl.u32 920167782, %v1837
        %v1850 = vor.u32 %v1848, %v1849
        %v1851 = vshll.u32 920167782, %v1836
        %v1852 = vshrl.u32 1326507024, %v1837
        %v1853 = vor.u32 %v1851, %v1852
        %vm1854 = vcmp.lt.s32.totalorder %v1835, 1
        %vm1855 = vcmp.lt.s32.totalorder %v1835, 2
        %vm1856 = vcmp.lt.s32.totalorder %v1835, 3
        %vm1857 = vcmp.lt.s32.totalorder %v1835, 4
        %v1858 = vsel %vm1854, %v1838, %v1841
        %v1859 = vsel %vm1857, %v1847, 2102212464
        %v1860 = vsel %vm1856, %v1844, %v1859
        %v1861 = vsel %vm1855, %v1858, %v1860
        %v1862 = vsel %vm1854, %v1841, %v1844
        %v1863 = vsel %vm1857, %v1850, 920167782
        %v1864 = vsel %vm1856, %v1847, %v1863
        %v1865 = vsel %vm1855, %v1862, %v1864
        %v1866 = vsel %vm1854, %v1844, %v1847
        %v1867 = vsel %vm1857, %v1853, 1326507024
        %v1868 = vsel %vm1856, %v1850, %v1867
        %v1869 = vsel %vm1855, %v1866, %v1868
        %v1870 = vshll.u32 %v1830, 8
        %v1871 = vmul.u32.u64.compose %v1870, %v1869
        %v1872 = vextract.low.u32 %v1871
        %v1873 = vextract.high.u32 %v1871
        %v1874 = vmul.u32.u64.compose %v1870, %v1865
        %v1875 = vextract.low.u32 %v1874
        %v1876 = vextract.high.u32 %v1874
        %v1877 = vmul.u32 %v1870, %v1861
        %v1878 = vadd.s32 %v1873, %v1875
        %vm1879 = vc.u32 %v1873, %v1875
        %v1880 = vadd.s32 %v1876, 1
        %v1881 = vsel %vm1879, %v1880, %v1876
        %v1882 = vadd.s32 %v1877, %v1881
        %v1883 = vadd.s32 %v1882, 536870912
        %v1884 = vshrl.u32 %v1883, 30
        %v1885 = vshll.u32 %v1884, 30
        %v1886 = vsub.s32 %v1882, %v1885
        %vm1887 = vcmp.lt.s32.totalorder %v1886, 0
        %v1888 = vsub.s32 0, %v1886
        %v1889 = vsel %vm1887, %v1888, %v1886
        %v1890 = vclz %v1889
        %v1891 = vsub.s32 %v1890, 2
        %vm1892 = vcmp.gt.s32.totalorder 0, %v1891
        %v1893 = vsel %vm1892, 0, %v1891
        %v1894 = vsub.s32 32, %v1893
        %v1895 = vshll.u32 %v1886, %v1893
        %v1896 = vshrl.u32 %v1878, %v1894
        %v1897 = vor.u32 %v1895, %v1896
        %v1898 = vsub.s32 4294967266, %v1893
        %v1899 = vadd.s32 %v1898, 127
        %v1900 = vshll.u32 %v1899, 23
        %v1901 = vor.u32 4788187, %v1900
        %v1902 = vand.u32 2147483647, %v1901
        %v1904 = vcvt.s32.f32 %v1897
        %v1905 = vmul.f32 %v1904, %v1902
        %v1906 = vxor.u32 %v1905, 2147483648
        %v1907 = vsel %vm1824, %v1906, %v1905
        %v1908 = vsub.s32 4, %v1884
        %v1909 = vsel %vm1824, %v1908, %v1884
        %v1910 = vsel %vm1823, %v1296, %v1907
        %v1911 = vsel %vm1823, 0, %v1909
        %v1912 = vcosq.f32.pop %v1910
        %v1913 = vsinq.f32.pop %v1910
        %vm1914 = vweird.f32 %v1296
        %v1915 = vand.u32 %v1911, 3
        %vm1916 = vcmp.lt.s32.totalorder %v1915, 2
        %vm1917 = vcmp.eq.s32.totalorder %v1915, 0
        %v1918 = vxor.u32 %v1913, 2147483648
        %v1919 = vsel %vm1917, %v1912, %v1918
        %vm1920 = vcmp.eq.s32.totalorder %v1915, 2
        %v1921 = vxor.u32 %v1912, 2147483648
        %v1922 = vsel %vm1920, %v1921, %v1913
        %v1923 = vsel %vm1916, %v1919, %v1922
        %v1924 = vsel %vm1914, nan, %v1923
        %v1925 = vand.u32 2147483647, %v1301
        %vm1926 = vcmp.le.f32.partialorder %v1925, 0.7853982
        %vm1927 = vcmp.lt.s32.totalorder %v1301, 0
        %v1928 = vand.u32 %v1301, 2139095040
        %v1929 = vshrl.u32 %v1928, 23
        %v1930 = vsub.s32 %v1929, 127
        %v1931 = vand.u32 2147483647, %v1301
        %v1932 = vand.u32 %v1931, 8388607
        %v1933 = vor.u32 %v1932, 8388608
        %v1934 = vsub.s32 0, %v1933
        %v1935 = vadd.s32 %v1930, 1
        %vm1936 = vcmp.gt.s32.totalorder %v1935, 0
        %v1937 = vsel %vm1936, %v1935, 0
        %v1938 = vshrl.u32 %v1937, 5
        %v1939 = vand.u32 %v1937, 31
        %v1940 = vsub.s32 32, %v1939
        %v1941 = vshrl.u32 683565275, %v1940
        %v1942 = vshll.u32 683565275, %v1939
        %v1943 = vshrl.u32 2475754826, %v1940
        %v1944 = vor.u32 %v1942, %v1943
        %v1945 = vshll.u32 2475754826, %v1939
        %v1946 = vshrl.u32 2131351028, %v1940
        %v1947 = vor.u32 %v1945, %v1946
        %v1948 = vshll.u32 2131351028, %v1939
        %v1949 = vshrl.u32 2102212464, %v1940
        %v1950 = vor.u32 %v1948, %v1949
        %v1951 = vshll.u32 2102212464, %v1939
        %v1952 = vshrl.u32 920167782, %v1940
        %v1953 = vor.u32 %v1951, %v1952
        %v1954 = vshll.u32 920167782, %v1939
        %v1955 = vshrl.u32 1326507024, %v1940
        %v1956 = vor.u32 %v1954, %v1955
        %vm1957 = vcmp.lt.s32.totalorder %v1938, 1
        %vm1958 = vcmp.lt.s32.totalorder %v1938, 2
        %vm1959 = vcmp.lt.s32.totalorder %v1938, 3
        %vm1960 = vcmp.lt.s32.totalorder %v1938, 4
        %v1961 = vsel %vm1957, %v1941, %v1944
        %v1962 = vsel %vm1960, %v1950, 2102212464
        %v1963 = vsel %vm1959, %v1947, %v1962
        %v1964 = vsel %vm1958, %v1961, %v1963
        %v1965 = vsel %vm1957, %v1944, %v1947
        %v1966 = vsel %vm1960, %v1953, 920167782
        %v1967 = vsel %vm1959, %v1950, %v1966
        %v1968 = vsel %vm1958, %v1965, %v1967
        %v1969 = vsel %vm1957, %v1947, %v1950
        %v1970 = vsel %vm1960, %v1956, 1326507024
        %v1971 = vsel %vm1959, %v1953, %v1970
        %v1972 = vsel %vm1958, %v1969, %v1971
        %v1973 = vshll.u32 %v1933, 8
        %v1974 = vmul.u32.u64.compose %v1973, %v1972
        %v1975 = vextract.low.u32 %v1974
        %v1976 = vextract.high.u32 %v1974
        %v1977 = vmul.u32.u64.compose %v1973, %v1968
        %v1978 = vextract.low.u32 %v1977
        %v1979 = vextract.high.u32 %v1977
        %v1980 = vmul.u32 %v1973, %v1964
        %v1981 = vadd.s32 %v1976, %v1978
        %vm1982 = vc.u32 %v1976, %v1978
        %v1983 = vadd.s32 %v1979, 1
        %v1984 = vsel %vm1982, %v1983, %v1979
        %v1985 = vadd.s32 %v1980, %v1984
        %v1986 = vadd.s32 %v1985, 536870912
        %v1987 = vshrl.u32 %v1986, 30
        %v1988 = vshll.u32 %v1987, 30
        %v1989 = vsub.s32 %v1985, %v1988
        %vm1990 = vcmp.lt.s32.totalorder %v1989, 0
        %v1991 = vsub.s32 0, %v1989
        %v1992 = vsel %vm1990, %v1991, %v1989
        %v1993 = vclz %v1992
        %v1994 = vsub.s32 %v1993, 2
        %vm1995 = vcmp.gt.s32.totalorder 0, %v1994
        %v1996 = vsel %vm1995, 0, %v1994
        %v1997 = vsub.s32 32, %v1996
        %v1998 = vshll.u32 %v1989, %v1996
        %v1999 = vshrl.u32 %v1981, %v1997
        %v2000 = vor.u32 %v1998, %v1999
        %v2001 = vsub.s32 4294967266, %v1996
        %v2002 = vadd.s32 %v2001, 127
        %v2003 = vshll.u32 %v2002, 23
        %v2004 = vor.u32 4788187, %v2003
        %v2005 = vand.u32 2147483647, %v2004
        %v2007 = vcvt.s32.f32 %v2000
        %v2008 = vmul.f32 %v2007, %v2005
        %v2009 = vxor.u32 %v2008, 2147483648
        %v2010 = vsel %vm1927, %v2009, %v2008
        %v2011 = vsub.s32 4, %v1987
        %v2012 = vsel %vm1927, %v2011, %v1987
        %v2013 = vsel %vm1926, %v1301, %v2010
        %v2014 = vsel %vm1926, 0, %v2012
        %v2015 = vcosq.f32.pop %v2013
        %v2016 = vsinq.f32.pop %v2013
        %vm2017 = vweird.f32 %v1301
        %v2018 = vand.u32 %v2014, 3
        %vm2019 = vcmp.lt.s32.totalorder %v2018, 2
        %vm2020 = vcmp.eq.s32.totalorder %v2018, 0
        %v2021 = vxor.u32 %v2016, 2147483648
        %v2022 = vsel %vm2020, %v2015, %v2021
        %vm2023 = vcmp.eq.s32.totalorder %v2018, 2
        %v2024 = vxor.u32 %v2015, 2147483648
        %v2025 = vsel %vm2023, %v2024, %v2016
        %v2026 = vsel %vm2019, %v2022, %v2025
        %v2027 = vsel %vm2017, nan, %v2026
        %v2028 = vand.u32 2147483647, %v1304
        %vm2029 = vcmp.le.f32.partialorder %v2028, 0.7853982
        %vm2030 = vcmp.lt.s32.totalorder %v1304, 0
        %v2031 = vand.u32 %v1304, 2139095040
        %v2032 = vshrl.u32 %v2031, 23
        %v2033 = vsub.s32 %v2032, 127
        %v2034 = vand.u32 2147483647, %v1304
        %v2035 = vand.u32 %v2034, 8388607
        %v2036 = vor.u32 %v2035, 8388608
        %v2037 = vsub.s32 0, %v2036
        %v2038 = vadd.s32 %v2033, 1
        %vm2039 = vcmp.gt.s32.totalorder %v2038, 0
        %v2040 = vsel %vm2039, %v2038, 0
        %v2041 = vshrl.u32 %v2040, 5
        %v2042 = vand.u32 %v2040, 31
        %v2043 = vsub.s32 32, %v2042
        %v2044 = vshrl.u32 683565275, %v2043
        %v2045 = vshll.u32 683565275, %v2042
        %v2046 = vshrl.u32 2475754826, %v2043
        %v2047 = vor.u32 %v2045, %v2046
        %v2048 = vshll.u32 2475754826, %v2042
        %v2049 = vshrl.u32 2131351028, %v2043
        %v2050 = vor.u32 %v2048, %v2049
        %v2051 = vshll.u32 2131351028, %v2042
        %v2052 = vshrl.u32 2102212464, %v2043
        %v2053 = vor.u32 %v2051, %v2052
        %v2054 = vshll.u32 2102212464, %v2042
        %v2055 = vshrl.u32 920167782, %v2043
        %v2056 = vor.u32 %v2054, %v2055
        %v2057 = vshll.u32 920167782, %v2042
        %v2058 = vshrl.u32 1326507024, %v2043
        %v2059 = vor.u32 %v2057, %v2058
        %vm2060 = vcmp.lt.s32.totalorder %v2041, 1
        %vm2061 = vcmp.lt.s32.totalorder %v2041, 2
        %vm2062 = vcmp.lt.s32.totalorder %v2041, 3
        %vm2063 = vcmp.lt.s32.totalorder %v2041, 4
        %v2064 = vsel %vm2060, %v2044, %v2047
        %v2065 = vsel %vm2063, %v2053, 2102212464
        %v2066 = vsel %vm2062, %v2050, %v2065
        %v2067 = vsel %vm2061, %v2064, %v2066
        %v2068 = vsel %vm2060, %v2047, %v2050
        %v2069 = vsel %vm2063, %v2056, 920167782
        %v2070 = vsel %vm2062, %v2053, %v2069
        %v2071 = vsel %vm2061, %v2068, %v2070
        %v2072 = vsel %vm2060, %v2050, %v2053
        %v2073 = vsel %vm2063, %v2059, 1326507024
        %v2074 = vsel %vm2062, %v2056, %v2073
        %v2075 = vsel %vm2061, %v2072, %v2074
        %v2076 = vshll.u32 %v2036, 8
        %v2077 = vmul.u32.u64.compose %v2076, %v2075
        %v2078 = vextract.low.u32 %v2077
        %v2079 = vextract.high.u32 %v2077
        %v2080 = vmul.u32.u64.compose %v2076, %v2071
        %v2081 = vextract.low.u32 %v2080
        %v2082 = vextract.high.u32 %v2080
        %v2083 = vmul.u32 %v2076, %v2067
        %v2084 = vadd.s32 %v2079, %v2081
        %vm2085 = vc.u32 %v2079, %v2081
        %v2086 = vadd.s32 %v2082, 1
        %v2087 = vsel %vm2085, %v2086, %v2082
        %v2088 = vadd.s32 %v2083, %v2087
        %v2089 = vadd.s32 %v2088, 536870912
        %v2090 = vshrl.u32 %v2089, 30
        %v2091 = vshll.u32 %v2090, 30
        %v2092 = vsub.s32 %v2088, %v2091
        %vm2093 = vcmp.lt.s32.totalorder %v2092, 0
        %v2094 = vsub.s32 0, %v2092
        %v2095 = vsel %vm2093, %v2094, %v2092
        %v2096 = vclz %v2095
        %v2097 = vsub.s32 %v2096, 2
        %vm2098 = vcmp.gt.s32.totalorder 0, %v2097
        %v2099 = vsel %vm2098, 0, %v2097
        %v2100 = vsub.s32 32, %v2099
        %v2101 = vshll.u32 %v2092, %v2099
        %v2102 = vshrl.u32 %v2084, %v2100
        %v2103 = vor.u32 %v2101, %v2102
        %v2104 = vsub.s32 4294967266, %v2099
        %v2105 = vadd.s32 %v2104, 127
        %v2106 = vshll.u32 %v2105, 23
        %v2107 = vor.u32 4788187, %v2106
        %v2108 = vand.u32 2147483647, %v2107
        %v2110 = vcvt.s32.f32 %v2103
        %v2111 = vmul.f32 %v2110, %v2108
        %v2112 = vxor.u32 %v2111, 2147483648
        %v2113 = vsel %vm2030, %v2112, %v2111
        %v2114 = vsub.s32 4, %v2090
        %v2115 = vsel %vm2030, %v2114, %v2090
        %v2116 = vsel %vm2029, %v1304, %v2113
        %v2117 = vsel %vm2029, 0, %v2115
        %v2118 = vcosq.f32.pop %v2116
        %v2119 = vsinq.f32.pop %v2116
        %vm2120 = vweird.f32 %v1304
        %v2121 = vand.u32 %v2117, 3
        %vm2122 = vcmp.lt.s32.totalorder %v2121, 2
        %vm2123 = vcmp.eq.s32.totalorder %v2121, 0
        %v2124 = vxor.u32 %v2119, 2147483648
        %v2125 = vsel %vm2123, %v2118, %v2124
        %vm2126 = vcmp.eq.s32.totalorder %v2121, 2
        %v2127 = vxor.u32 %v2118, 2147483648
        %v2128 = vsel %vm2126, %v2127, %v2119
        %v2129 = vsel %vm2122, %v2125, %v2128
        %v2130 = vsel %vm2120, nan, %v2129
        %v2131 = vmul.f32 %v889, %v1409
        %v2132 = vmul.f32 %v892, %v1512
        %v2133 = vmul.f32 %v897, %v1615
        %v2134 = vmul.f32 %v900, %v1718
        %v2135 = vmul.f32 %v905, %v1821
        %v2136 = vmul.f32 %v908, %v1924
        %v2137 = vmul.f32 %v913, %v2027
        %v2138 = vmul.f32 %v916, %v2130
        %v2139 = vand.u32 2147483647, %v1277
        %vm2140 = vcmp.le.f32.partialorder %v2139, 0.7853982
        %vm2141 = vcmp.lt.s32.totalorder %v1277, 0
        %v2142 = vand.u32 %v1277, 2139095040
        %v2143 = vshrl.u32 %v2142, 23
        %v2144 = vsub.s32 %v2143, 127
        %v2145 = vand.u32 2147483647, %v1277
        %v2146 = vand.u32 %v2145, 8388607
        %v2147 = vor.u32 %v2146, 8388608
        %v2148 = vsub.s32 0, %v2147
        %v2149 = vadd.s32 %v2144, 1
        %vm2150 = vcmp.gt.s32.totalorder %v2149, 0
        %v2151 = vsel %vm2150, %v2149, 0
        %v2152 = vshrl.u32 %v2151, 5
        %v2153 = vand.u32 %v2151, 31
        %v2154 = vsub.s32 32, %v2153
        %v2155 = vshrl.u32 683565275, %v2154
        %v2156 = vshll.u32 683565275, %v2153
        %v2157 = vshrl.u32 2475754826, %v2154
        %v2158 = vor.u32 %v2156, %v2157
        %v2159 = vshll.u32 2475754826, %v2153
        %v2160 = vshrl.u32 2131351028, %v2154
        %v2161 = vor.u32 %v2159, %v2160
        %v2162 = vshll.u32 2131351028, %v2153
        %v2163 = vshrl.u32 2102212464, %v2154
        %v2164 = vor.u32 %v2162, %v2163
        %v2165 = vshll.u32 2102212464, %v2153
        %v2166 = vshrl.u32 920167782, %v2154
        %v2167 = vor.u32 %v2165, %v2166
        %v2168 = vshll.u32 920167782, %v2153
        %v2169 = vshrl.u32 1326507024, %v2154
        %v2170 = vor.u32 %v2168, %v2169
        %vm2171 = vcmp.lt.s32.totalorder %v2152, 1
        %vm2172 = vcmp.lt.s32.totalorder %v2152, 2
        %vm2173 = vcmp.lt.s32.totalorder %v2152, 3
        %vm2174 = vcmp.lt.s32.totalorder %v2152, 4
        %v2175 = vsel %vm2171, %v2155, %v2158
        %v2176 = vsel %vm2174, %v2164, 2102212464
        %v2177 = vsel %vm2173, %v2161, %v2176
        %v2178 = vsel %vm2172, %v2175, %v2177
        %v2179 = vsel %vm2171, %v2158, %v2161
        %v2180 = vsel %vm2174, %v2167, 920167782
        %v2181 = vsel %vm2173, %v2164, %v2180
        %v2182 = vsel %vm2172, %v2179, %v2181
        %v2183 = vsel %vm2171, %v2161, %v2164
        %v2184 = vsel %vm2174, %v2170, 1326507024
        %v2185 = vsel %vm2173, %v2167, %v2184
        %v2186 = vsel %vm2172, %v2183, %v2185
        %v2187 = vshll.u32 %v2147, 8
        %v2188 = vmul.u32.u64.compose %v2187, %v2186
        %v2189 = vextract.low.u32 %v2188
        %v2190 = vextract.high.u32 %v2188
        %v2191 = vmul.u32.u64.compose %v2187, %v2182
        %v2192 = vextract.low.u32 %v2191
        %v2193 = vextract.high.u32 %v2191
        %v2194 = vmul.u32 %v2187, %v2178
        %v2195 = vadd.s32 %v2190, %v2192
        %vm2196 = vc.u32 %v2190, %v2192
        %v2197 = vadd.s32 %v2193, 1
        %v2198 = vsel %vm2196, %v2197, %v2193
        %v2199 = vadd.s32 %v2194, %v2198
        %v2200 = vadd.s32 %v2199, 536870912
        %v2201 = vshrl.u32 %v2200, 30
        %v2202 = vshll.u32 %v2201, 30
        %v2203 = vsub.s32 %v2199, %v2202
        %vm2204 = vcmp.lt.s32.totalorder %v2203, 0
        %v2205 = vsub.s32 0, %v2203
        %v2206 = vsel %vm2204, %v2205, %v2203
        %v2207 = vclz %v2206
        %v2208 = vsub.s32 %v2207, 2
        %vm2209 = vcmp.gt.s32.totalorder 0, %v2208
        %v2210 = vsel %vm2209, 0, %v2208
        %v2211 = vsub.s32 32, %v2210
        %v2212 = vshll.u32 %v2203, %v2210
        %v2213 = vshrl.u32 %v2195, %v2211
        %v2214 = vor.u32 %v2212, %v2213
        %v2215 = vsub.s32 4294967266, %v2210
        %v2216 = vadd.s32 %v2215, 127
        %v2217 = vshll.u32 %v2216, 23
        %v2218 = vor.u32 4788187, %v2217
        %v2219 = vand.u32 2147483647, %v2218
        %v2221 = vcvt.s32.f32 %v2214
        %v2222 = vmul.f32 %v2221, %v2219
        %v2223 = vxor.u32 %v2222, 2147483648
        %v2224 = vsel %vm2141, %v2223, %v2222
        %v2225 = vsub.s32 4, %v2201
        %v2226 = vsel %vm2141, %v2225, %v2201
        %v2227 = vsel %vm2140, %v1277, %v2224
        %v2228 = vsel %vm2140, 0, %v2226
        %v2229 = vcosq.f32.pop %v2227
        %v2230 = vsinq.f32.pop %v2227
        %vm2231 = vweird.f32 %v1277
        %v2232 = vadd.s32 %v2228, 3
        %v2233 = vand.u32 %v2232, 3
        %vm2234 = vcmp.lt.s32.totalorder %v2233, 2
        %vm2235 = vcmp.eq.s32.totalorder %v2233, 0
        %v2236 = vxor.u32 %v2230, 2147483648
        %v2237 = vsel %vm2235, %v2229, %v2236
        %vm2238 = vcmp.eq.s32.totalorder %v2233, 2
        %v2239 = vxor.u32 %v2229, 2147483648
        %v2240 = vsel %vm2238, %v2239, %v2230
        %v2241 = vsel %vm2234, %v2237, %v2240
        %v2242 = vsel %vm2231, nan, %v2241
        %v2243 = vand.u32 2147483647, %v1280
        %vm2244 = vcmp.le.f32.partialorder %v2243, 0.7853982
        %vm2245 = vcmp.lt.s32.totalorder %v1280, 0
        %v2246 = vand.u32 %v1280, 2139095040
        %v2247 = vshrl.u32 %v2246, 23
        %v2248 = vsub.s32 %v2247, 127
        %v2249 = vand.u32 2147483647, %v1280
        %v2250 = vand.u32 %v2249, 8388607
        %v2251 = vor.u32 %v2250, 8388608
        %v2252 = vsub.s32 0, %v2251
        %v2253 = vadd.s32 %v2248, 1
        %vm2254 = vcmp.gt.s32.totalorder %v2253, 0
        %v2255 = vsel %vm2254, %v2253, 0
        %v2256 = vshrl.u32 %v2255, 5
        %v2257 = vand.u32 %v2255, 31
        %v2258 = vsub.s32 32, %v2257
        %v2259 = vshrl.u32 683565275, %v2258
        %v2260 = vshll.u32 683565275, %v2257
        %v2261 = vshrl.u32 2475754826, %v2258
        %v2262 = vor.u32 %v2260, %v2261
        %v2263 = vshll.u32 2475754826, %v2257
        %v2264 = vshrl.u32 2131351028, %v2258
        %v2265 = vor.u32 %v2263, %v2264
        %v2266 = vshll.u32 2131351028, %v2257
        %v2267 = vshrl.u32 2102212464, %v2258
        %v2268 = vor.u32 %v2266, %v2267
        %v2269 = vshll.u32 2102212464, %v2257
        %v2270 = vshrl.u32 920167782, %v2258
        %v2271 = vor.u32 %v2269, %v2270
        %v2272 = vshll.u32 920167782, %v2257
        %v2273 = vshrl.u32 1326507024, %v2258
        %v2274 = vor.u32 %v2272, %v2273
        %vm2275 = vcmp.lt.s32.totalorder %v2256, 1
        %vm2276 = vcmp.lt.s32.totalorder %v2256, 2
        %vm2277 = vcmp.lt.s32.totalorder %v2256, 3
        %vm2278 = vcmp.lt.s32.totalorder %v2256, 4
        %v2279 = vsel %vm2275, %v2259, %v2262
        %v2280 = vsel %vm2278, %v2268, 2102212464
        %v2281 = vsel %vm2277, %v2265, %v2280
        %v2282 = vsel %vm2276, %v2279, %v2281
        %v2283 = vsel %vm2275, %v2262, %v2265
        %v2284 = vsel %vm2278, %v2271, 920167782
        %v2285 = vsel %vm2277, %v2268, %v2284
        %v2286 = vsel %vm2276, %v2283, %v2285
        %v2287 = vsel %vm2275, %v2265, %v2268
        %v2288 = vsel %vm2278, %v2274, 1326507024
        %v2289 = vsel %vm2277, %v2271, %v2288
        %v2290 = vsel %vm2276, %v2287, %v2289
        %v2291 = vshll.u32 %v2251, 8
        %v2292 = vmul.u32.u64.compose %v2291, %v2290
        %v2293 = vextract.low.u32 %v2292
        %v2294 = vextract.high.u32 %v2292
        %v2295 = vmul.u32.u64.compose %v2291, %v2286
        %v2296 = vextract.low.u32 %v2295
        %v2297 = vextract.high.u32 %v2295
        %v2298 = vmul.u32 %v2291, %v2282
        %v2299 = vadd.s32 %v2294, %v2296
        %vm2300 = vc.u32 %v2294, %v2296
        %v2301 = vadd.s32 %v2297, 1
        %v2302 = vsel %vm2300, %v2301, %v2297
        %v2303 = vadd.s32 %v2298, %v2302
        %v2304 = vadd.s32 %v2303, 536870912
        %v2305 = vshrl.u32 %v2304, 30
        %v2306 = vshll.u32 %v2305, 30
        %v2307 = vsub.s32 %v2303, %v2306
        %vm2308 = vcmp.lt.s32.totalorder %v2307, 0
        %v2309 = vsub.s32 0, %v2307
        %v2310 = vsel %vm2308, %v2309, %v2307
        %v2311 = vclz %v2310
        %v2312 = vsub.s32 %v2311, 2
        %vm2313 = vcmp.gt.s32.totalorder 0, %v2312
        %v2314 = vsel %vm2313, 0, %v2312
        %v2315 = vsub.s32 32, %v2314
        %v2316 = vshll.u32 %v2307, %v2314
        %v2317 = vshrl.u32 %v2299, %v2315
        %v2318 = vor.u32 %v2316, %v2317
        %v2319 = vsub.s32 4294967266, %v2314
        %v2320 = vadd.s32 %v2319, 127
        %v2321 = vshll.u32 %v2320, 23
        %v2322 = vor.u32 4788187, %v2321
        %v2323 = vand.u32 2147483647, %v2322
        %v2325 = vcvt.s32.f32 %v2318
        %v2326 = vmul.f32 %v2325, %v2323
        %v2327 = vxor.u32 %v2326, 2147483648
        %v2328 = vsel %vm2245, %v2327, %v2326
        %v2329 = vsub.s32 4, %v2305
        %v2330 = vsel %vm2245, %v2329, %v2305
        %v2331 = vsel %vm2244, %v1280, %v2328
        %v2332 = vsel %vm2244, 0, %v2330
        %v2333 = vcosq.f32.pop %v2331
        %v2334 = vsinq.f32.pop %v2331
        %vm2335 = vweird.f32 %v1280
        %v2336 = vadd.s32 %v2332, 3
        %v2337 = vand.u32 %v2336, 3
        %vm2338 = vcmp.lt.s32.totalorder %v2337, 2
        %vm2339 = vcmp.eq.s32.totalorder %v2337, 0
        %v2340 = vxor.u32 %v2334, 2147483648
        %v2341 = vsel %vm2339, %v2333, %v2340
        %vm2342 = vcmp.eq.s32.totalorder %v2337, 2
        %v2343 = vxor.u32 %v2333, 2147483648
        %v2344 = vsel %vm2342, %v2343, %v2334
        %v2345 = vsel %vm2338, %v2341, %v2344
        %v2346 = vsel %vm2335, nan, %v2345
        %v2347 = vand.u32 2147483647, %v1285
        %vm2348 = vcmp.le.f32.partialorder %v2347, 0.7853982
        %vm2349 = vcmp.lt.s32.totalorder %v1285, 0
        %v2350 = vand.u32 %v1285, 2139095040
        %v2351 = vshrl.u32 %v2350, 23
        %v2352 = vsub.s32 %v2351, 127
        %v2353 = vand.u32 2147483647, %v1285
        %v2354 = vand.u32 %v2353, 8388607
        %v2355 = vor.u32 %v2354, 8388608
        %v2356 = vsub.s32 0, %v2355
        %v2357 = vadd.s32 %v2352, 1
        %vm2358 = vcmp.gt.s32.totalorder %v2357, 0
        %v2359 = vsel %vm2358, %v2357, 0
        %v2360 = vshrl.u32 %v2359, 5
        %v2361 = vand.u32 %v2359, 31
        %v2362 = vsub.s32 32, %v2361
        %v2363 = vshrl.u32 683565275, %v2362
        %v2364 = vshll.u32 683565275, %v2361
        %v2365 = vshrl.u32 2475754826, %v2362
        %v2366 = vor.u32 %v2364, %v2365
        %v2367 = vshll.u32 2475754826, %v2361
        %v2368 = vshrl.u32 2131351028, %v2362
        %v2369 = vor.u32 %v2367, %v2368
        %v2370 = vshll.u32 2131351028, %v2361
        %v2371 = vshrl.u32 2102212464, %v2362
        %v2372 = vor.u32 %v2370, %v2371
        %v2373 = vshll.u32 2102212464, %v2361
        %v2374 = vshrl.u32 920167782, %v2362
        %v2375 = vor.u32 %v2373, %v2374
        %v2376 = vshll.u32 920167782, %v2361
        %v2377 = vshrl.u32 1326507024, %v2362
        %v2378 = vor.u32 %v2376, %v2377
        %vm2379 = vcmp.lt.s32.totalorder %v2360, 1
        %vm2380 = vcmp.lt.s32.totalorder %v2360, 2
        %vm2381 = vcmp.lt.s32.totalorder %v2360, 3
        %vm2382 = vcmp.lt.s32.totalorder %v2360, 4
        %v2383 = vsel %vm2379, %v2363, %v2366
        %v2384 = vsel %vm2382, %v2372, 2102212464
        %v2385 = vsel %vm2381, %v2369, %v2384
        %v2386 = vsel %vm2380, %v2383, %v2385
        %v2387 = vsel %vm2379, %v2366, %v2369
        %v2388 = vsel %vm2382, %v2375, 920167782
        %v2389 = vsel %vm2381, %v2372, %v2388
        %v2390 = vsel %vm2380, %v2387, %v2389
        %v2391 = vsel %vm2379, %v2369, %v2372
        %v2392 = vsel %vm2382, %v2378, 1326507024
        %v2393 = vsel %vm2381, %v2375, %v2392
        %v2394 = vsel %vm2380, %v2391, %v2393
        %v2395 = vshll.u32 %v2355, 8
        %v2396 = vmul.u32.u64.compose %v2395, %v2394
        %v2397 = vextract.low.u32 %v2396
        %v2398 = vextract.high.u32 %v2396
        %v2399 = vmul.u32.u64.compose %v2395, %v2390
        %v2400 = vextract.low.u32 %v2399
        %v2401 = vextract.high.u32 %v2399
        %v2402 = vmul.u32 %v2395, %v2386
        %v2403 = vadd.s32 %v2398, %v2400
        %vm2404 = vc.u32 %v2398, %v2400
        %v2405 = vadd.s32 %v2401, 1
        %v2406 = vsel %vm2404, %v2405, %v2401
        %v2407 = vadd.s32 %v2402, %v2406
        %v2408 = vadd.s32 %v2407, 536870912
        %v2409 = vshrl.u32 %v2408, 30
        %v2410 = vshll.u32 %v2409, 30
        %v2411 = vsub.s32 %v2407, %v2410
        %vm2412 = vcmp.lt.s32.totalorder %v2411, 0
        %v2413 = vsub.s32 0, %v2411
        %v2414 = vsel %vm2412, %v2413, %v2411
        %v2415 = vclz %v2414
        %v2416 = vsub.s32 %v2415, 2
        %vm2417 = vcmp.gt.s32.totalorder 0, %v2416
        %v2418 = vsel %vm2417, 0, %v2416
        %v2419 = vsub.s32 32, %v2418
        %v2420 = vshll.u32 %v2411, %v2418
        %v2421 = vshrl.u32 %v2403, %v2419
        %v2422 = vor.u32 %v2420, %v2421
        %v2423 = vsub.s32 4294967266, %v2418
        %v2424 = vadd.s32 %v2423, 127
        %v2425 = vshll.u32 %v2424, 23
        %v2426 = vor.u32 4788187, %v2425
        %v2427 = vand.u32 2147483647, %v2426
        %v2429 = vcvt.s32.f32 %v2422
        %v2430 = vmul.f32 %v2429, %v2427
        %v2431 = vxor.u32 %v2430, 2147483648
        %v2432 = vsel %vm2349, %v2431, %v2430
        %v2433 = vsub.s32 4, %v2409
        %v2434 = vsel %vm2349, %v2433, %v2409
        %v2435 = vsel %vm2348, %v1285, %v2432
        %v2436 = vsel %vm2348, 0, %v2434
        %v2437 = vcosq.f32.pop %v2435
        %v2438 = vsinq.f32.pop %v2435
        %vm2439 = vweird.f32 %v1285
        %v2440 = vadd.s32 %v2436, 3
        %v2441 = vand.u32 %v2440, 3
        %vm2442 = vcmp.lt.s32.totalorder %v2441, 2
        %vm2443 = vcmp.eq.s32.totalorder %v2441, 0
        %v2444 = vxor.u32 %v2438, 2147483648
        %v2445 = vsel %vm2443, %v2437, %v2444
        %vm2446 = vcmp.eq.s32.totalorder %v2441, 2
        %v2447 = vxor.u32 %v2437, 2147483648
        %v2448 = vsel %vm2446, %v2447, %v2438
        %v2449 = vsel %vm2442, %v2445, %v2448
        %v2450 = vsel %vm2439, nan, %v2449
        %v2451 = vand.u32 2147483647, %v1288
        %vm2452 = vcmp.le.f32.partialorder %v2451, 0.7853982
        %vm2453 = vcmp.lt.s32.totalorder %v1288, 0
        %v2454 = vand.u32 %v1288, 2139095040
        %v2455 = vshrl.u32 %v2454, 23
        %v2456 = vsub.s32 %v2455, 127
        %v2457 = vand.u32 2147483647, %v1288
        %v2458 = vand.u32 %v2457, 8388607
        %v2459 = vor.u32 %v2458, 8388608
        %v2460 = vsub.s32 0, %v2459
        %v2461 = vadd.s32 %v2456, 1
        %vm2462 = vcmp.gt.s32.totalorder %v2461, 0
        %v2463 = vsel %vm2462, %v2461, 0
        %v2464 = vshrl.u32 %v2463, 5
        %v2465 = vand.u32 %v2463, 31
        %v2466 = vsub.s32 32, %v2465
        %v2467 = vshrl.u32 683565275, %v2466
        %v2468 = vshll.u32 683565275, %v2465
        %v2469 = vshrl.u32 2475754826, %v2466
        %v2470 = vor.u32 %v2468, %v2469
        %v2471 = vshll.u32 2475754826, %v2465
        %v2472 = vshrl.u32 2131351028, %v2466
        %v2473 = vor.u32 %v2471, %v2472
        %v2474 = vshll.u32 2131351028, %v2465
        %v2475 = vshrl.u32 2102212464, %v2466
        %v2476 = vor.u32 %v2474, %v2475
        %v2477 = vshll.u32 2102212464, %v2465
        %v2478 = vshrl.u32 920167782, %v2466
        %v2479 = vor.u32 %v2477, %v2478
        %v2480 = vshll.u32 920167782, %v2465
        %v2481 = vshrl.u32 1326507024, %v2466
        %v2482 = vor.u32 %v2480, %v2481
        %vm2483 = vcmp.lt.s32.totalorder %v2464, 1
        %vm2484 = vcmp.lt.s32.totalorder %v2464, 2
        %vm2485 = vcmp.lt.s32.totalorder %v2464, 3
        %vm2486 = vcmp.lt.s32.totalorder %v2464, 4
        %v2487 = vsel %vm2483, %v2467, %v2470
        %v2488 = vsel %vm2486, %v2476, 2102212464
        %v2489 = vsel %vm2485, %v2473, %v2488
        %v2490 = vsel %vm2484, %v2487, %v2489
        %v2491 = vsel %vm2483, %v2470, %v2473
        %v2492 = vsel %vm2486, %v2479, 920167782
        %v2493 = vsel %vm2485, %v2476, %v2492
        %v2494 = vsel %vm2484, %v2491, %v2493
        %v2495 = vsel %vm2483, %v2473, %v2476
        %v2496 = vsel %vm2486, %v2482, 1326507024
        %v2497 = vsel %vm2485, %v2479, %v2496
        %v2498 = vsel %vm2484, %v2495, %v2497
        %v2499 = vshll.u32 %v2459, 8
        %v2500 = vmul.u32.u64.compose %v2499, %v2498
        %v2501 = vextract.low.u32 %v2500
        %v2502 = vextract.high.u32 %v2500
        %v2503 = vmul.u32.u64.compose %v2499, %v2494
        %v2504 = vextract.low.u32 %v2503
        %v2505 = vextract.high.u32 %v2503
        %v2506 = vmul.u32 %v2499, %v2490
        %v2507 = vadd.s32 %v2502, %v2504
        %vm2508 = vc.u32 %v2502, %v2504
        %v2509 = vadd.s32 %v2505, 1
        %v2510 = vsel %vm2508, %v2509, %v2505
        %v2511 = vadd.s32 %v2506, %v2510
        %v2512 = vadd.s32 %v2511, 536870912
        %v2513 = vshrl.u32 %v2512, 30
        %v2514 = vshll.u32 %v2513, 30
        %v2515 = vsub.s32 %v2511, %v2514
        %vm2516 = vcmp.lt.s32.totalorder %v2515, 0
        %v2517 = vsub.s32 0, %v2515
        %v2518 = vsel %vm2516, %v2517, %v2515
        %v2519 = vclz %v2518
        %v2520 = vsub.s32 %v2519, 2
        %vm2521 = vcmp.gt.s32.totalorder 0, %v2520
        %v2522 = vsel %vm2521, 0, %v2520
        %v2523 = vsub.s32 32, %v2522
        %v2524 = vshll.u32 %v2515, %v2522
        %v2525 = vshrl.u32 %v2507, %v2523
        %v2526 = vor.u32 %v2524, %v2525
        %v2527 = vsub.s32 4294967266, %v2522
        %v2528 = vadd.s32 %v2527, 127
        %v2529 = vshll.u32 %v2528, 23
        %v2530 = vor.u32 4788187, %v2529
        %v2531 = vand.u32 2147483647, %v2530
        %v2533 = vcvt.s32.f32 %v2526
        %v2534 = vmul.f32 %v2533, %v2531
        %v2535 = vxor.u32 %v2534, 2147483648
        %v2536 = vsel %vm2453, %v2535, %v2534
        %v2537 = vsub.s32 4, %v2513
        %v2538 = vsel %vm2453, %v2537, %v2513
        %v2539 = vsel %vm2452, %v1288, %v2536
        %v2540 = vsel %vm2452, 0, %v2538
        %v2541 = vcosq.f32.pop %v2539
        %v2542 = vsinq.f32.pop %v2539
        %vm2543 = vweird.f32 %v1288
        %v2544 = vadd.s32 %v2540, 3
        %v2545 = vand.u32 %v2544, 3
        %vm2546 = vcmp.lt.s32.totalorder %v2545, 2
        %vm2547 = vcmp.eq.s32.totalorder %v2545, 0
        %v2548 = vxor.u32 %v2542, 2147483648
        %v2549 = vsel %vm2547, %v2541, %v2548
        %vm2550 = vcmp.eq.s32.totalorder %v2545, 2
        %v2551 = vxor.u32 %v2541, 2147483648
        %v2552 = vsel %vm2550, %v2551, %v2542
        %v2553 = vsel %vm2546, %v2549, %v2552
        %v2554 = vsel %vm2543, nan, %v2553
        %v2555 = vand.u32 2147483647, %v1293
        %vm2556 = vcmp.le.f32.partialorder %v2555, 0.7853982
        %vm2557 = vcmp.lt.s32.totalorder %v1293, 0
        %v2558 = vand.u32 %v1293, 2139095040
        %v2559 = vshrl.u32 %v2558, 23
        %v2560 = vsub.s32 %v2559, 127
        %v2561 = vand.u32 2147483647, %v1293
        %v2562 = vand.u32 %v2561, 8388607
        %v2563 = vor.u32 %v2562, 8388608
        %v2564 = vsub.s32 0, %v2563
        %v2565 = vadd.s32 %v2560, 1
        %vm2566 = vcmp.gt.s32.totalorder %v2565, 0
        %v2567 = vsel %vm2566, %v2565, 0
        %v2568 = vshrl.u32 %v2567, 5
        %v2569 = vand.u32 %v2567, 31
        %v2570 = vsub.s32 32, %v2569
        %v2571 = vshrl.u32 683565275, %v2570
        %v2572 = vshll.u32 683565275, %v2569
        %v2573 = vshrl.u32 2475754826, %v2570
        %v2574 = vor.u32 %v2572, %v2573
        %v2575 = vshll.u32 2475754826, %v2569
        %v2576 = vshrl.u32 2131351028, %v2570
        %v2577 = vor.u32 %v2575, %v2576
        %v2578 = vshll.u32 2131351028, %v2569
        %v2579 = vshrl.u32 2102212464, %v2570
        %v2580 = vor.u32 %v2578, %v2579
        %v2581 = vshll.u32 2102212464, %v2569
        %v2582 = vshrl.u32 920167782, %v2570
        %v2583 = vor.u32 %v2581, %v2582
        %v2584 = vshll.u32 920167782, %v2569
        %v2585 = vshrl.u32 1326507024, %v2570
        %v2586 = vor.u32 %v2584, %v2585
        %vm2587 = vcmp.lt.s32.totalorder %v2568, 1
        %vm2588 = vcmp.lt.s32.totalorder %v2568, 2
        %vm2589 = vcmp.lt.s32.totalorder %v2568, 3
        %vm2590 = vcmp.lt.s32.totalorder %v2568, 4
        %v2591 = vsel %vm2587, %v2571, %v2574
        %v2592 = vsel %vm2590, %v2580, 2102212464
        %v2593 = vsel %vm2589, %v2577, %v2592
        %v2594 = vsel %vm2588, %v2591, %v2593
        %v2595 = vsel %vm2587, %v2574, %v2577
        %v2596 = vsel %vm2590, %v2583, 920167782
        %v2597 = vsel %vm2589, %v2580, %v2596
        %v2598 = vsel %vm2588, %v2595, %v2597
        %v2599 = vsel %vm2587, %v2577, %v2580
        %v2600 = vsel %vm2590, %v2586, 1326507024
        %v2601 = vsel %vm2589, %v2583, %v2600
        %v2602 = vsel %vm2588, %v2599, %v2601
        %v2603 = vshll.u32 %v2563, 8
        %v2604 = vmul.u32.u64.compose %v2603, %v2602
        %v2605 = vextract.low.u32 %v2604
        %v2606 = vextract.high.u32 %v2604
        %v2607 = vmul.u32.u64.compose %v2603, %v2598
        %v2608 = vextract.low.u32 %v2607
        %v2609 = vextract.high.u32 %v2607
        %v2610 = vmul.u32 %v2603, %v2594
        %v2611 = vadd.s32 %v2606, %v2608
        %vm2612 = vc.u32 %v2606, %v2608
        %v2613 = vadd.s32 %v2609, 1
        %v2614 = vsel %vm2612, %v2613, %v2609
        %v2615 = vadd.s32 %v2610, %v2614
        %v2616 = vadd.s32 %v2615, 536870912
        %v2617 = vshrl.u32 %v2616, 30
        %v2618 = vshll.u32 %v2617, 30
        %v2619 = vsub.s32 %v2615, %v2618
        %vm2620 = vcmp.lt.s32.totalorder %v2619, 0
        %v2621 = vsub.s32 0, %v2619
        %v2622 = vsel %vm2620, %v2621, %v2619
        %v2623 = vclz %v2622
        %v2624 = vsub.s32 %v2623, 2
        %vm2625 = vcmp.gt.s32.totalorder 0, %v2624
        %v2626 = vsel %vm2625, 0, %v2624
        %v2627 = vsub.s32 32, %v2626
        %v2628 = vshll.u32 %v2619, %v2626
        %v2629 = vshrl.u32 %v2611, %v2627
        %v2630 = vor.u32 %v2628, %v2629
        %v2631 = vsub.s32 4294967266, %v2626
        %v2632 = vadd.s32 %v2631, 127
        %v2633 = vshll.u32 %v2632, 23
        %v2634 = vor.u32 4788187, %v2633
        %v2635 = vand.u32 2147483647, %v2634
        %v2637 = vcvt.s32.f32 %v2630
        %v2638 = vmul.f32 %v2637, %v2635
        %v2639 = vxor.u32 %v2638, 2147483648
        %v2640 = vsel %vm2557, %v2639, %v2638
        %v2641 = vsub.s32 4, %v2617
        %v2642 = vsel %vm2557, %v2641, %v2617
        %v2643 = vsel %vm2556, %v1293, %v2640
        %v2644 = vsel %vm2556, 0, %v2642
        %v2645 = vcosq.f32.pop %v2643
        %v2646 = vsinq.f32.pop %v2643
        %vm2647 = vweird.f32 %v1293
        %v2648 = vadd.s32 %v2644, 3
        %v2649 = vand.u32 %v2648, 3
        %vm2650 = vcmp.lt.s32.totalorder %v2649, 2
        %vm2651 = vcmp.eq.s32.totalorder %v2649, 0
        %v2652 = vxor.u32 %v2646, 2147483648
        %v2653 = vsel %vm2651, %v2645, %v2652
        %vm2654 = vcmp.eq.s32.totalorder %v2649, 2
        %v2655 = vxor.u32 %v2645, 2147483648
        %v2656 = vsel %vm2654, %v2655, %v2646
        %v2657 = vsel %vm2650, %v2653, %v2656
        %v2658 = vsel %vm2647, nan, %v2657
        %v2659 = vand.u32 2147483647, %v1296
        %vm2660 = vcmp.le.f32.partialorder %v2659, 0.7853982
        %vm2661 = vcmp.lt.s32.totalorder %v1296, 0
        %v2662 = vand.u32 %v1296, 2139095040
        %v2663 = vshrl.u32 %v2662, 23
        %v2664 = vsub.s32 %v2663, 127
        %v2665 = vand.u32 2147483647, %v1296
        %v2666 = vand.u32 %v2665, 8388607
        %v2667 = vor.u32 %v2666, 8388608
        %v2668 = vsub.s32 0, %v2667
        %v2669 = vadd.s32 %v2664, 1
        %vm2670 = vcmp.gt.s32.totalorder %v2669, 0
        %v2671 = vsel %vm2670, %v2669, 0
        %v2672 = vshrl.u32 %v2671, 5
        %v2673 = vand.u32 %v2671, 31
        %v2674 = vsub.s32 32, %v2673
        %v2675 = vshrl.u32 683565275, %v2674
        %v2676 = vshll.u32 683565275, %v2673
        %v2677 = vshrl.u32 2475754826, %v2674
        %v2678 = vor.u32 %v2676, %v2677
        %v2679 = vshll.u32 2475754826, %v2673
        %v2680 = vshrl.u32 2131351028, %v2674
        %v2681 = vor.u32 %v2679, %v2680
        %v2682 = vshll.u32 2131351028, %v2673
        %v2683 = vshrl.u32 2102212464, %v2674
        %v2684 = vor.u32 %v2682, %v2683
        %v2685 = vshll.u32 2102212464, %v2673
        %v2686 = vshrl.u32 920167782, %v2674
        %v2687 = vor.u32 %v2685, %v2686
        %v2688 = vshll.u32 920167782, %v2673
        %v2689 = vshrl.u32 1326507024, %v2674
        %v2690 = vor.u32 %v2688, %v2689
        %vm2691 = vcmp.lt.s32.totalorder %v2672, 1
        %vm2692 = vcmp.lt.s32.totalorder %v2672, 2
        %vm2693 = vcmp.lt.s32.totalorder %v2672, 3
        %vm2694 = vcmp.lt.s32.totalorder %v2672, 4
        %v2695 = vsel %vm2691, %v2675, %v2678
        %v2696 = vsel %vm2694, %v2684, 2102212464
        %v2697 = vsel %vm2693, %v2681, %v2696
        %v2698 = vsel %vm2692, %v2695, %v2697
        %v2699 = vsel %vm2691, %v2678, %v2681
        %v2700 = vsel %vm2694, %v2687, 920167782
        %v2701 = vsel %vm2693, %v2684, %v2700
        %v2702 = vsel %vm2692, %v2699, %v2701
        %v2703 = vsel %vm2691, %v2681, %v2684
        %v2704 = vsel %vm2694, %v2690, 1326507024
        %v2705 = vsel %vm2693, %v2687, %v2704
        %v2706 = vsel %vm2692, %v2703, %v2705
        %v2707 = vshll.u32 %v2667, 8
        %v2708 = vmul.u32.u64.compose %v2707, %v2706
        %v2709 = vextract.low.u32 %v2708
        %v2710 = vextract.high.u32 %v2708
        %v2711 = vmul.u32.u64.compose %v2707, %v2702
        %v2712 = vextract.low.u32 %v2711
        %v2713 = vextract.high.u32 %v2711
        %v2714 = vmul.u32 %v2707, %v2698
        %v2715 = vadd.s32 %v2710, %v2712
        %vm2716 = vc.u32 %v2710, %v2712
        %v2717 = vadd.s32 %v2713, 1
        %v2718 = vsel %vm2716, %v2717, %v2713
        %v2719 = vadd.s32 %v2714, %v2718
        %v2720 = vadd.s32 %v2719, 536870912
        %v2721 = vshrl.u32 %v2720, 30
        %v2722 = vshll.u32 %v2721, 30
        %v2723 = vsub.s32 %v2719, %v2722
        %vm2724 = vcmp.lt.s32.totalorder %v2723, 0
        %v2725 = vsub.s32 0, %v2723
        %v2726 = vsel %vm2724, %v2725, %v2723
        %v2727 = vclz %v2726
        %v2728 = vsub.s32 %v2727, 2
        %vm2729 = vcmp.gt.s32.totalorder 0, %v2728
        %v2730 = vsel %vm2729, 0, %v2728
        %v2731 = vsub.s32 32, %v2730
        %v2732 = vshll.u32 %v2723, %v2730
        %v2733 = vshrl.u32 %v2715, %v2731
        %v2734 = vor.u32 %v2732, %v2733
        %v2735 = vsub.s32 4294967266, %v2730
        %v2736 = vadd.s32 %v2735, 127
        %v2737 = vshll.u32 %v2736, 23
        %v2738 = vor.u32 4788187, %v2737
        %v2739 = vand.u32 2147483647, %v2738
        %v2741 = vcvt.s32.f32 %v2734
        %v2742 = vmul.f32 %v2741, %v2739
        %v2743 = vxor.u32 %v2742, 2147483648
        %v2744 = vsel %vm2661, %v2743, %v2742
        %v2745 = vsub.s32 4, %v2721
        %v2746 = vsel %vm2661, %v2745, %v2721
        %v2747 = vsel %vm2660, %v1296, %v2744
        %v2748 = vsel %vm2660, 0, %v2746
        %v2749 = vcosq.f32.pop %v2747
        %v2750 = vsinq.f32.pop %v2747
        %vm2751 = vweird.f32 %v1296
        %v2752 = vadd.s32 %v2748, 3
        %v2753 = vand.u32 %v2752, 3
        %vm2754 = vcmp.lt.s32.totalorder %v2753, 2
        %vm2755 = vcmp.eq.s32.totalorder %v2753, 0
        %v2756 = vxor.u32 %v2750, 2147483648
        %v2757 = vsel %vm2755, %v2749, %v2756
        %vm2758 = vcmp.eq.s32.totalorder %v2753, 2
        %v2759 = vxor.u32 %v2749, 2147483648
        %v2760 = vsel %vm2758, %v2759, %v2750
        %v2761 = vsel %vm2754, %v2757, %v2760
        %v2762 = vsel %vm2751, nan, %v2761
        %v2763 = vand.u32 2147483647, %v1301
        %vm2764 = vcmp.le.f32.partialorder %v2763, 0.7853982
        %vm2765 = vcmp.lt.s32.totalorder %v1301, 0
        %v2766 = vand.u32 %v1301, 2139095040
        %v2767 = vshrl.u32 %v2766, 23
        %v2768 = vsub.s32 %v2767, 127
        %v2769 = vand.u32 2147483647, %v1301
        %v2770 = vand.u32 %v2769, 8388607
        %v2771 = vor.u32 %v2770, 8388608
        %v2772 = vsub.s32 0, %v2771
        %v2773 = vadd.s32 %v2768, 1
        %vm2774 = vcmp.gt.s32.totalorder %v2773, 0
        %v2775 = vsel %vm2774, %v2773, 0
        %v2776 = vshrl.u32 %v2775, 5
        %v2777 = vand.u32 %v2775, 31
        %v2778 = vsub.s32 32, %v2777
        %v2779 = vshrl.u32 683565275, %v2778
        %v2780 = vshll.u32 683565275, %v2777
        %v2781 = vshrl.u32 2475754826, %v2778
        %v2782 = vor.u32 %v2780, %v2781
        %v2783 = vshll.u32 2475754826, %v2777
        %v2784 = vshrl.u32 2131351028, %v2778
        %v2785 = vor.u32 %v2783, %v2784
        %v2786 = vshll.u32 2131351028, %v2777
        %v2787 = vshrl.u32 2102212464, %v2778
        %v2788 = vor.u32 %v2786, %v2787
        %v2789 = vshll.u32 2102212464, %v2777
        %v2790 = vshrl.u32 920167782, %v2778
        %v2791 = vor.u32 %v2789, %v2790
        %v2792 = vshll.u32 920167782, %v2777
        %v2793 = vshrl.u32 1326507024, %v2778
        %v2794 = vor.u32 %v2792, %v2793
        %vm2795 = vcmp.lt.s32.totalorder %v2776, 1
        %vm2796 = vcmp.lt.s32.totalorder %v2776, 2
        %vm2797 = vcmp.lt.s32.totalorder %v2776, 3
        %vm2798 = vcmp.lt.s32.totalorder %v2776, 4
        %v2799 = vsel %vm2795, %v2779, %v2782
        %v2800 = vsel %vm2798, %v2788, 2102212464
        %v2801 = vsel %vm2797, %v2785, %v2800
        %v2802 = vsel %vm2796, %v2799, %v2801
        %v2803 = vsel %vm2795, %v2782, %v2785
        %v2804 = vsel %vm2798, %v2791, 920167782
        %v2805 = vsel %vm2797, %v2788, %v2804
        %v2806 = vsel %vm2796, %v2803, %v2805
        %v2807 = vsel %vm2795, %v2785, %v2788
        %v2808 = vsel %vm2798, %v2794, 1326507024
        %v2809 = vsel %vm2797, %v2791, %v2808
        %v2810 = vsel %vm2796, %v2807, %v2809
        %v2811 = vshll.u32 %v2771, 8
        %v2812 = vmul.u32.u64.compose %v2811, %v2810
        %v2813 = vextract.low.u32 %v2812
        %v2814 = vextract.high.u32 %v2812
        %v2815 = vmul.u32.u64.compose %v2811, %v2806
        %v2816 = vextract.low.u32 %v2815
        %v2817 = vextract.high.u32 %v2815
        %v2818 = vmul.u32 %v2811, %v2802
        %v2819 = vadd.s32 %v2814, %v2816
        %vm2820 = vc.u32 %v2814, %v2816
        %v2821 = vadd.s32 %v2817, 1
        %v2822 = vsel %vm2820, %v2821, %v2817
        %v2823 = vadd.s32 %v2818, %v2822
        %v2824 = vadd.s32 %v2823, 536870912
        %v2825 = vshrl.u32 %v2824, 30
        %v2826 = vshll.u32 %v2825, 30
        %v2827 = vsub.s32 %v2823, %v2826
        %vm2828 = vcmp.lt.s32.totalorder %v2827, 0
        %v2829 = vsub.s32 0, %v2827
        %v2830 = vsel %vm2828, %v2829, %v2827
        %v2831 = vclz %v2830
        %v2832 = vsub.s32 %v2831, 2
        %vm2833 = vcmp.gt.s32.totalorder 0, %v2832
        %v2834 = vsel %vm2833, 0, %v2832
        %v2835 = vsub.s32 32, %v2834
        %v2836 = vshll.u32 %v2827, %v2834
        %v2837 = vshrl.u32 %v2819, %v2835
        %v2838 = vor.u32 %v2836, %v2837
        %v2839 = vsub.s32 4294967266, %v2834
        %v2840 = vadd.s32 %v2839, 127
        %v2841 = vshll.u32 %v2840, 23
        %v2842 = vor.u32 4788187, %v2841
        %v2843 = vand.u32 2147483647, %v2842
        %v2845 = vcvt.s32.f32 %v2838
        %v2846 = vmul.f32 %v2845, %v2843
        %v2847 = vxor.u32 %v2846, 2147483648
        %v2848 = vsel %vm2765, %v2847, %v2846
        %v2849 = vsub.s32 4, %v2825
        %v2850 = vsel %vm2765, %v2849, %v2825
        %v2851 = vsel %vm2764, %v1301, %v2848
        %v2852 = vsel %vm2764, 0, %v2850
        %v2853 = vcosq.f32.pop %v2851
        %v2854 = vsinq.f32.pop %v2851
        %vm2855 = vweird.f32 %v1301
        %v2856 = vadd.s32 %v2852, 3
        %v2857 = vand.u32 %v2856, 3
        %vm2858 = vcmp.lt.s32.totalorder %v2857, 2
        %vm2859 = vcmp.eq.s32.totalorder %v2857, 0
        %v2860 = vxor.u32 %v2854, 2147483648
        %v2861 = vsel %vm2859, %v2853, %v2860
        %vm2862 = vcmp.eq.s32.totalorder %v2857, 2
        %v2863 = vxor.u32 %v2853, 2147483648
        %v2864 = vsel %vm2862, %v2863, %v2854
        %v2865 = vsel %vm2858, %v2861, %v2864
        %v2866 = vsel %vm2855, nan, %v2865
        %v2867 = vand.u32 2147483647, %v1304
        %vm2868 = vcmp.le.f32.partialorder %v2867, 0.7853982
        %vm2869 = vcmp.lt.s32.totalorder %v1304, 0
        %v2870 = vand.u32 %v1304, 2139095040
        %v2871 = vshrl.u32 %v2870, 23
        %v2872 = vsub.s32 %v2871, 127
        %v2873 = vand.u32 2147483647, %v1304
        %v2874 = vand.u32 %v2873, 8388607
        %v2875 = vor.u32 %v2874, 8388608
        %v2876 = vsub.s32 0, %v2875
        %v2877 = vadd.s32 %v2872, 1
        %vm2878 = vcmp.gt.s32.totalorder %v2877, 0
        %v2879 = vsel %vm2878, %v2877, 0
        %v2880 = vshrl.u32 %v2879, 5
        %v2881 = vand.u32 %v2879, 31
        %v2882 = vsub.s32 32, %v2881
        %v2883 = vshrl.u32 683565275, %v2882
        %v2884 = vshll.u32 683565275, %v2881
        %v2885 = vshrl.u32 2475754826, %v2882
        %v2886 = vor.u32 %v2884, %v2885
        %v2887 = vshll.u32 2475754826, %v2881
        %v2888 = vshrl.u32 2131351028, %v2882
        %v2889 = vor.u32 %v2887, %v2888
        %v2890 = vshll.u32 2131351028, %v2881
        %v2891 = vshrl.u32 2102212464, %v2882
        %v2892 = vor.u32 %v2890, %v2891
        %v2893 = vshll.u32 2102212464, %v2881
        %v2894 = vshrl.u32 920167782, %v2882
        %v2895 = vor.u32 %v2893, %v2894
        %v2896 = vshll.u32 920167782, %v2881
        %v2897 = vshrl.u32 1326507024, %v2882
        %v2898 = vor.u32 %v2896, %v2897
        %vm2899 = vcmp.lt.s32.totalorder %v2880, 1
        %vm2900 = vcmp.lt.s32.totalorder %v2880, 2
        %vm2901 = vcmp.lt.s32.totalorder %v2880, 3
        %vm2902 = vcmp.lt.s32.totalorder %v2880, 4
        %v2903 = vsel %vm2899, %v2883, %v2886
        %v2904 = vsel %vm2902, %v2892, 2102212464
        %v2905 = vsel %vm2901, %v2889, %v2904
        %v2906 = vsel %vm2900, %v2903, %v2905
        %v2907 = vsel %vm2899, %v2886, %v2889
        %v2908 = vsel %vm2902, %v2895, 920167782
        %v2909 = vsel %vm2901, %v2892, %v2908
        %v2910 = vsel %vm2900, %v2907, %v2909
        %v2911 = vsel %vm2899, %v2889, %v2892
        %v2912 = vsel %vm2902, %v2898, 1326507024
        %v2913 = vsel %vm2901, %v2895, %v2912
        %v2914 = vsel %vm2900, %v2911, %v2913
        %v2915 = vshll.u32 %v2875, 8
        %v2916 = vmul.u32.u64.compose %v2915, %v2914
        %v2917 = vextract.low.u32 %v2916
        %v2918 = vextract.high.u32 %v2916
        %v2919 = vmul.u32.u64.compose %v2915, %v2910
        %v2920 = vextract.low.u32 %v2919
        %v2921 = vextract.high.u32 %v2919
        %v2922 = vmul.u32 %v2915, %v2906
        %v2923 = vadd.s32 %v2918, %v2920
        %vm2924 = vc.u32 %v2918, %v2920
        %v2925 = vadd.s32 %v2921, 1
        %v2926 = vsel %vm2924, %v2925, %v2921
        %v2927 = vadd.s32 %v2922, %v2926
        %v2928 = vadd.s32 %v2927, 536870912
        %v2929 = vshrl.u32 %v2928, 30
        %v2930 = vshll.u32 %v2929, 30
        %v2931 = vsub.s32 %v2927, %v2930
        %vm2932 = vcmp.lt.s32.totalorder %v2931, 0
        %v2933 = vsub.s32 0, %v2931
        %v2934 = vsel %vm2932, %v2933, %v2931
        %v2935 = vclz %v2934
        %v2936 = vsub.s32 %v2935, 2
        %vm2937 = vcmp.gt.s32.totalorder 0, %v2936
        %v2938 = vsel %vm2937, 0, %v2936
        %v2939 = vsub.s32 32, %v2938
        %v2940 = vshll.u32 %v2931, %v2938
        %v2941 = vshrl.u32 %v2923, %v2939
        %v2942 = vor.u32 %v2940, %v2941
        %v2943 = vsub.s32 4294967266, %v2938
        %v2944 = vadd.s32 %v2943, 127
        %v2945 = vshll.u32 %v2944, 23
        %v2946 = vor.u32 4788187, %v2945
        %v2947 = vand.u32 2147483647, %v2946
        %v2949 = vcvt.s32.f32 %v2942
        %v2950 = vmul.f32 %v2949, %v2947
        %v2951 = vxor.u32 %v2950, 2147483648
        %v2952 = vsel %vm2869, %v2951, %v2950
        %v2953 = vsub.s32 4, %v2929
        %v2954 = vsel %vm2869, %v2953, %v2929
        %v2955 = vsel %vm2868, %v1304, %v2952
        %v2956 = vsel %vm2868, 0, %v2954
        %v2957 = vcosq.f32.pop %v2955
        %v2958 = vsinq.f32.pop %v2955
        %vm2959 = vweird.f32 %v1304
        %v2960 = vadd.s32 %v2956, 3
        %v2961 = vand.u32 %v2960, 3
        %vm2962 = vcmp.lt.s32.totalorder %v2961, 2
        %vm2963 = vcmp.eq.s32.totalorder %v2961, 0
        %v2964 = vxor.u32 %v2958, 2147483648
        %v2965 = vsel %vm2963, %v2957, %v2964
        %vm2966 = vcmp.eq.s32.totalorder %v2961, 2
        %v2967 = vxor.u32 %v2957, 2147483648
        %v2968 = vsel %vm2966, %v2967, %v2958
        %v2969 = vsel %vm2962, %v2965, %v2968
        %v2970 = vsel %vm2959, nan, %v2969
        %2972 = vset.pattern.permute.xlu0 0
        %2973 = vperm.xlu0 %2972, %v603
        %v2974 = vpop.permute.xlu0 %2973
        %2977 = vset.pattern.permute.xlu0 0
        %2978 = vperm.xlu0 %2977, %v604
        %v2979 = vpop.permute.xlu0 %2978
        %2982 = vset.pattern.permute.xlu0 0
        %2983 = vperm.xlu0 %2982, %v605
        %v2984 = vpop.permute.xlu0 %2983
        %2987 = vset.pattern.permute.xlu0 0
        %2988 = vperm.xlu0 %2987, %v606
        %v2989 = vpop.permute.xlu0 %2988
        %2992 = vset.pattern.permute.xlu0 0
        %2993 = vperm.xlu0 %2992, %v607
        %v2994 = vpop.permute.xlu0 %2993
        %2997 = vset.pattern.permute.xlu0 0
        %2998 = vperm.xlu0 %2997, %v608
        %v2999 = vpop.permute.xlu0 %2998
        %3002 = vset.pattern.permute.xlu0 0
        %3003 = vperm.xlu0 %3002, %v609
        %v3004 = vpop.permute.xlu0 %3003
        %3007 = vset.pattern.permute.xlu0 0
        %3008 = vperm.xlu0 %3007, %v610
        %v3009 = vpop.permute.xlu0 %3008
        %v3011 = vmul.f32 %v2974, %v2242
        %v3012 = vmul.f32 %v2979, %v2346
        %v3013 = vmul.f32 %v2984, %v2450
        %v3014 = vmul.f32 %v2989, %v2554
        %v3015 = vmul.f32 %v2994, %v2658
        %v3016 = vmul.f32 %v2999, %v2762
        %v3017 = vmul.f32 %v3004, %v2866
        %v3018 = vmul.f32 %v3009, %v2970
        %v3019 = vmul.f32 %v889, %v3011
        %v3020 = vmul.f32 %v892, %v3012
        %v3021 = vmul.f32 %v897, %v3013
        %v3022 = vmul.f32 %v900, %v3014
        %v3023 = vmul.f32 %v905, %v3015
        %v3024 = vmul.f32 %v908, %v3016
        %v3025 = vmul.f32 %v913, %v3017
        %v3026 = vmul.f32 %v916, %v3018
        %3027 = vst [vmem:[%s561] sm:$0xff] %v889
        %3028 = vst [vmem:[%s561 + $0x8] sm:$0xff] %v892
        %3029 = vst [vmem:[%s561 + $0x10] sm:$0xff] %v897
        %3030 = vst [vmem:[%s561 + $0x18] sm:$0xff] %v900
        %3031 = vst [vmem:[%s561 + $0x20] sm:$0xff] %v905
        %3032 = vst [vmem:[%s561 + $0x28] sm:$0xff] %v908
        %3033 = vst [vmem:[%s561 + $0x30] sm:$0xff] %v913
        %3034 = vst [vmem:[%s561 + $0x38] sm:$0xff] %v916
        %3035 = vst [vmem:[%s568] sm:$0xff] %v1277
        %3036 = vst [vmem:[%s568 + $0x8] sm:$0xff] %v1280
        %3037 = vst [vmem:[%s568 + $0x10] sm:$0xff] %v1285
        %3038 = vst [vmem:[%s568 + $0x18] sm:$0xff] %v1288
        %3039 = vst [vmem:[%s568 + $0x20] sm:$0xff] %v1293
        %3040 = vst [vmem:[%s568 + $0x28] sm:$0xff] %v1296
        %3041 = vst [vmem:[%s568 + $0x30] sm:$0xff] %v1301
        %3042 = vst [vmem:[%s568 + $0x38] sm:$0xff] %v1304
        %3043 = vst [vmem:[%s554] sm:$0xff] %v2131
        %3044 = vst [vmem:[%s554 + $0x10] sm:$0xff] %v2132
        %3045 = vst [vmem:[%s554 + $0x20] sm:$0xff] %v2133
        %3046 = vst [vmem:[%s554 + $0x30] sm:$0xff] %v2134
        %3047 = vst [vmem:[%s554 + $0x40] sm:$0xff] %v2135
        %3048 = vst [vmem:[%s554 + $0x50] sm:$0xff] %v2136
        %3049 = vst [vmem:[%s554 + $0x60] sm:$0xff] %v2137
        %3050 = vst [vmem:[%s554 + $0x70] sm:$0xff] %v2138
        %3051 = vst [vmem:[%s554 + $0x8] sm:$0xff] %v3019
        %3052 = vst [vmem:[%s554 + $0x18] sm:$0xff] %v3020
        %3053 = vst [vmem:[%s554 + $0x28] sm:$0xff] %v3021
        %3054 = vst [vmem:[%s554 + $0x38] sm:$0xff] %v3022
        %3055 = vst [vmem:[%s554 + $0x48] sm:$0xff] %v3023
        %3056 = vst [vmem:[%s554 + $0x58] sm:$0xff] %v3024
        %3057 = vst [vmem:[%s554 + $0x68] sm:$0xff] %v3025
        %3058 = vst [vmem:[%s554 + $0x78] sm:$0xff] %v3026
        %s3059 = sand.u32 %s290, 1
        %s3060 = scalar_lea.sflag [#allocation4], %s3059
        %s3061 = sand.u32 %s290, 1
        %s3062 = smul.addr %s3061, 128
        %s3063 = scalar_lea.vmem [#allocation11], %s3062
        %s3064 = sand.u32 %s36, 1
        %s3065 = scalar_lea.sflag [#allocation13], %s3064
        %s3066 = sand.u32 %s316, 1
        %s3067 = smul.addr %s3066, 64
        %s3068 = scalar_lea.vmem [#allocation12], %s3067
        %s3069 = sand.u32 %s36, 1
        %s3070 = scalar_lea.sflag [#allocation13], %s3069
        %s3071 = sand.u32 %s342, 1
        %s3072 = smul.addr %s3071, 64
        %s3073 = scalar_lea.vmem [#allocation14], %s3072
        // Predicated region
        $region85: #{tpu_custom_call.1} parent=63 // pred_check
          %p3074 = pneg %p300
        $region86: #{tpu_custom_call.1} parent=63 // pred_check_branch
          %3076 = sbr.rel (%p3074) target = $region88
        $region87: #{tpu_custom_call.1} parent=63 // pred_region
          %s3077 = smul.u32 8, %s36
          %s3079 = ssub.s32 2048, 2048
          %3080 = vsyncadd %s3060, %s3079
          %s3081 = smul.addr %s3077, 2
          %s3082 = smul.addr %s3081, 128
          %s3083 = scalar_lea.hbm %s11, %s3082
          %s3084 = sshll.u32 %s3063, 4
          %s3085 = int_to_ptr.vmem [resolvable:$true] %s3084
          %3090 = dma.vmem_to_hbm [thread:$0]  %s3085, 2048, %s3083, %s3060, 256, 256, 16
        $region88: #{tpu_custom_call.1} parent=63 // pred_fallthru
          _
        // Predicated region
        $region89: #{tpu_custom_call.1} parent=63 // pred_check
          %p3091 = pneg %p326
        $region90: #{tpu_custom_call.1} parent=63 // pred_check_branch
          %3093 = sbr.rel (%p3091) target = $region92
        $region91: #{tpu_custom_call.1} parent=63 // pred_region
          %s3094 = smul.u32 8, %s36
          %s3096 = ssub.s32 1024, 1024
          %3097 = vsyncadd %s3065, %s3096
          %s3098 = smul.addr %s3094, 128
          %s3099 = scalar_lea.hbm %s12, %s3098
          %s3100 = sshll.u32 %s3068, 4
          %s3101 = int_to_ptr.vmem [resolvable:$true] %s3100
          %3106 = dma.vmem_to_hbm [thread:$0]  %s3101, 1024, %s3099, %s3065, 128, 128, 8
        $region92: #{tpu_custom_call.1} parent=63 // pred_fallthru
          _
        // Predicated region
        $region93: #{tpu_custom_call.1} parent=63 // pred_check
          %p3107 = pneg %p352
        $region94: #{tpu_custom_call.1} parent=63 // pred_check_branch
          %3109 = sbr.rel (%p3107) target = $region96
        $region95: #{tpu_custom_call.1} parent=63 // pred_region
          %s3110 = smul.u32 8, %s36
          %s3112 = ssub.s32 1024, 1024
          %3113 = vsyncadd %s3070, %s3112
          %s3114 = smul.addr %s3110, 128
          %s3115 = scalar_lea.hbm %s13, %s3114
          %s3116 = sshll.u32 %s3073, 4
          %s3117 = int_to_ptr.vmem [resolvable:$true] %s3116
          %3122 = dma.vmem_to_hbm [thread:$0]  %s3117, 1024, %s3115, %s3070, 128, 128, 8
        $region96: #{tpu_custom_call.1} parent=63 // pred_fallthru
          _
      $region64: #{tpu_custom_call.1} parent=5 // pred_fallthru
        _
      %p3123 = scmp.le.s32.totalorder 2, %s31
      // Predicated region
      $region97: #{tpu_custom_call.1} parent=5 // pred_check
        %p3124 = pneg %p3123
      $region98: #{tpu_custom_call.1} parent=5 // pred_check_branch
        %3126 = sbr.rel (%p3124) target = $region100
      $region99: #{tpu_custom_call.1} parent=5 // pred_region
        %s3127 = ssub.s32 %s31, 2
        // Predicated region
        $region101: #{tpu_custom_call.1} parent=99 // pred_check
          %p3128 = pneg %p306
        $region102: #{tpu_custom_call.1} parent=99 // pred_check_branch
          %3130 = sbr.rel (%p3128) target = $region104
        $region103: #{tpu_custom_call.1} parent=99 // pred_region
          %s3131 = sand.u32 %s291, 1
          %s3132 = scalar_lea.sflag [#allocation4], %s3131
          %s3133 = sand.u32 %s291, 1
          %s3134 = smul.addr %s3133, 128
          %s3135 = scalar_lea.vmem [#allocation11], %s3134
          %3136 = dma.done %s3132, 2048
        $region104: #{tpu_custom_call.1} parent=99 // pred_fallthru
          _
        // Predicated region
        $region105: #{tpu_custom_call.1} parent=99 // pred_check
          %p3137 = pneg %p332
        $region106: #{tpu_custom_call.1} parent=99 // pred_check_branch
          %3139 = sbr.rel (%p3137) target = $region108
        $region107: #{tpu_custom_call.1} parent=99 // pred_region
          %s3140 = sand.u32 %s37, 1
          %s3141 = scalar_lea.sflag [#allocation13], %s3140
          %s3142 = sand.u32 %s317, 1
          %s3143 = smul.addr %s3142, 64
          %s3144 = scalar_lea.vmem [#allocation12], %s3143
          %3145 = dma.done %s3141, 1024
        $region108: #{tpu_custom_call.1} parent=99 // pred_fallthru
          _
        // Predicated region
        $region109: #{tpu_custom_call.1} parent=99 // pred_check
          %p3146 = pneg %p358
        $region110: #{tpu_custom_call.1} parent=99 // pred_check_branch
          %3148 = sbr.rel (%p3146) target = $region112
        $region111: #{tpu_custom_call.1} parent=99 // pred_region
          %s3149 = sand.u32 %s37, 1
          %s3150 = scalar_lea.sflag [#allocation13], %s3149
          %s3151 = sand.u32 %s343, 1
          %s3152 = smul.addr %s3151, 64
          %s3153 = scalar_lea.vmem [#allocation14], %s3152
          %3154 = dma.done %s3150, 1024
        $region112: #{tpu_custom_call.1} parent=99 // pred_fallthru
          _
      $region100: #{tpu_custom_call.1} parent=5 // pred_fallthru
        _
    $region6: #{tpu_custom_call.1} parent=1 // loop_footer
      %s35 = sadd.s32 1, %s31
    $region7: #{tpu_custom_call.1} parent=1 // loop_footer_branch
      %30 = sbr.rel target = $region3
    $region8: #{tpu_custom_call.1} parent=1 // loop_exit
      _
    %3155 = vsyncpa [#allocation3], 1
    %s3156 = scalar_lea.sflag [#allocation3], 1
    %3157 = vsyncpa %s3156, 1
    %3158 = vsyncpa [#allocation6], 1
    %3159 = vsyncpa [#allocation9], 1
    %3160 = vsyncpa [#allocation4], 1
    %s3161 = scalar_lea.sflag [#allocation4], 1
    %3162 = vsyncpa %s3161, 1
    %3163 = vsyncpa [#allocation13], 1
    %s3164 = scalar_lea.sflag [#allocation13], 1
    %3165 = vsyncpa %s3164, 1

</llo_original>
